<compile_context>
chip_gen: v7x
topology: tpu7x:2x2x1
jax: 0.10.0
libtpu: 0.0.40
codegen_flags: <defaults>
</compile_context>

<pallas_src>
import functools
import numpy as np

import jax
import jax.numpy as jnp
from jax.experimental import pallas as pl
from jax.experimental.pallas import tpu as pltpu


# ----------------------------------------------------------------------------
# Filter bank (only the pattern the module's default init uses)
# ----------------------------------------------------------------------------
FILTER_PATTERNS = {
    'smooth': [1.0, -0.5, 0.1, -0.02, 0.004, -0.0008, 0.00015, -3e-05],
}


def get_filter_coefficients(name, order):
    coeffs = list(FILTER_PATTERNS[name])
    if len(coeffs) > order + 1:
        coeffs = coeffs[:order + 1]
    elif len(coeffs) < order + 1:
        coeffs = coeffs + [0.0] * (order + 1 - len(coeffs))
    return coeffs


def _round_up(x, m):
    return ((x + m - 1) // m) * m


# ----------------------------------------------------------------------------
# Pallas kernel
#   SMEM scalar vector layout (offsets derived from n_coeffs / n_bands):
#     [0 .. n_coeffs)                       Chebyshev coefficients
#     [n_coeffs .. n_coeffs+n_bands+1)      sharpness * sorted boundaries
#     [.. + n_bands)                        sigmoid(band_responses)
#     tail:  sharp/max, 1/max, 2/max, deep final bias, modulation final bias
#   Packed per-feature params pk (32, 12), columns:
#     0 deep_W1  1 deep_b1  2 deep_ln1_g  3 deep_ln1_b  4 mod_W1  5 mod_b1
#     6 deep_b2  7 deep_ln2_g  8 deep_ln2_b  9 mod_b2  10 deep_W3  11 mod_W3
#     (16-dim vectors live in rows 0:16, zero-padded)
# ----------------------------------------------------------------------------
def _ensemble_filter_kernel(sc_ref, pk_ref, wf_ref, ev_row_ref, ev_dn_ref,
                            cls_ref, band_ref, dm_ref, *, n_coeffs, n_bands):
    off_sb = n_coeffs                       # sharpness * boundaries
    off_resp = n_coeffs + n_bands + 1       # sigmoid(band_responses)
    off_tail = off_resp + n_bands
    i_snscale, i_invmax, i_xscale, i_db3, i_mb3 = (
        off_tail, off_tail + 1, off_tail + 2, off_tail + 3, off_tail + 4)

    # ======= sublane-dense (R, 128) path: Chebyshev + multi-scale band =======
    ev = ev_dn_ref[...]                                    # (R, 128) f32, dense

    # classical Chebyshev filter:  x = 2*eig/max - 1  (scalar reciprocal)
    x = ev * sc_ref[i_xscale] - 1.0
    result = sc_ref[0] * jnp.ones_like(x)
    if n_coeffs > 1:                                       # static guard
        result = result + sc_ref[1] * x
        two_x = x + x                                      # hoisted
        t_prev, t_curr = jnp.ones_like(x), x
        for i in range(2, n_coeffs):
            t_next = two_x * t_curr - t_prev
            result = result + sc_ref[i] * t_next
            t_prev, t_curr = t_curr, t_next
    cls_ref[...] = jnp.exp(-jnp.minimum(jnp.abs(result), 10.0)) + 1e-6

    # band filter: 7 sigmoids instead of 12 using 1 - sigmoid(z) = sigmoid(-z)
    sn = ev * sc_ref[i_snscale]                            # sharpness * norm
    band = jnp.zeros_like(sn)
    s_prev = jax.nn.sigmoid(sn - sc_ref[off_sb])           # left of band 0
    for i in range(n_bands):
        s_next = jax.nn.sigmoid(sn - sc_ref[off_sb + i + 1])
        band = band + (s_prev * (1.0 - s_next)) * sc_ref[off_resp + i]
        s_prev = s_next
    band_ref[...] = band

    # ======= (features, lanes) path: deep MLP + modulation MLP ===============
    # TODO(synk): Dropout(0.1) treated as inference-mode identity.
    norm = ev_row_ref[...] * sc_ref[i_invmax]              # (1, L)
    pk = pk_ref[...]                                       # (32, 12)

    # deep filter: Linear(1,32) + LayerNorm(one-pass stats) + ReLU
    h1 = pk[:, 0:1] * norm + pk[:, 1:2]                    # (32, L)
    mu1 = jnp.mean(h1, axis=0, keepdims=True)
    var1 = jnp.maximum(jnp.mean(h1 * h1, axis=0, keepdims=True) - mu1 * mu1, 0.0)
    a1 = jnp.maximum(
        pk[:, 2:3] * ((h1 - mu1) * jax.lax.rsqrt(var1 + 1e-5)) + pk[:, 3:4], 0.0)

    # modulation net: Linear(1,32) + ReLU
    m1 = jnp.maximum(pk[:, 4:5] * norm + pk[:, 5:6], 0.0)  # (32, L)

    # fused block-diagonal (32,64)@(64,L): both Linear(32,16) in one MXU call
    stacked = jnp.concatenate([a1, m1], axis=0)            # (64, L)
    h2m2 = jnp.dot(wf_ref[...], stacked,
                   preferred_element_type=jnp.float32)     # (32, L)

    # deep: LayerNorm(16) + ReLU + Linear(16,1) + sigmoid
    h2 = h2m2[0:16, :] + pk[0:16, 6:7]
    mu2 = jnp.mean(h2, axis=0, keepdims=True)
    var2 = jnp.maximum(jnp.mean(h2 * h2, axis=0, keepdims=True) - mu2 * mu2, 0.0)
    a2 = jnp.maximum(
        pk[0:16, 7:8] * ((h2 - mu2) * jax.lax.rsqrt(var2 + 1e-5)) + pk[0:16, 8:9],
        0.0)                                               # (16, L)
    deep_logit = jnp.sum(pk[0:16, 10:11] * a2, axis=0, keepdims=True) + sc_ref[i_db3]
    deep = jax.nn.sigmoid(deep_logit) + 1e-6               # (1, L)

    # modulation: ReLU + Linear(16,1) + tanh
    m2 = jnp.maximum(h2m2[16:32, :] + pk[0:16, 9:10], 0.0)  # (16, L)
    mod_logit = jnp.sum(pk[0:16, 11:12] * m2, axis=0, keepdims=True) + sc_ref[i_mb3]
    modulation = jnp.tanh(mod_logit)                        # (1, L)

    dm_ref[0:1, :] = deep
    dm_ref[1:2, :] = modulation


# ----------------------------------------------------------------------------
# Wrapper: one jax.jit containing the scalar glue, the pallas_call, the blend
# ----------------------------------------------------------------------------
@functools.partial(jax.jit, static_argnames=("block_elems",))
def ensemble_spectral_filter(eigenvalues, params, *, block_elems=4096):
    """EnsembleSpectralFilter forward pass (inference mode)."""
    ev = eigenvalues.astype(jnp.float32).reshape(-1)
    n = ev.shape[0]

    # ----- O(1) scalar glue: stats, meta-net, ensemble weights ---------------
    max_ev = jnp.max(ev)
    stats = jnp.stack([jnp.mean(ev), jnp.std(ev, ddof=1), max_ev])
    hidden = jnp.maximum(params["meta_W1"] @ stats + params["meta_b1"], 0.0)
    meta_adj = jnp.tanh(params["meta_W2"] @ hidden + params["meta_b2"])
    temperature = jnp.abs(params["ensemble_temperature"]) + 0.1
    weights = jax.nn.softmax(
        (params["ensemble_logits"] + 0.5 * meta_adj) / temperature)

    inv_max = 1.0 / (max_ev + 1e-8)
    boundaries = jnp.concatenate([jnp.zeros((1,), jnp.float32),
                                  jnp.sort(params["band_boundaries"]),
                                  jnp.ones((1,), jnp.float32)])
    sharp = jnp.abs(params["transition_sharpness"]) + 1.0
    band_resp = jax.nn.sigmoid(params["band_responses"])
    mod_scale = jax.nn.sigmoid(params["modulation_strength"])

    n_coeffs = int(params["cheb_coeffs"].shape[0])
    n_bands = int(params["band_responses"].shape[0])
    assert n_coeffs >= 2, "filter_order must be >= 1"

    scalars = jnp.concatenate([
        params["cheb_coeffs"],                               # n_coeffs
        sharp * boundaries,                                   # n_bands + 1
        band_resp,                                            # n_bands
        jnp.stack([sharp * inv_max, inv_max, 2.0 * inv_max,
                   params["deep_b3"], params["mod_b3"]]),     # 5
    ]).astype(jnp.float32)

    # packed per-feature params: one (32, 12) VMEM input (less DMA bookkeeping)
    def c16(v):
        return jnp.pad(v.reshape(-1), (0, 16))
    pk = jnp.stack([
        params["deep_W1"].reshape(-1), params["deep_b1"].reshape(-1),
        params["deep_ln1_g"].reshape(-1), params["deep_ln1_b"].reshape(-1),
        params["mod_W1"].reshape(-1), params["mod_b1"].reshape(-1),
        c16(params["deep_b2"]), c16(params["deep_ln2_g"]), c16(params["deep_ln2_b"]),
        c16(params["mod_b2"]), c16(params["deep_W3"]), c16(params["mod_W3"]),
    ], axis=1).astype(jnp.float32)                            # (32, 12)

    # fused block-diagonal second-layer weight (deep_W2 ++ mod_W2)
    z16 = jnp.zeros((16, 32), jnp.float32)
    wf = jnp.concatenate(
        [jnp.concatenate([params["deep_W2"], z16], axis=1),
         jnp.concatenate([z16, params["mod_W2"]], axis=1)], axis=0)  # (32, 64)

    # ----- tiling: sublane-dense carrier, >= 2 grid steps when possible ------
    eff_block = max(1024, min(int(block_elems), _round_up((n + 1) // 2, 1024)))
    n_pad = _round_up(n, eff_block)
    rows = n_pad // 128
    blk_rows = eff_block // 128
    grid = (n_pad // eff_block,)

    ev_pad = jnp.pad(ev, (0, n_pad - n))
    ev_row = ev_pad.reshape(1, n_pad)          # lanes = eigenvalues (MLP path)
    ev_dense = ev_pad.reshape(rows, 128)       # sublane-dense (scalar math path)

    kernel = functools.partial(_ensemble_filter_kernel,
                               n_coeffs=n_coeffs, n_bands=n_bands)

    cls_out, band_out, dm_out = pl.pallas_call(
        kernel,
        out_shape=(jax.ShapeDtypeStruct((rows, 128), jnp.float32),
                   jax.ShapeDtypeStruct((rows, 128), jnp.float32),
                   jax.ShapeDtypeStruct((2, n_pad), jnp.float32)),
        grid=grid,
        in_specs=[
            pl.BlockSpec(memory_space=pltpu.MemorySpace.SMEM),    # scalars
            pl.BlockSpec(pk.shape, lambda i: (0, 0)),             # packed params
            pl.BlockSpec(wf.shape, lambda i: (0, 0)),             # fused W2
            pl.BlockSpec((1, eff_block), lambda i: (0, i)),       # ev, row view
            pl.BlockSpec((blk_rows, 128), lambda i: (i, 0)),      # ev, dense view
        ],
        out_specs=(
            pl.BlockSpec((blk_rows, 128), lambda i: (i, 0)),      # classical
            pl.BlockSpec((blk_rows, 128), lambda i: (i, 0)),      # band
            pl.BlockSpec((2, eff_block), lambda i: (0, i)),       # deep / modulation
        ),
        compiler_params=pltpu.CompilerParams(
            dimension_semantics=("parallel",)),
    )(scalars, pk, wf, ev_row, ev_dense)

    # ----- final ensemble blend (trivial mem-bound elementwise in XLA) -------
    classical = cls_out.reshape(-1)[:n]
    band = band_out.reshape(-1)[:n]
    deep = dm_out[0, :n]
    modulation = dm_out[1, :n]
    multi = jnp.clip(band + mod_scale * modulation, 1e-6, 1.0)
    return weights[0] * classical + weights[1] * deep + weights[2] * multi


# ----------------------------------------------------------------------------
# Deterministic parameter init, mirroring the PyTorch __init__
# ----------------------------------------------------------------------------
def init_ensemble_params(key, filter_order=6, init_filter_name="smooth"):
    h1, h2, n_bands = 32, 16, 6
    ks = jax.random.split(key, 16)

    def xavier_normal(k, shape, gain):
        fan_out, fan_in = shape
        std = gain * np.sqrt(2.0 / (fan_in + fan_out))
        return (std * jax.random.normal(k, shape)).astype(jnp.float32)

    def default_linear(kw, kb, out_dim, in_dim):
        bound = 1.0 / np.sqrt(in_dim)
        w = jax.random.uniform(kw, (out_dim, in_dim), jnp.float32, -bound, bound)
        b = jax.random.uniform(kb, (out_dim,), jnp.float32, -bound, bound)
        return w, b

    mW1, mb1 = default_linear(ks[3], ks[4], h1, 1)
    mW2, mb2 = default_linear(ks[5], ks[6], h2, h1)
    mW3, mb3 = default_linear(ks[7], ks[8], 1, h2)
    meta_W1, meta_b1 = default_linear(ks[9], ks[10], 16, 3)
    meta_W2, meta_b2 = default_linear(ks[11], ks[12], 3, 16)

    return {
        # classical (UniversalSpectralFilter)
        "cheb_coeffs": jnp.asarray(
            get_filter_coefficients(init_filter_name, filter_order), jnp.float32),
        # deep (DeepSpectralFilter, hidden_dims=[32, 16], xavier gain=0.1,
        # zero biases, final bias = -1.0)
        "deep_W1": xavier_normal(ks[0], (h1, 1), 0.1),
        "deep_b1": jnp.zeros((h1,), jnp.float32),
        "deep_ln1_g": jnp.ones((h1,), jnp.float32),
        "deep_ln1_b": jnp.zeros((h1,), jnp.float32),
        "deep_W2": xavier_normal(ks[1], (h2, h1), 0.1),
        "deep_b2": jnp.zeros((h2,), jnp.float32),
        "deep_ln2_g": jnp.ones((h2,), jnp.float32),
        "deep_ln2_b": jnp.zeros((h2,), jnp.float32),
        "deep_W3": xavier_normal(ks[2], (1, h2), 0.1),
        "deep_b3": jnp.asarray(-1.0, jnp.float32),
        # multiscale (MultiScaleSpectralFilter, n_bands=6)
        "band_boundaries": jnp.linspace(0.0, 1.0, n_bands + 1)[1:-1].astype(jnp.float32),
        "band_responses": 0.5 * jnp.ones((n_bands,), jnp.float32),
        "transition_sharpness": jnp.asarray(10.0, jnp.float32),
        "modulation_strength": jnp.asarray(0.1, jnp.float32),
        "mod_W1": mW1, "mod_b1": mb1,
        "mod_W2": mW2, "mod_b2": mb2,
        "mod_W3": mW3, "mod_b3": mb3[0],
        # ensemble mixing
        "ensemble_logits": jnp.ones((3,), jnp.float32),
        "ensemble_temperature": jnp.asarray(1.0, jnp.float32),
        "meta_W1": meta_W1, "meta_b1": meta_b1,
        "meta_W2": meta_W2, "meta_b2": meta_b2,
    }


# ----------------------------------------------------------------------------
# Pure-JAX reference for verification
# ----------------------------------------------------------------------------
def ensemble_spectral_filter_reference(eigenvalues, params):
    HI = jax.lax.Precision.HIGHEST
    ev = eigenvalues.astype(jnp.float32)
    max_ev = jnp.max(ev) + 1e-8
    norm = ev / max_ev

    # classical
    x = 2.0 * norm - 1.0
    c = params["cheb_coeffs"]
    result = c[0] * jnp.ones_like(x) + c[1] * x
    t_prev, t_curr = jnp.ones_like(x), x
    for i in range(2, c.shape[0]):
        t_next = 2.0 * x * t_curr - t_prev
        result = result + c[i] * t_next
        t_prev, t_curr = t_curr, t_next
    classical = jnp.exp(-jnp.minimum(jnp.abs(result), 10.0)) + 1e-6

    # deep
    def layer_norm(h, g, b):
        mu = jnp.mean(h, axis=-1, keepdims=True)
        var = jnp.mean(jnp.square(h - mu), axis=-1, keepdims=True)
        return g * ((h - mu) * jax.lax.rsqrt(var + 1e-5)) + b

    ni = norm[:, None]
    h1 = ni @ params["deep_W1"].T + params["deep_b1"]
    a1 = jnp.maximum(layer_norm(h1, params["deep_ln1_g"], params["deep_ln1_b"]), 0.0)
    h2 = jnp.dot(a1, params["deep_W2"].T, precision=HI) + params["deep_b2"]
    a2 = jnp.maximum(layer_norm(h2, params["deep_ln2_g"], params["deep_ln2_b"]), 0.0)
    deep = jax.nn.sigmoid(
        jnp.dot(a2, params["deep_W3"].T, precision=HI)[:, 0] + params["deep_b3"]) + 1e-6

    # multiscale
    boundaries = jnp.concatenate(
        [jnp.zeros((1,)), jnp.sort(params["band_boundaries"]), jnp.ones((1,))])
    sharp = jnp.abs(params["transition_sharpness"]) + 1.0
    resp = jax.nn.sigmoid(params["band_responses"])
    band = jnp.zeros_like(norm)
    for i in range(resp.shape[0]):
        lt = jax.nn.sigmoid(sharp * (norm - boundaries[i]))
        rt = jax.nn.sigmoid(sharp * (boundaries[i + 1] - norm))
        band = band + lt * rt * resp[i]
    m1 = jnp.maximum(ni @ params["mod_W1"].T + params["mod_b1"], 0.0)
    m2 = jnp.maximum(jnp.dot(m1, params["mod_W2"].T, precision=HI) + params["mod_b2"], 0.0)
    modulation = jnp.tanh(
        jnp.dot(m2, params["mod_W3"].T, precision=HI)[:, 0] + params["mod_b3"])
    multi = jnp.clip(band + jax.nn.sigmoid(params["modulation_strength"]) * modulation,
                     1e-6, 1.0)

    # ensemble
    stats = jnp.stack([jnp.mean(ev), jnp.std(ev, ddof=1), jnp.max(ev)])
    hidden = jnp.maximum(params["meta_W1"] @ stats + params["meta_b1"], 0.0)
    meta_adj = jnp.tanh(params["meta_W2"] @ hidden + params["meta_b2"])
    temperature = jnp.abs(params["ensemble_temperature"]) + 0.1
    w = jax.nn.softmax((params["ensemble_logits"] + 0.5 * meta_adj) / temperature)
    return w[0] * classical + w[1] * deep + w[2] * multi


if __name__ == "__main__":
    key = jax.random.PRNGKey(0)
    pkey, ekey = jax.random.split(key)
    params = init_ensemble_params(pkey, filter_order=6, init_filter_name="smooth")

    # 3000 graph-Laplacian-style eigenvalues in [0, 2]
    # (pads to 4096 -> 2 grid steps of 2048 elements each)
    eigenvalues = jax.random.uniform(ekey, (3000,), jnp.float32, 0.0, 2.0)

    out = jax.block_until_ready(ensemble_spectral_filter(eigenvalues, params))

    ref = ensemble_spectral_filter_reference(eigenvalues, params)
    # MXU f32 matmul pass-count and the 1-sigmoid band identity may differ
    # slightly from the XLA reference; responses live in [0, 1].
    np.testing.assert_allclose(np.asarray(out), np.asarray(ref),
                               rtol=2e-3, atol=2e-3)

    print("KERNEL_OK")
</pallas_src>

<mosaic_0001>
module attributes {stable_mosaic.version = 11 : i64} {
  func.func @_ensemble_filter_kernel(%arg0: i32, %arg1: memref<25xf32, #tpu.memory_space<smem>>, %arg2: memref<32x12xf32, #tpu.memory_space<vmem>>, %arg3: memref<32x64xf32, #tpu.memory_space<vmem>>, %arg4: memref<1x2048xf32, #tpu.memory_space<vmem>>, %arg5: memref<16x128xf32, #tpu.memory_space<vmem>>, %arg6: memref<16x128xf32, #tpu.memory_space<vmem>>, %arg7: memref<16x128xf32, #tpu.memory_space<vmem>>, %arg8: memref<2x2048xf32, #tpu.memory_space<vmem>>) attributes {dimension_semantics = [#tpu.dimension_semantics<parallel>], iteration_bounds = array<i64: 2>, scalar_prefetch = 0 : i64, scratch_operands = 0 : i64, tpu.core_type = #tpu.core_type<tc>, window_params = [{transform_indices = @transform_0, window_bounds = array<i64: 25>}, {pipeline_mode = #tpu.pipeline_mode<synchronous>, transform_indices = @transform_1, window_bounds = array<i64: 32, 12>}, {pipeline_mode = #tpu.pipeline_mode<synchronous>, transform_indices = @transform_2, window_bounds = array<i64: 32, 64>}, {transform_indices = @transform_3, window_bounds = array<i64: 1, 2048>}, {transform_indices = @transform_4, window_bounds = array<i64: 16, 128>}, {transform_indices = @transform_5, window_bounds = array<i64: 16, 128>}, {transform_indices = @transform_6, window_bounds = array<i64: 16, 128>}, {transform_indices = @transform_7, window_bounds = array<i64: 2, 2048>}]} {
    %c0 = arith.constant 0 : index
    %c0_0 = arith.constant 0 : index
    %0 = vector.load %arg5[%c0, %c0_0] : memref<16x128xf32, #tpu.memory_space<vmem>>, vector<16x128xf32>
    %c22 = arith.constant 22 : index
    %1 = memref.load %arg1[%c22] : memref<25xf32, #tpu.memory_space<smem>>
    %2 = vector.broadcast %1 : f32 to vector<16x128xf32>
    %3 = arith.mulf %0, %2 : vector<16x128xf32>
    %cst = arith.constant 1.000000e+00 : f32
    %4 = vector.broadcast %cst : f32 to vector<16x128xf32>
    %5 = arith.subf %3, %4 : vector<16x128xf32>
    %c0_1 = arith.constant 0 : index
    %6 = memref.load %arg1[%c0_1] : memref<25xf32, #tpu.memory_space<smem>>
    %cst_2 = arith.constant 1.000000e+00 : f32
    %7 = vector.broadcast %cst_2 : f32 to vector<16x128xf32>
    %8 = vector.broadcast %6 : f32 to vector<16x128xf32>
    %9 = arith.mulf %8, %7 : vector<16x128xf32>
    %c1 = arith.constant 1 : index
    %10 = memref.load %arg1[%c1] : memref<25xf32, #tpu.memory_space<smem>>
    %11 = vector.broadcast %10 : f32 to vector<16x128xf32>
    %12 = arith.mulf %11, %5 : vector<16x128xf32>
    %13 = arith.addf %9, %12 : vector<16x128xf32>
    %14 = arith.addf %5, %5 : vector<16x128xf32>
    %cst_3 = arith.constant 1.000000e+00 : f32
    %15 = vector.broadcast %cst_3 : f32 to vector<16x128xf32>
    %16 = arith.mulf %14, %5 : vector<16x128xf32>
    %17 = arith.subf %16, %15 : vector<16x128xf32>
    %c2 = arith.constant 2 : index
    %18 = memref.load %arg1[%c2] : memref<25xf32, #tpu.memory_space<smem>>
    %19 = vector.broadcast %18 : f32 to vector<16x128xf32>
    %20 = arith.mulf %19, %17 : vector<16x128xf32>
    %21 = arith.addf %13, %20 : vector<16x128xf32>
    %22 = arith.mulf %14, %17 : vector<16x128xf32>
    %23 = arith.subf %22, %5 : vector<16x128xf32>
    %c3 = arith.constant 3 : index
    %24 = memref.load %arg1[%c3] : memref<25xf32, #tpu.memory_space<smem>>
    %25 = vector.broadcast %24 : f32 to vector<16x128xf32>
    %26 = arith.mulf %25, %23 : vector<16x128xf32>
    %27 = arith.addf %21, %26 : vector<16x128xf32>
    %28 = arith.mulf %14, %23 : vector<16x128xf32>
    %29 = arith.subf %28, %17 : vector<16x128xf32>
    %c4 = arith.constant 4 : index
    %30 = memref.load %arg1[%c4] : memref<25xf32, #tpu.memory_space<smem>>
    %31 = vector.broadcast %30 : f32 to vector<16x128xf32>
    %32 = arith.mulf %31, %29 : vector<16x128xf32>
    %33 = arith.addf %27, %32 : vector<16x128xf32>
    %34 = arith.mulf %14, %29 : vector<16x128xf32>
    %35 = arith.subf %34, %23 : vector<16x128xf32>
    %c5 = arith.constant 5 : index
    %36 = memref.load %arg1[%c5] : memref<25xf32, #tpu.memory_space<smem>>
    %37 = vector.broadcast %36 : f32 to vector<16x128xf32>
    %38 = arith.mulf %37, %35 : vector<16x128xf32>
    %39 = arith.addf %33, %38 : vector<16x128xf32>
    %40 = arith.mulf %14, %35 : vector<16x128xf32>
    %41 = arith.subf %40, %29 : vector<16x128xf32>
    %c6 = arith.constant 6 : index
    %42 = memref.load %arg1[%c6] : memref<25xf32, #tpu.memory_space<smem>>
    %43 = vector.broadcast %42 : f32 to vector<16x128xf32>
    %44 = arith.mulf %43, %41 : vector<16x128xf32>
    %45 = arith.addf %39, %44 : vector<16x128xf32>
    %46 = math.absf %45 : vector<16x128xf32>
    %cst_4 = arith.constant 1.000000e+01 : f32
    %47 = vector.broadcast %cst_4 : f32 to vector<16x128xf32>
    %48 = arith.minimumf %46, %47 : vector<16x128xf32>
    %cst_5 = arith.constant 0.000000e+00 : f32
    %49 = vector.broadcast %cst_5 : f32 to vector<16x128xf32>
    %50 = arith.subf %49, %48 : vector<16x128xf32>
    %51 = math.exp %50 : vector<16x128xf32>
    %cst_6 = arith.constant 9.99999997E-7 : f32
    %52 = vector.broadcast %cst_6 : f32 to vector<16x128xf32>
    %53 = arith.addf %51, %52 : vector<16x128xf32>
    %c0_7 = arith.constant 0 : index
    %c0_8 = arith.constant 0 : index
    %54 = vector.load %arg6[%c0_7, %c0_8] : memref<16x128xf32, #tpu.memory_space<vmem>>, vector<16x128xf32>
    tpu.vector_store %arg6[%c0_7, %c0_8], %53 {strides = array<i32>} : memref<16x128xf32, #tpu.memory_space<vmem>>, vector<16x128xf32>,
    %c20 = arith.constant 20 : index
    %55 = memref.load %arg1[%c20] : memref<25xf32, #tpu.memory_space<smem>>
    %56 = vector.broadcast %55 : f32 to vector<16x128xf32>
    %57 = arith.mulf %0, %56 : vector<16x128xf32>
    %cst_9 = arith.constant 0.000000e+00 : f32
    %58 = vector.broadcast %cst_9 : f32 to vector<16x128xf32>
    %c7 = arith.constant 7 : index
    %59 = memref.load %arg1[%c7] : memref<25xf32, #tpu.memory_space<smem>>
    %60 = vector.broadcast %59 : f32 to vector<16x128xf32>
    %61 = arith.subf %57, %60 : vector<16x128xf32>
    %62 = arith.negf %61 : vector<16x128xf32>
    %63 = math.exp %62 : vector<16x128xf32>
    %cst_10 = arith.constant 1.000000e+00 : f32
    %64 = vector.broadcast %cst_10 : f32 to vector<16x128xf32>
    %65 = arith.addf %64, %63 : vector<16x128xf32>
    %66 = arith.divf %64, %65 : vector<16x128xf32>
    %c8 = arith.constant 8 : index
    %67 = memref.load %arg1[%c8] : memref<25xf32, #tpu.memory_space<smem>>
    %68 = vector.broadcast %67 : f32 to vector<16x128xf32>
    %69 = arith.subf %57, %68 : vector<16x128xf32>
    %70 = arith.negf %69 : vector<16x128xf32>
    %71 = math.exp %70 : vector<16x128xf32>
    %cst_11 = arith.constant 1.000000e+00 : f32
    %72 = vector.broadcast %cst_11 : f32 to vector<16x128xf32>
    %73 = arith.addf %72, %71 : vector<16x128xf32>
    %74 = arith.divf %72, %73 : vector<16x128xf32>
    %cst_12 = arith.constant 1.000000e+00 : f32
    %75 = vector.broadcast %cst_12 : f32 to vector<16x128xf32>
    %76 = arith.subf %75, %74 : vector<16x128xf32>
    %77 = arith.mulf %66, %76 : vector<16x128xf32>
    %c14 = arith.constant 14 : index
    %78 = memref.load %arg1[%c14] : memref<25xf32, #tpu.memory_space<smem>>
    %79 = vector.broadcast %78 : f32 to vector<16x128xf32>
    %80 = arith.mulf %77, %79 : vector<16x128xf32>
    %81 = arith.addf %58, %80 : vector<16x128xf32>
    %c9 = arith.constant 9 : index
    %82 = memref.load %arg1[%c9] : memref<25xf32, #tpu.memory_space<smem>>
    %83 = vector.broadcast %82 : f32 to vector<16x128xf32>
    %84 = arith.subf %57, %83 : vector<16x128xf32>
    %85 = arith.negf %84 : vector<16x128xf32>
    %86 = math.exp %85 : vector<16x128xf32>
    %cst_13 = arith.constant 1.000000e+00 : f32
    %87 = vector.broadcast %cst_13 : f32 to vector<16x128xf32>
    %88 = arith.addf %87, %86 : vector<16x128xf32>
    %89 = arith.divf %87, %88 : vector<16x128xf32>
    %cst_14 = arith.constant 1.000000e+00 : f32
    %90 = vector.broadcast %cst_14 : f32 to vector<16x128xf32>
    %91 = arith.subf %90, %89 : vector<16x128xf32>
    %92 = arith.mulf %74, %91 : vector<16x128xf32>
    %c15 = arith.constant 15 : index
    %93 = memref.load %arg1[%c15] : memref<25xf32, #tpu.memory_space<smem>>
    %94 = vector.broadcast %93 : f32 to vector<16x128xf32>
    %95 = arith.mulf %92, %94 : vector<16x128xf32>
    %96 = arith.addf %81, %95 : vector<16x128xf32>
    %c10 = arith.constant 10 : index
    %97 = memref.load %arg1[%c10] : memref<25xf32, #tpu.memory_space<smem>>
    %98 = vector.broadcast %97 : f32 to vector<16x128xf32>
    %99 = arith.subf %57, %98 : vector<16x128xf32>
    %100 = arith.negf %99 : vector<16x128xf32>
    %101 = math.exp %100 : vector<16x128xf32>
    %cst_15 = arith.constant 1.000000e+00 : f32
    %102 = vector.broadcast %cst_15 : f32 to vector<16x128xf32>
    %103 = arith.addf %102, %101 : vector<16x128xf32>
    %104 = arith.divf %102, %103 : vector<16x128xf32>
    %cst_16 = arith.constant 1.000000e+00 : f32
    %105 = vector.broadcast %cst_16 : f32 to vector<16x128xf32>
    %106 = arith.subf %105, %104 : vector<16x128xf32>
    %107 = arith.mulf %89, %106 : vector<16x128xf32>
    %c16 = arith.constant 16 : index
    %108 = memref.load %arg1[%c16] : memref<25xf32, #tpu.memory_space<smem>>
    %109 = vector.broadcast %108 : f32 to vector<16x128xf32>
    %110 = arith.mulf %107, %109 : vector<16x128xf32>
    %111 = arith.addf %96, %110 : vector<16x128xf32>
    %c11 = arith.constant 11 : index
    %112 = memref.load %arg1[%c11] : memref<25xf32, #tpu.memory_space<smem>>
    %113 = vector.broadcast %112 : f32 to vector<16x128xf32>
    %114 = arith.subf %57, %113 : vector<16x128xf32>
    %115 = arith.negf %114 : vector<16x128xf32>
    %116 = math.exp %115 : vector<16x128xf32>
    %cst_17 = arith.constant 1.000000e+00 : f32
    %117 = vector.broadcast %cst_17 : f32 to vector<16x128xf32>
    %118 = arith.addf %117, %116 : vector<16x128xf32>
    %119 = arith.divf %117, %118 : vector<16x128xf32>
    %cst_18 = arith.constant 1.000000e+00 : f32
    %120 = vector.broadcast %cst_18 : f32 to vector<16x128xf32>
    %121 = arith.subf %120, %119 : vector<16x128xf32>
    %122 = arith.mulf %104, %121 : vector<16x128xf32>
    %c17 = arith.constant 17 : index
    %123 = memref.load %arg1[%c17] : memref<25xf32, #tpu.memory_space<smem>>
    %124 = vector.broadcast %123 : f32 to vector<16x128xf32>
    %125 = arith.mulf %122, %124 : vector<16x128xf32>
    %126 = arith.addf %111, %125 : vector<16x128xf32>
    %c12 = arith.constant 12 : index
    %127 = memref.load %arg1[%c12] : memref<25xf32, #tpu.memory_space<smem>>
    %128 = vector.broadcast %127 : f32 to vector<16x128xf32>
    %129 = arith.subf %57, %128 : vector<16x128xf32>
    %130 = arith.negf %129 : vector<16x128xf32>
    %131 = math.exp %130 : vector<16x128xf32>
    %cst_19 = arith.constant 1.000000e+00 : f32
    %132 = vector.broadcast %cst_19 : f32 to vector<16x128xf32>
    %133 = arith.addf %132, %131 : vector<16x128xf32>
    %134 = arith.divf %132, %133 : vector<16x128xf32>
    %cst_20 = arith.constant 1.000000e+00 : f32
    %135 = vector.broadcast %cst_20 : f32 to vector<16x128xf32>
    %136 = arith.subf %135, %134 : vector<16x128xf32>
    %137 = arith.mulf %119, %136 : vector<16x128xf32>
    %c18 = arith.constant 18 : index
    %138 = memref.load %arg1[%c18] : memref<25xf32, #tpu.memory_space<smem>>
    %139 = vector.broadcast %138 : f32 to vector<16x128xf32>
    %140 = arith.mulf %137, %139 : vector<16x128xf32>
    %141 = arith.addf %126, %140 : vector<16x128xf32>
    %c13 = arith.constant 13 : index
    %142 = memref.load %arg1[%c13] : memref<25xf32, #tpu.memory_space<smem>>
    %143 = vector.broadcast %142 : f32 to vector<16x128xf32>
    %144 = arith.subf %57, %143 : vector<16x128xf32>
    %145 = arith.negf %144 : vector<16x128xf32>
    %146 = math.exp %145 : vector<16x128xf32>
    %cst_21 = arith.constant 1.000000e+00 : f32
    %147 = vector.broadcast %cst_21 : f32 to vector<16x128xf32>
    %148 = arith.addf %147, %146 : vector<16x128xf32>
    %149 = arith.divf %147, %148 : vector<16x128xf32>
    %cst_22 = arith.constant 1.000000e+00 : f32
    %150 = vector.broadcast %cst_22 : f32 to vector<16x128xf32>
    %151 = arith.subf %150, %149 : vector<16x128xf32>
    %152 = arith.mulf %134, %151 : vector<16x128xf32>
    %c19 = arith.constant 19 : index
    %153 = memref.load %arg1[%c19] : memref<25xf32, #tpu.memory_space<smem>>
    %154 = vector.broadcast %153 : f32 to vector<16x128xf32>
    %155 = arith.mulf %152, %154 : vector<16x128xf32>
    %156 = arith.addf %141, %155 : vector<16x128xf32>
    %c0_23 = arith.constant 0 : index
    %c0_24 = arith.constant 0 : index
    %157 = vector.load %arg7[%c0_23, %c0_24] : memref<16x128xf32, #tpu.memory_space<vmem>>, vector<16x128xf32>
    tpu.vector_store %arg7[%c0_23, %c0_24], %156 {strides = array<i32>} : memref<16x128xf32, #tpu.memory_space<vmem>>, vector<16x128xf32>,
    %c0_25 = arith.constant 0 : index
    %c0_26 = arith.constant 0 : index
    %158 = vector.load %arg4[%c0_25, %c0_26] : memref<1x2048xf32, #tpu.memory_space<vmem>>, vector<1x2048xf32>
    %c21 = arith.constant 21 : index
    %159 = memref.load %arg1[%c21] : memref<25xf32, #tpu.memory_space<smem>>
    %160 = vector.broadcast %159 : f32 to vector<1x2048xf32>
    %161 = arith.mulf %158, %160 : vector<1x2048xf32>
    %c0_27 = arith.constant 0 : index
    %c0_28 = arith.constant 0 : index
    %162 = vector.load %arg2[%c0_27, %c0_28] : memref<32x12xf32, #tpu.memory_space<vmem>>, vector<32x12xf32>
    %163 = vector.extract_strided_slice %162 {offsets = [0, 0], sizes = [32, 1], strides = [1, 1]} : vector<32x12xf32> to vector<32x1xf32>
    %164 = vector.broadcast %163 : vector<32x1xf32> to vector<32x2048xf32>
    %165 = vector.broadcast %161 : vector<1x2048xf32> to vector<32x2048xf32>
    %166 = arith.mulf %164, %165 : vector<32x2048xf32>
    %167 = vector.extract_strided_slice %162 {offsets = [0, 1], sizes = [32, 1], strides = [1, 1]} : vector<32x12xf32> to vector<32x1xf32>
    %168 = vector.broadcast %167 : vector<32x1xf32> to vector<32x2048xf32>
    %169 = arith.addf %166, %168 : vector<32x2048xf32>
    %cst_29 = arith.constant dense<0.000000e+00> : vector<2048xf32>
    %170 = vector.multi_reduction <add>, %169, %cst_29 [0] : vector<32x2048xf32> to vector<2048xf32>
    %171 = vector.shape_cast %170 : vector<2048xf32> to vector<1x2048xf32>
    %cst_30 = arith.constant 3.200000e+01 : f32
    %172 = vector.broadcast %cst_30 : f32 to vector<1x2048xf32>
    %173 = arith.divf %171, %172 : vector<1x2048xf32>
    %174 = arith.mulf %169, %169 : vector<32x2048xf32>
    %cst_31 = arith.constant dense<0.000000e+00> : vector<2048xf32>
    %175 = vector.multi_reduction <add>, %174, %cst_31 [0] : vector<32x2048xf32> to vector<2048xf32>
    %176 = vector.shape_cast %175 : vector<2048xf32> to vector<1x2048xf32>
    %cst_32 = arith.constant 3.200000e+01 : f32
    %177 = vector.broadcast %cst_32 : f32 to vector<1x2048xf32>
    %178 = arith.divf %176, %177 : vector<1x2048xf32>
    %179 = arith.mulf %173, %173 : vector<1x2048xf32>
    %180 = arith.subf %178, %179 : vector<1x2048xf32>
    %cst_33 = arith.constant 0.000000e+00 : f32
    %181 = vector.broadcast %cst_33 : f32 to vector<1x2048xf32>
    %182 = arith.maximumf %180, %181 : vector<1x2048xf32>
    %183 = vector.extract_strided_slice %162 {offsets = [0, 2], sizes = [32, 1], strides = [1, 1]} : vector<32x12xf32> to vector<32x1xf32>
    %184 = vector.broadcast %173 : vector<1x2048xf32> to vector<32x2048xf32>
    %185 = arith.subf %169, %184 : vector<32x2048xf32>
    %cst_34 = arith.constant 9.99999974E-6 : f32
    %186 = vector.broadcast %cst_34 : f32 to vector<1x2048xf32>
    %187 = arith.addf %182, %186 : vector<1x2048xf32>
    %188 = math.rsqrt %187 : vector<1x2048xf32>
    %189 = vector.broadcast %188 : vector<1x2048xf32> to vector<32x2048xf32>
    %190 = arith.mulf %185, %189 : vector<32x2048xf32>
    %191 = vector.broadcast %183 : vector<32x1xf32> to vector<32x2048xf32>
    %192 = arith.mulf %191, %190 : vector<32x2048xf32>
    %193 = vector.extract_strided_slice %162 {offsets = [0, 3], sizes = [32, 1], strides = [1, 1]} : vector<32x12xf32> to vector<32x1xf32>
    %194 = vector.broadcast %193 : vector<32x1xf32> to vector<32x2048xf32>
    %195 = arith.addf %192, %194 : vector<32x2048xf32>
    %cst_35 = arith.constant 0.000000e+00 : f32
    %196 = vector.broadcast %cst_35 : f32 to vector<32x2048xf32>
    %197 = arith.maximumf %195, %196 : vector<32x2048xf32>
    %198 = vector.extract_strided_slice %162 {offsets = [0, 4], sizes = [32, 1], strides = [1, 1]} : vector<32x12xf32> to vector<32x1xf32>
    %199 = vector.broadcast %198 : vector<32x1xf32> to vector<32x2048xf32>
    %200 = vector.broadcast %161 : vector<1x2048xf32> to vector<32x2048xf32>
    %201 = arith.mulf %199, %200 : vector<32x2048xf32>
    %202 = vector.extract_strided_slice %162 {offsets = [0, 5], sizes = [32, 1], strides = [1, 1]} : vector<32x12xf32> to vector<32x1xf32>
    %203 = vector.broadcast %202 : vector<32x1xf32> to vector<32x2048xf32>
    %204 = arith.addf %201, %203 : vector<32x2048xf32>
    %cst_36 = arith.constant 0.000000e+00 : f32
    %205 = vector.broadcast %cst_36 : f32 to vector<32x2048xf32>
    %206 = arith.maximumf %204, %205 : vector<32x2048xf32>
    %207 = tpu.concatenate %197, %206 in 0 : vector<32x2048xf32>, vector<32x2048xf32> -> vector<64x2048xf32>
    %c0_37 = arith.constant 0 : index
    %c0_38 = arith.constant 0 : index
    %208 = vector.load %arg3[%c0_37, %c0_38] : memref<32x64xf32, #tpu.memory_space<vmem>>, vector<32x64xf32>
    %cst_39 = arith.constant dense<0.000000e+00> : vector<32x2048xf32>
    %209 = tpu.matmul %208, %207, %cst_39 {dimension_numbers = #tpu.dot_dimension_numbers<[1], [0], [0], [1], [0, 0, 1, 1], [], []>} : vector<32x64xf32>, vector<64x2048xf32>, vector<32x2048xf32> -> vector<32x2048xf32>
    %210 = vector.extract_strided_slice %209 {offsets = [0, 0], sizes = [16, 2048], strides = [1, 1]} : vector<32x2048xf32> to vector<16x2048xf32>
    %211 = vector.extract_strided_slice %162 {offsets = [0, 6], sizes = [16, 1], strides = [1, 1]} : vector<32x12xf32> to vector<16x1xf32>
    %212 = vector.broadcast %211 : vector<16x1xf32> to vector<16x2048xf32>
    %213 = arith.addf %210, %212 : vector<16x2048xf32>
    %cst_40 = arith.constant dense<0.000000e+00> : vector<2048xf32>
    %214 = vector.multi_reduction <add>, %213, %cst_40 [0] : vector<16x2048xf32> to vector<2048xf32>
    %215 = vector.shape_cast %214 : vector<2048xf32> to vector<1x2048xf32>
    %cst_41 = arith.constant 1.600000e+01 : f32
    %216 = vector.broadcast %cst_41 : f32 to vector<1x2048xf32>
    %217 = arith.divf %215, %216 : vector<1x2048xf32>
    %218 = arith.mulf %213, %213 : vector<16x2048xf32>
    %cst_42 = arith.constant dense<0.000000e+00> : vector<2048xf32>
    %219 = vector.multi_reduction <add>, %218, %cst_42 [0] : vector<16x2048xf32> to vector<2048xf32>
    %220 = vector.shape_cast %219 : vector<2048xf32> to vector<1x2048xf32>
    %cst_43 = arith.constant 1.600000e+01 : f32
    %221 = vector.broadcast %cst_43 : f32 to vector<1x2048xf32>
    %222 = arith.divf %220, %221 : vector<1x2048xf32>
    %223 = arith.mulf %217, %217 : vector<1x2048xf32>
    %224 = arith.subf %222, %223 : vector<1x2048xf32>
    %cst_44 = arith.constant 0.000000e+00 : f32
    %225 = vector.broadcast %cst_44 : f32 to vector<1x2048xf32>
    %226 = arith.maximumf %224, %225 : vector<1x2048xf32>
    %227 = vector.extract_strided_slice %162 {offsets = [0, 7], sizes = [16, 1], strides = [1, 1]} : vector<32x12xf32> to vector<16x1xf32>
    %228 = vector.broadcast %217 : vector<1x2048xf32> to vector<16x2048xf32>
    %229 = arith.subf %213, %228 : vector<16x2048xf32>
    %cst_45 = arith.constant 9.99999974E-6 : f32
    %230 = vector.broadcast %cst_45 : f32 to vector<1x2048xf32>
    %231 = arith.addf %226, %230 : vector<1x2048xf32>
    %232 = math.rsqrt %231 : vector<1x2048xf32>
    %233 = vector.broadcast %232 : vector<1x2048xf32> to vector<16x2048xf32>
    %234 = arith.mulf %229, %233 : vector<16x2048xf32>
    %235 = vector.broadcast %227 : vector<16x1xf32> to vector<16x2048xf32>
    %236 = arith.mulf %235, %234 : vector<16x2048xf32>
    %237 = vector.extract_strided_slice %162 {offsets = [0, 8], sizes = [16, 1], strides = [1, 1]} : vector<32x12xf32> to vector<16x1xf32>
    %238 = vector.broadcast %237 : vector<16x1xf32> to vector<16x2048xf32>
    %239 = arith.addf %236, %238 : vector<16x2048xf32>
    %cst_46 = arith.constant 0.000000e+00 : f32
    %240 = vector.broadcast %cst_46 : f32 to vector<16x2048xf32>
    %241 = arith.maximumf %239, %240 : vector<16x2048xf32>
    %242 = vector.extract_strided_slice %162 {offsets = [0, 10], sizes = [16, 1], strides = [1, 1]} : vector<32x12xf32> to vector<16x1xf32>
    %243 = vector.broadcast %242 : vector<16x1xf32> to vector<16x2048xf32>
    %244 = arith.mulf %243, %241 : vector<16x2048xf32>
    %cst_47 = arith.constant dense<0.000000e+00> : vector<2048xf32>
    %245 = vector.multi_reduction <add>, %244, %cst_47 [0] : vector<16x2048xf32> to vector<2048xf32>
    %246 = vector.shape_cast %245 : vector<2048xf32> to vector<1x2048xf32>
    %c23 = arith.constant 23 : index
    %247 = memref.load %arg1[%c23] : memref<25xf32, #tpu.memory_space<smem>>
    %248 = vector.broadcast %247 : f32 to vector<1x2048xf32>
    %249 = arith.addf %246, %248 : vector<1x2048xf32>
    %250 = arith.negf %249 : vector<1x2048xf32>
    %251 = math.exp %250 : vector<1x2048xf32>
    %cst_48 = arith.constant 1.000000e+00 : f32
    %252 = vector.broadcast %cst_48 : f32 to vector<1x2048xf32>
    %253 = arith.addf %252, %251 : vector<1x2048xf32>
    %254 = arith.divf %252, %253 : vector<1x2048xf32>
    %cst_49 = arith.constant 9.99999997E-7 : f32
    %255 = vector.broadcast %cst_49 : f32 to vector<1x2048xf32>
    %256 = arith.addf %254, %255 : vector<1x2048xf32>
    %257 = vector.extract_strided_slice %209 {offsets = [16, 0], sizes = [16, 2048], strides = [1, 1]} : vector<32x2048xf32> to vector<16x2048xf32>
    %258 = vector.extract_strided_slice %162 {offsets = [0, 9], sizes = [16, 1], strides = [1, 1]} : vector<32x12xf32> to vector<16x1xf32>
    %259 = vector.broadcast %258 : vector<16x1xf32> to vector<16x2048xf32>
    %260 = arith.addf %257, %259 : vector<16x2048xf32>
    %cst_50 = arith.constant 0.000000e+00 : f32
    %261 = vector.broadcast %cst_50 : f32 to vector<16x2048xf32>
    %262 = arith.maximumf %260, %261 : vector<16x2048xf32>
    %263 = vector.extract_strided_slice %162 {offsets = [0, 11], sizes = [16, 1], strides = [1, 1]} : vector<32x12xf32> to vector<16x1xf32>
    %264 = vector.broadcast %263 : vector<16x1xf32> to vector<16x2048xf32>
    %265 = arith.mulf %264, %262 : vector<16x2048xf32>
    %cst_51 = arith.constant dense<0.000000e+00> : vector<2048xf32>
    %266 = vector.multi_reduction <add>, %265, %cst_51 [0] : vector<16x2048xf32> to vector<2048xf32>
    %267 = vector.shape_cast %266 : vector<2048xf32> to vector<1x2048xf32>
    %c24 = arith.constant 24 : index
    %268 = memref.load %arg1[%c24] : memref<25xf32, #tpu.memory_space<smem>>
    %269 = vector.broadcast %268 : f32 to vector<1x2048xf32>
    %270 = arith.addf %267, %269 : vector<1x2048xf32>
    %271 = math.tanh %270 : vector<1x2048xf32>
    %c0_52 = arith.constant 0 : index
    %c0_53 = arith.constant 0 : index
    %272 = vector.load %arg8[%c0_52, %c0_53] : memref<2x2048xf32, #tpu.memory_space<vmem>>, vector<1x2048xf32>
    tpu.vector_store %arg8[%c0_52, %c0_53], %256 {strides = array<i32>} : memref<2x2048xf32, #tpu.memory_space<vmem>>, vector<1x2048xf32>,
    %c1_54 = arith.constant 1 : index
    %c0_55 = arith.constant 0 : index
    %273 = vector.load %arg8[%c1_54, %c0_55] : memref<2x2048xf32, #tpu.memory_space<vmem>>, vector<1x2048xf32>
    tpu.vector_store %arg8[%c1_54, %c0_55], %271 {strides = array<i32>} : memref<2x2048xf32, #tpu.memory_space<vmem>>, vector<1x2048xf32>,
    return
  }
  func.func @transform_0(%arg0: i32) -> i32 {
    %c0_i32 = arith.constant 0 : i32
    %c0_i32_0 = arith.constant 0 : i32
    return %c0_i32 : i32
  }
  func.func @transform_1(%arg0: i32) -> (i32, i32) {
    %c0_i32 = arith.constant 0 : i32
    %c0_i32_0 = arith.constant 0 : i32
    %c0_i32_1 = arith.constant 0 : i32
    return %c0_i32, %c0_i32_0 : i32, i32
  }
  func.func @transform_2(%arg0: i32) -> (i32, i32) {
    %c0_i32 = arith.constant 0 : i32
    %c0_i32_0 = arith.constant 0 : i32
    %c0_i32_1 = arith.constant 0 : i32
    return %c0_i32, %c0_i32_0 : i32, i32
  }
  func.func @transform_3(%arg0: i32) -> (i32, i32) {
    %c0_i32 = arith.constant 0 : i32
    %c0_i32_0 = arith.constant 0 : i32
    return %c0_i32, %arg0 : i32, i32
  }
  func.func @transform_4(%arg0: i32) -> (i32, i32) {
    %c0_i32 = arith.constant 0 : i32
    %c0_i32_0 = arith.constant 0 : i32
    return %arg0, %c0_i32 : i32, i32
  }
  func.func @transform_5(%arg0: i32) -> (i32, i32) {
    %c0_i32 = arith.constant 0 : i32
    %c0_i32_0 = arith.constant 0 : i32
    return %arg0, %c0_i32 : i32, i32
  }
  func.func @transform_6(%arg0: i32) -> (i32, i32) {
    %c0_i32 = arith.constant 0 : i32
    %c0_i32_0 = arith.constant 0 : i32
    return %arg0, %c0_i32 : i32, i32
  }
  func.func @transform_7(%arg0: i32) -> (i32, i32) {
    %c0_i32 = arith.constant 0 : i32
    %c0_i32_0 = arith.constant 0 : i32
    return %c0_i32, %arg0 : i32, i32
  }
}

</mosaic_0001>

<llo_original>
// kernel: ensemble_spectral_filter.1
$region0: #{ensemble_spectral_filter.1}
  #allocation0 [shape = 'u32[]', space=smem, size = 0x4, offset = 0x4, fixed_abs, tag = 'smem constant byte address 0x4 - core index']
  #allocation1 [shape = 'u32[144,128]{1,0:T(1,128)}', space=vmem, size = 0x12000, scoped, tag = 'internal scratch']
  %s0 = inlined_call_operand.vmem [shape: f32[25], index: 0, kind: input, shape index: {}]
  %s1 = inlined_call_operand.vmem [shape: f32[32,12], index: 1, kind: input, shape index: {}]
  %s2 = inlined_call_operand.vmem [shape: f32[32,64], index: 2, kind: input, shape index: {}]
  %s3 = inlined_call_operand.vmem [shape: f32[1,4096], index: 3, kind: input, shape index: {}]
  %s4 = inlined_call_operand.vmem [shape: f32[32,128], index: 4, kind: input, shape index: {}]
  %s5 = inlined_call_operand.vmem [shape: f32[32,128], index: 5, kind: output, shape index: {0}]
  %s6 = inlined_call_operand.vmem [shape: f32[32,128], index: 6, kind: output, shape index: {1}]
  %s7 = inlined_call_operand.vmem [shape: f32[2,4096], index: 7, kind: output, shape index: {2}]
  %8 = xla_tuple %s5, %s6, %s7
  %s9 = sld [smem:[#allocation0]]
  $region73: #{ensemble_spectral_filter.1} parent=0
    _
  %s11 = ssub.s32 1, %s9
  %s12 = scalar_select 0, %s11, %s9
  $region1: #{ensemble_spectral_filter.1} parent=0
    #allocation2 [shape = 'u8[512]{0}', space=smem, size = 0x200, scoped, tag = 'input window, operand 0, single buffered']
    #allocation3 [shape = 's32[2]{0}', space=sflag, size = 0x8, scoped, tag = 'scoped memory for ensemble_spectral_filter.1']
    %13 = vsyncpa [#allocation3], 0
    loop: start=0, step=1, limit=4
    $region2: #{ensemble_spectral_filter.1} parent=1 // loop_pre_header
      _
    $region3: #{ensemble_spectral_filter.1} parent=1 // loop_header
      %s15 = sphi 0, %s19
      %p16 = scmp.ge.s32.totalorder %s15, 4
      %s23 = sphi 0, %s23
      %s25 = sphi 0, %s23
      %s26 = sphi 0, %s25
      %s40 = sphi 0, %s26
      %s44 = sphi 0, %s44
      %s46 = sphi 0, %s44
      %s47 = sphi 0, %s46
      %s61 = sphi 0, %s47
      %s65 = sphi 0, %s65
      %s67 = sphi 0, %s65
      %s68 = sphi 0, %s67
      %s82 = sphi 0, %s68
      %s88 = sphi 0, %s90
      %s91 = sphi 0, %s88
      %s92 = sphi 0, %s91
      %s108 = sphi 0, %s92
      %s114 = sphi 0, %s116
      %s117 = sphi 0, %s114
      %s118 = sphi 0, %s117
      %s134 = sphi 0, %s118
      %s140 = sphi 0, %s142
      %s143 = sphi 0, %s140
      %s144 = sphi 0, %s143
      %s160 = sphi 0, %s144
      %s166 = sphi 0, %s168
      %s169 = sphi 0, %s166
      %s170 = sphi 0, %s169
      %s186 = sphi 0, %s170
      %s192 = sphi 0, %s194
      %s195 = sphi 0, %s192
      %s196 = sphi 0, %s195
      %s212 = sphi 0, %s196
    $region4: #{ensemble_spectral_filter.1} parent=1 // loop_header_branch
      %18 = sbr.rel (%p16) target = $region8
    $region5: #{ensemble_spectral_filter.1} parent=1 // loop_body
      %s20 = ssub.s32 %s15, 1
      %s21 = ssub.s32 %s15, 2
      %s22 = sadd.s32 %s15, 1
      %s24 = sadd.s32 %s23, 1
      %p27 = scmp.eq.s32.totalorder %s15, 1
      %p28 = scmp.ne.s32.totalorder %s23, %s25
      %p29 = scmp.eq.s32.totalorder %s15, 0
      %p30 = por %p28, %p29
      %p31 = scmp.ne.s32.totalorder %s23, %s25
      %p32 = scmp.eq.s32.totalorder %s20, 1
      %p33 = por %p31, %p32
      %p34 = scmp.ne.s32.totalorder %s25, %s26
      %p35 = scmp.eq.s32.totalorder %s20, 0
      %p36 = por %p34, %p35
      %p37 = scmp.ne.s32.totalorder %s25, %s26
      %p38 = scmp.eq.s32.totalorder %s21, 1
      %p39 = por %p37, %p38
      %p41 = scmp.ne.s32.totalorder %s26, %s40
      %p42 = scmp.eq.s32.totalorder %s21, 0
      %p43 = por %p41, %p42
      %s45 = sadd.s32 %s44, 1
      %p48 = scmp.eq.s32.totalorder %s15, 1
      %p49 = scmp.ne.s32.totalorder %s44, %s46
      %p50 = scmp.eq.s32.totalorder %s15, 0
      %p51 = por %p49, %p50
      %p52 = scmp.ne.s32.totalorder %s44, %s46
      %p53 = scmp.eq.s32.totalorder %s20, 1
      %p54 = por %p52, %p53
      %p55 = scmp.ne.s32.totalorder %s46, %s47
      %p56 = scmp.eq.s32.totalorder %s20, 0
      %p57 = por %p55, %p56
      %p58 = scmp.ne.s32.totalorder %s46, %s47
      %p59 = scmp.eq.s32.totalorder %s21, 1
      %p60 = por %p58, %p59
      %p62 = scmp.ne.s32.totalorder %s47, %s61
      %p63 = scmp.eq.s32.totalorder %s21, 0
      %p64 = por %p62, %p63
      %s66 = sadd.s32 %s65, 1
      %p69 = scmp.eq.s32.totalorder %s15, 1
      %p70 = scmp.ne.s32.totalorder %s65, %s67
      %p71 = scmp.eq.s32.totalorder %s15, 0
      %p72 = por %p70, %p71
      %p73 = scmp.ne.s32.totalorder %s65, %s67
      %p74 = scmp.eq.s32.totalorder %s20, 1
      %p75 = por %p73, %p74
      %p76 = scmp.ne.s32.totalorder %s67, %s68
      %p77 = scmp.eq.s32.totalorder %s20, 0
      %p78 = por %p76, %p77
      %p79 = scmp.ne.s32.totalorder %s67, %s68
      %p80 = scmp.eq.s32.totalorder %s21, 1
      %p81 = por %p79, %p80
      %p83 = scmp.ne.s32.totalorder %s68, %s82
      %p84 = scmp.eq.s32.totalorder %s21, 0
      %p85 = por %p83, %p84
      %s86 = ssub.s32 %s15, %s22
      %p87 = scmp.eq.s32.totalorder %s86, 0
      %s89 = sadd.s32 %s88, 1
      %s90 = scalar_select %p87, %s88, %s89
      %p93 = pneg %p87
      %p94 = scmp.eq.s32.totalorder %s15, 1
      %p95 = por %p93, %p94
      %p96 = scmp.ne.s32.totalorder %s88, %s91
      %p97 = scmp.eq.s32.totalorder %s15, 0
      %p98 = por %p96, %p97
      %p99 = scmp.ne.s32.totalorder %s88, %s91
      %p100 = scmp.eq.s32.totalorder %s20, 1
      %p101 = por %p99, %p100
      %p102 = scmp.ne.s32.totalorder %s91, %s92
      %p103 = scmp.eq.s32.totalorder %s20, 0
      %p104 = por %p102, %p103
      %p105 = scmp.ne.s32.totalorder %s91, %s92
      %p106 = scmp.eq.s32.totalorder %s21, 1
      %p107 = por %p105, %p106
      %p109 = scmp.ne.s32.totalorder %s92, %s108
      %p110 = scmp.eq.s32.totalorder %s21, 0
      %p111 = por %p109, %p110
      %s112 = ssub.s32 %s15, %s22
      %p113 = scmp.eq.s32.totalorder %s112, 0
      %s115 = sadd.s32 %s114, 1
      %s116 = scalar_select %p113, %s114, %s115
      %p119 = pneg %p113
      %p120 = scmp.eq.s32.totalorder %s15, 1
      %p121 = por %p119, %p120
      %p122 = scmp.ne.s32.totalorder %s114, %s117
      %p123 = scmp.eq.s32.totalorder %s15, 0
      %p124 = por %p122, %p123
      %p125 = scmp.ne.s32.totalorder %s114, %s117
      %p126 = scmp.eq.s32.totalorder %s20, 1
      %p127 = por %p125, %p126
      %p128 = scmp.ne.s32.totalorder %s117, %s118
      %p129 = scmp.eq.s32.totalorder %s20, 0
      %p130 = por %p128, %p129
      %p131 = scmp.ne.s32.totalorder %s117, %s118
      %p132 = scmp.eq.s32.totalorder %s21, 1
      %p133 = por %p131, %p132
      %p135 = scmp.ne.s32.totalorder %s118, %s134
      %p136 = scmp.eq.s32.totalorder %s21, 0
      %p137 = por %p135, %p136
      %s138 = ssub.s32 %s15, %s22
      %p139 = scmp.eq.s32.totalorder %s138, 0
      %s141 = sadd.s32 %s140, 1
      %s142 = scalar_select %p139, %s140, %s141
      %p145 = pneg %p139
      %p146 = scmp.eq.s32.totalorder %s15, 1
      %p147 = por %p145, %p146
      %p148 = scmp.ne.s32.totalorder %s140, %s143
      %p149 = scmp.eq.s32.totalorder %s15, 0
      %p150 = por %p148, %p149
      %p151 = scmp.ne.s32.totalorder %s140, %s143
      %p152 = scmp.eq.s32.totalorder %s20, 1
      %p153 = por %p151, %p152
      %p154 = scmp.ne.s32.totalorder %s143, %s144
      %p155 = scmp.eq.s32.totalorder %s20, 0
      %p156 = por %p154, %p155
      %p157 = scmp.ne.s32.totalorder %s143, %s144
      %p158 = scmp.eq.s32.totalorder %s21, 1
      %p159 = por %p157, %p158
      %p161 = scmp.ne.s32.totalorder %s144, %s160
      %p162 = scmp.eq.s32.totalorder %s21, 0
      %p163 = por %p161, %p162
      %s164 = ssub.s32 %s15, %s22
      %p165 = scmp.eq.s32.totalorder %s164, 0
      %s167 = sadd.s32 %s166, 1
      %s168 = scalar_select %p165, %s166, %s167
      %p171 = pneg %p165
      %p172 = scmp.eq.s32.totalorder %s15, 1
      %p173 = por %p171, %p172
      %p174 = scmp.ne.s32.totalorder %s166, %s169
      %p175 = scmp.eq.s32.totalorder %s15, 0
      %p176 = por %p174, %p175
      %p177 = scmp.ne.s32.totalorder %s166, %s169
      %p178 = scmp.eq.s32.totalorder %s20, 1
      %p179 = por %p177, %p178
      %p180 = scmp.ne.s32.totalorder %s169, %s170
      %p181 = scmp.eq.s32.totalorder %s20, 0
      %p182 = por %p180, %p181
      %p183 = scmp.ne.s32.totalorder %s169, %s170
      %p184 = scmp.eq.s32.totalorder %s21, 1
      %p185 = por %p183, %p184
      %p187 = scmp.ne.s32.totalorder %s170, %s186
      %p188 = scmp.eq.s32.totalorder %s21, 0
      %p189 = por %p187, %p188
      %s190 = ssub.s32 %s15, %s22
      %p191 = scmp.eq.s32.totalorder %s190, 0
      %s193 = sadd.s32 %s192, 1
      %s194 = scalar_select %p191, %s192, %s193
      %p197 = pneg %p191
      %p198 = scmp.eq.s32.totalorder %s15, 1
      %p199 = por %p197, %p198
      %p200 = scmp.ne.s32.totalorder %s192, %s195
      %p201 = scmp.eq.s32.totalorder %s15, 0
      %p202 = por %p200, %p201
      %p203 = scmp.ne.s32.totalorder %s192, %s195
      %p204 = scmp.eq.s32.totalorder %s20, 1
      %p205 = por %p203, %p204
      %p206 = scmp.ne.s32.totalorder %s195, %s196
      %p207 = scmp.eq.s32.totalorder %s20, 0
      %p208 = por %p206, %p207
      %p209 = scmp.ne.s32.totalorder %s195, %s196
      %p210 = scmp.eq.s32.totalorder %s21, 1
      %p211 = por %p209, %p210
      %p213 = scmp.ne.s32.totalorder %s196, %s212
      %p214 = scmp.eq.s32.totalorder %s21, 0
      %p215 = por %p213, %p214
      %p216 = scmp.le.s32.totalorder 1, %s15
      %p217 = scmp.lt.s32.totalorder %s15, 3
      %p218 = pnand %p216, %p217
      %p219 = pneg %p218
      // Predicated region
      $region9: #{ensemble_spectral_filter.1} parent=5 // pred_check
        _
      $region10: #{ensemble_spectral_filter.1} parent=5 // pred_check_branch
        %221 = sbr.rel (%p218) target = $region12
      $region11: #{ensemble_spectral_filter.1} parent=5 // pred_region
        %s222 = ssub.s32 %s15, 1
        // Predicated region
        $region13: #{ensemble_spectral_filter.1} parent=11 // pred_check
          %p223 = pneg %p36
        $region14: #{ensemble_spectral_filter.1} parent=11 // pred_check_branch
          %225 = sbr.rel (%p223) target = $region16
        $region15: #{ensemble_spectral_filter.1} parent=11 // pred_region
          %s227 = ssub.s32 16, 16
          %228 = vsyncadd [#allocation3], %s227
          %s230 = sshll.u32 %s0, 4
          %s231 = int_to_ptr.vmem [resolvable:$true] %s230
          %233 = dma.vmem_to_smem %s231, 16, [#allocation2], [#allocation3]
        $region16: #{ensemble_spectral_filter.1} parent=11 // pred_fallthru
          _
        // Predicated region
        $region17: #{ensemble_spectral_filter.1} parent=11 // pred_check
          %p234 = pneg %p57
        $region18: #{ensemble_spectral_filter.1} parent=11 // pred_check_branch
          %236 = sbr.rel (%p234) target = $region20
        $region19: #{ensemble_spectral_filter.1} parent=11 // pred_region
          _
        $region20: #{ensemble_spectral_filter.1} parent=11 // pred_fallthru
          _
        // Predicated region
        $region21: #{ensemble_spectral_filter.1} parent=11 // pred_check
          %p237 = pneg %p78
        $region22: #{ensemble_spectral_filter.1} parent=11 // pred_check_branch
          %239 = sbr.rel (%p237) target = $region24
        $region23: #{ensemble_spectral_filter.1} parent=11 // pred_region
          _
        $region24: #{ensemble_spectral_filter.1} parent=11 // pred_fallthru
          _
      $region12: #{ensemble_spectral_filter.1} parent=5 // pred_fallthru
        _
      %p240 = scmp.lt.s32.totalorder %s15, 2
      // Predicated region
      $region25: #{ensemble_spectral_filter.1} parent=5 // pred_check
        %p241 = pneg %p240
      $region26: #{ensemble_spectral_filter.1} parent=5 // pred_check_branch
        %243 = sbr.rel (%p241) target = $region28
      $region27: #{ensemble_spectral_filter.1} parent=5 // pred_region
        // Predicated region
        $region29: #{ensemble_spectral_filter.1} parent=27 // pred_check
          %p244 = pneg %p98
        $region30: #{ensemble_spectral_filter.1} parent=27 // pred_check_branch
          %246 = sbr.rel (%p244) target = $region32
        $region31: #{ensemble_spectral_filter.1} parent=27 // pred_region
          %s247 = smul.u32 16, %s15
          %p248 = scmp.lt.s32.totalorder %s247, 31
          %s249 = scalar_select %p248, %s247, 31
          %s250 = scalar_lea.vmem %s3, %s249
          %s251 = smul.u32 16, %s15
        $region32: #{ensemble_spectral_filter.1} parent=27 // pred_fallthru
          _
        // Predicated region
        $region33: #{ensemble_spectral_filter.1} parent=27 // pred_check
          %p252 = pneg %p124
        $region34: #{ensemble_spectral_filter.1} parent=27 // pred_check_branch
          %254 = sbr.rel (%p252) target = $region36
        $region35: #{ensemble_spectral_filter.1} parent=27 // pred_region
          %s255 = smul.u32 2, %s15
          %p256 = scmp.lt.s32.totalorder %s255, 3
          %s257 = scalar_select %p256, %s255, 3
          %s258 = smul.addr %s257, 8
          %s259 = scalar_lea.vmem %s4, %s258
          %s260 = smul.u32 2, %s15
        $region36: #{ensemble_spectral_filter.1} parent=27 // pred_fallthru
          _
      $region28: #{ensemble_spectral_filter.1} parent=5 // pred_fallthru
        _
      %p261 = scmp.le.s32.totalorder 1, %s15
      %p262 = scmp.lt.s32.totalorder %s15, 3
      %p263 = pnand %p261, %p262
      %p264 = pneg %p263
      // Predicated region
      $region37: #{ensemble_spectral_filter.1} parent=5 // pred_check
        _
      $region38: #{ensemble_spectral_filter.1} parent=5 // pred_check_branch
        %266 = sbr.rel (%p263) target = $region40
      $region39: #{ensemble_spectral_filter.1} parent=5 // pred_region
        %s267 = ssub.s32 %s15, 1
        // Predicated region
        $region41: #{ensemble_spectral_filter.1} parent=39 // pred_check
          %p268 = pneg %p36
        $region42: #{ensemble_spectral_filter.1} parent=39 // pred_check_branch
          %270 = sbr.rel (%p268) target = $region44
        $region43: #{ensemble_spectral_filter.1} parent=39 // pred_region
          %271 = dma.done [#allocation3], 16
        $region44: #{ensemble_spectral_filter.1} parent=39 // pred_fallthru
          _
        %272 = sfence
        %p273 = pneg %p36
        %p274 = pneg %p33
        %p275 = pneg %p57
        %p276 = pneg %p54
        %p277 = pneg %p78
        %p278 = pneg %p75
        %s279 = smul.u32 16, %s20
        %p280 = scmp.lt.s32.totalorder %s279, 31
        %s281 = scalar_select %p280, %s279, 31
        %s282 = scalar_lea.vmem %s3, %s281
        %p283 = pneg %p104
        %p284 = pneg %p101
        %s285 = smul.u32 2, %s20
        %p286 = scmp.lt.s32.totalorder %s285, 3
        %s287 = scalar_select %p286, %s285, 3
        %s288 = smul.addr %s287, 8
        %s289 = scalar_lea.vmem %s4, %s288
        %p290 = pneg %p130
        %p291 = pneg %p127
        %p292 = pneg %p156
        %p293 = pneg %p153
        %s294 = smul.u32 2, %s20
        %p295 = scmp.lt.s32.totalorder %s294, 3
        %s296 = scalar_select %p295, %s294, 3
        %s297 = smul.addr %s296, 8
        %s298 = scalar_lea.vmem %s5, %s297
        %p299 = pneg %p182
        %p300 = pneg %p179
        %s301 = smul.u32 2, %s20
        %p302 = scmp.lt.s32.totalorder %s301, 3
        %s303 = scalar_select %p302, %s301, 3
        %s304 = smul.addr %s303, 8
        %s305 = scalar_lea.vmem %s6, %s304
        %p306 = pneg %p208
        %p307 = pneg %p205
        %s308 = smul.u32 16, %s20
        %p309 = scmp.lt.s32.totalorder %s308, 31
        %s310 = scalar_select %p309, %s308, 31
        %s311 = smul.addr %s310, 2
        %s312 = scalar_lea.vmem %s7, %s311
        %s313 = smul.u32 16, %s20
        %p314 = scmp.lt.s32.totalorder %s313, 31
        %s315 = scalar_select %p314, %s313, 31
        %s316 = scalar_lea.vmem %s3, %s315
        %s317 = smul.u32 16, %s20
        %s318 = smul.u32 2, %s20
        %p319 = scmp.lt.s32.totalorder %s318, 3
        %s320 = scalar_select %p319, %s318, 3
        %s321 = smul.addr %s320, 8
        %s322 = scalar_lea.vmem %s4, %s321
        %s323 = smul.u32 2, %s20
        %s324 = smul.u32 2, %s20
        %p325 = scmp.lt.s32.totalorder %s324, 3
        %s326 = scalar_select %p325, %s324, 3
        %s327 = smul.addr %s326, 8
        %s328 = scalar_lea.vmem %s5, %s327
        %s329 = smul.u32 2, %s20
        %s330 = smul.u32 2, %s20
        %p331 = scmp.lt.s32.totalorder %s330, 3
        %s332 = scalar_select %p331, %s330, 3
        %s333 = smul.addr %s332, 8
        %s334 = scalar_lea.vmem %s6, %s333
        %s335 = smul.u32 2, %s20
        %s336 = smul.u32 16, %s20
        %p337 = scmp.lt.s32.totalorder %s336, 31
        %s338 = scalar_select %p337, %s336, 31
        %s339 = smul.addr %s338, 2
        %s340 = scalar_lea.vmem %s7, %s339
        %s341 = smul.u32 16, %s20
        %v342 = vld [vmem:[%s322] sm:$0xff]
        %v343 = vld [vmem:[%s322 + $0x8] sm:$0xff]
        %s344 = sld [smem:[#allocation2 + $0x16]]
        %v345 = vstv %s344
        %v346 = vmul.f32 %v342, %v345
        %v347 = vmul.f32 %v343, %v345
        %v348 = vsub.f32 %v346, 1.0
        %v349 = vsub.f32 %v347, 1.0
        %s350 = sld [smem:[#allocation2]]
        %v351 = vstv %s350
        %s352 = sld [smem:[#allocation2 + $0x1]]
        %v353 = vstv %s352
        %v354 = vmul.f32 %v353, %v348
        %v355 = vmul.f32 %v353, %v349
        %v356 = vadd.f32 %v351, %v354
        %v357 = vadd.f32 %v351, %v355
        %v358 = vadd.f32 %v348, %v348
        %v359 = vadd.f32 %v349, %v349
        %v360 = vmul.f32 %v358, %v348
        %v361 = vmul.f32 %v359, %v349
        %v362 = vsub.f32 %v360, 1.0
        %v363 = vsub.f32 %v361, 1.0
        %s364 = sld [smem:[#allocation2 + $0x2]]
        %v365 = vstv %s364
        %v366 = vmul.f32 %v365, %v362
        %v367 = vmul.f32 %v365, %v363
        %v368 = vadd.f32 %v356, %v366
        %v369 = vadd.f32 %v357, %v367
        %v370 = vmul.f32 %v358, %v362
        %v371 = vmul.f32 %v359, %v363
        %v372 = vsub.f32 %v370, %v348
        %v373 = vsub.f32 %v371, %v349
        %s374 = sld [smem:[#allocation2 + $0x3]]
        %v375 = vstv %s374
        %v376 = vmul.f32 %v375, %v372
        %v377 = vmul.f32 %v375, %v373
        %v378 = vadd.f32 %v368, %v376
        %v379 = vadd.f32 %v369, %v377
        %v380 = vmul.f32 %v358, %v372
        %v381 = vmul.f32 %v359, %v373
        %v382 = vsub.f32 %v380, %v362
        %v383 = vsub.f32 %v381, %v363
        %s384 = sld [smem:[#allocation2 + $0x4]]
        %v385 = vstv %s384
        %v386 = vmul.f32 %v385, %v382
        %v387 = vmul.f32 %v385, %v383
        %v388 = vadd.f32 %v378, %v386
        %v389 = vadd.f32 %v379, %v387
        %v390 = vmul.f32 %v358, %v382
        %v391 = vmul.f32 %v359, %v383
        %v392 = vsub.f32 %v390, %v372
        %v393 = vsub.f32 %v391, %v373
        %s394 = sld [smem:[#allocation2 + $0x5]]
        %v395 = vstv %s394
        %v396 = vmul.f32 %v395, %v392
        %v397 = vmul.f32 %v395, %v393
        %v398 = vadd.f32 %v388, %v396
        %v399 = vadd.f32 %v389, %v397
        %v400 = vmul.f32 %v358, %v392
        %v401 = vmul.f32 %v359, %v393
        %v402 = vsub.f32 %v400, %v382
        %v403 = vsub.f32 %v401, %v383
        %s404 = sld [smem:[#allocation2 + $0x6]]
        %v405 = vstv %s404
        %v406 = vmul.f32 %v405, %v402
        %v407 = vmul.f32 %v405, %v403
        %v408 = vadd.f32 %v398, %v406
        %v409 = vadd.f32 %v399, %v407
        %v410 = vand.u32 2147483647, %v408
        %v411 = vand.u32 2147483647, %v409
        %v412 = vmin.f32 %v410, 10.0
        %v413 = vmin.f32 %v411, 10.0
        %v414 = vsub.f32 0.0, %v412
        %v415 = vsub.f32 0.0, %v413
        %v416 = vmul.f32 %v414, 1.442695
        %v417 = vpow.pop %v416
        %v418 = vmul.f32 %v415, 1.442695
        %v419 = vpow.pop %v418
        %v420 = vadd.f32 %v417, 1e-06
        %v421 = vadd.f32 %v419, 1e-06
        %422 = vst [vmem:[%s328] sm:$0xff] %v420
        %423 = vst [vmem:[%s328 + $0x8] sm:$0xff] %v421
        %s424 = sld [smem:[#allocation2 + $0x14]]
        %v425 = vstv %s424
        %v426 = vmul.f32 %v342, %v425
        %v427 = vmul.f32 %v343, %v425
        %s428 = sld [smem:[#allocation2 + $0x7]]
        %v429 = vstv %s428
        %v430 = vsub.f32 %v426, %v429
        %v431 = vsub.f32 %v427, %v429
        %v432 = vxor.u32 %v430, 2147483648
        %v433 = vxor.u32 %v431, 2147483648
        %v434 = vmul.f32 %v432, 1.442695
        %v435 = vpow.pop %v434
        %v436 = vmul.f32 %v433, 1.442695
        %v437 = vpow.pop %v436
        %v438 = vadd.f32 %v435, 1.0
        %v439 = vadd.f32 %v437, 1.0
        %v440 = vrcp.pop %v438
        %v441 = vmul.f32 1.0, %v440
        %v442 = vrcp.pop %v439
        %v443 = vmul.f32 1.0, %v442
        %s444 = sld [smem:[#allocation2 + $0x8]]
        %v445 = vstv %s444
        %v446 = vsub.f32 %v426, %v445
        %v447 = vsub.f32 %v427, %v445
        %v448 = vxor.u32 %v446, 2147483648
        %v449 = vxor.u32 %v447, 2147483648
        %v450 = vmul.f32 %v448, 1.442695
        %v451 = vpow.pop %v450
        %v452 = vmul.f32 %v449, 1.442695
        %v453 = vpow.pop %v452
        %v454 = vadd.f32 %v451, 1.0
        %v455 = vadd.f32 %v453, 1.0
        %v456 = vrcp.pop %v454
        %v457 = vmul.f32 1.0, %v456
        %v458 = vrcp.pop %v455
        %v459 = vmul.f32 1.0, %v458
        %v460 = vsub.f32 1.0, %v457
        %v461 = vsub.f32 1.0, %v459
        %v462 = vmul.f32 %v441, %v460
        %v463 = vmul.f32 %v443, %v461
        %s464 = sld [smem:[#allocation2 + $0xe]]
        %v465 = vstv %s464
        %v466 = vmul.f32 %v462, %v465
        %v467 = vmul.f32 %v463, %v465
        %v468 = vadd.f32 %v466, 0.0
        %v469 = vadd.f32 %v467, 0.0
        %s470 = sld [smem:[#allocation2 + $0x9]]
        %v471 = vstv %s470
        %v472 = vsub.f32 %v426, %v471
        %v473 = vsub.f32 %v427, %v471
        %v474 = vxor.u32 %v472, 2147483648
        %v475 = vxor.u32 %v473, 2147483648
        %v476 = vmul.f32 %v474, 1.442695
        %v477 = vpow.pop %v476
        %v478 = vmul.f32 %v475, 1.442695
        %v479 = vpow.pop %v478
        %v480 = vadd.f32 %v477, 1.0
        %v481 = vadd.f32 %v479, 1.0
        %v482 = vrcp.pop %v480
        %v483 = vmul.f32 1.0, %v482
        %v484 = vrcp.pop %v481
        %v485 = vmul.f32 1.0, %v484
        %v486 = vsub.f32 1.0, %v483
        %v487 = vsub.f32 1.0, %v485
        %v488 = vmul.f32 %v457, %v486
        %v489 = vmul.f32 %v459, %v487
        %s490 = sld [smem:[#allocation2 + $0xf]]
        %v491 = vstv %s490
        %v492 = vmul.f32 %v488, %v491
        %v493 = vmul.f32 %v489, %v491
        %v494 = vadd.f32 %v468, %v492
        %v495 = vadd.f32 %v469, %v493
        %s496 = sld [smem:[#allocation2 + $0xa]]
        %v497 = vstv %s496
        %v498 = vsub.f32 %v426, %v497
        %v499 = vsub.f32 %v427, %v497
        %v500 = vxor.u32 %v498, 2147483648
        %v501 = vxor.u32 %v499, 2147483648
        %v502 = vmul.f32 %v500, 1.442695
        %v503 = vpow.pop %v502
        %v504 = vmul.f32 %v501, 1.442695
        %v505 = vpow.pop %v504
        %v506 = vadd.f32 %v503, 1.0
        %v507 = vadd.f32 %v505, 1.0
        %v508 = vrcp.pop %v506
        %v509 = vmul.f32 1.0, %v508
        %v510 = vrcp.pop %v507
        %v511 = vmul.f32 1.0, %v510
        %v512 = vsub.f32 1.0, %v509
        %v513 = vsub.f32 1.0, %v511
        %v514 = vmul.f32 %v483, %v512
        %v515 = vmul.f32 %v485, %v513
        %s516 = sld [smem:[#allocation2 + $0x10]]
        %v517 = vstv %s516
        %v518 = vmul.f32 %v514, %v517
        %v519 = vmul.f32 %v515, %v517
        %v520 = vadd.f32 %v494, %v518
        %v521 = vadd.f32 %v495, %v519
        %s522 = sld [smem:[#allocation2 + $0xb]]
        %v523 = vstv %s522
        %v524 = vsub.f32 %v426, %v523
        %v525 = vsub.f32 %v427, %v523
        %v526 = vxor.u32 %v524, 2147483648
        %v527 = vxor.u32 %v525, 2147483648
        %v528 = vmul.f32 %v526, 1.442695
        %v529 = vpow.pop %v528
        %v530 = vmul.f32 %v527, 1.442695
        %v531 = vpow.pop %v530
        %v532 = vadd.f32 %v529, 1.0
        %v533 = vadd.f32 %v531, 1.0
        %v534 = vrcp.pop %v532
        %v535 = vmul.f32 1.0, %v534
        %v536 = vrcp.pop %v533
        %v537 = vmul.f32 1.0, %v536
        %v538 = vsub.f32 1.0, %v535
        %v539 = vsub.f32 1.0, %v537
        %v540 = vmul.f32 %v509, %v538
        %v541 = vmul.f32 %v511, %v539
        %s542 = sld [smem:[#allocation2 + $0x11]]
        %v543 = vstv %s542
        %v544 = vmul.f32 %v540, %v543
        %v545 = vmul.f32 %v541, %v543
        %v546 = vadd.f32 %v520, %v544
        %v547 = vadd.f32 %v521, %v545
        %s548 = sld [smem:[#allocation2 + $0xc]]
        %v549 = vstv %s548
        %v550 = vsub.f32 %v426, %v549
        %v551 = vsub.f32 %v427, %v549
        %v552 = vxor.u32 %v550, 2147483648
        %v553 = vxor.u32 %v551, 2147483648
        %v554 = vmul.f32 %v552, 1.442695
        %v555 = vpow.pop %v554
        %v556 = vmul.f32 %v553, 1.442695
        %v557 = vpow.pop %v556
        %v558 = vadd.f32 %v555, 1.0
        %v559 = vadd.f32 %v557, 1.0
        %v560 = vrcp.pop %v558
        %v561 = vmul.f32 1.0, %v560
        %v562 = vrcp.pop %v559
        %v563 = vmul.f32 1.0, %v562
        %v564 = vsub.f32 1.0, %v561
        %v565 = vsub.f32 1.0, %v563
        %v566 = vmul.f32 %v535, %v564
        %v567 = vmul.f32 %v537, %v565
        %s568 = sld [smem:[#allocation2 + $0x12]]
        %v569 = vstv %s568
        %v570 = vmul.f32 %v566, %v569
        %v571 = vmul.f32 %v567, %v569
        %v572 = vadd.f32 %v546, %v570
        %v573 = vadd.f32 %v547, %v571
        %s574 = sld [smem:[#allocation2 + $0xd]]
        %v575 = vstv %s574
        %v576 = vsub.f32 %v426, %v575
        %v577 = vsub.f32 %v427, %v575
        %v578 = vxor.u32 %v576, 2147483648
        %v579 = vxor.u32 %v577, 2147483648
        %v580 = vmul.f32 %v578, 1.442695
        %v581 = vpow.pop %v580
        %v582 = vmul.f32 %v579, 1.442695
        %v583 = vpow.pop %v582
        %v584 = vadd.f32 %v581, 1.0
        %v585 = vadd.f32 %v583, 1.0
        %v586 = vrcp.pop %v584
        %v587 = vmul.f32 1.0, %v586
        %v588 = vrcp.pop %v585
        %v589 = vmul.f32 1.0, %v588
        %v590 = vsub.f32 1.0, %v587
        %v591 = vsub.f32 1.0, %v589
        %v592 = vmul.f32 %v561, %v590
        %v593 = vmul.f32 %v563, %v591
        %s594 = sld [smem:[#allocation2 + $0x13]]
        %v595 = vstv %s594
        %v596 = vmul.f32 %v592, %v595
        %v597 = vmul.f32 %v593, %v595
        %v598 = vadd.f32 %v572, %v596
        %v599 = vadd.f32 %v573, %v597
        %600 = vst [vmem:[%s334] sm:$0xff] %v598
        %601 = vst [vmem:[%s334 + $0x8] sm:$0xff] %v599
        %v602 = vld [vmem:[%s316] sm:$0xff]
        %v603 = vld [vmem:[%s316 + $0x8] sm:$0xff]
        %s604 = sld [smem:[#allocation2 + $0x15]]
        %v605 = vstv %s604
        %v606 = vmul.f32 %v602, %v605
        %v607 = vmul.f32 %v603, %v605
        %v608 = vld [vmem:[%s1] sm:$0xff]
        %v609 = vld [vmem:[%s1 + $0x8] sm:$0xff]
        %v610 = vld [vmem:[%s1 + $0x10] sm:$0xff]
        %v611 = vld [vmem:[%s1 + $0x18] sm:$0xff]
        %613 = vset.pattern.permute.xlu0 0
        %614 = vperm.xlu0 %613, %v608
        %v615 = vpop.permute.xlu0 %614
        %618 = vset.pattern.permute.xlu0 0
        %619 = vperm.xlu0 %618, %v609
        %v620 = vpop.permute.xlu0 %619
        %623 = vset.pattern.permute.xlu0 0
        %624 = vperm.xlu0 %623, %v610
        %v625 = vpop.permute.xlu0 %624
        %628 = vset.pattern.permute.xlu0 0
        %629 = vperm.xlu0 %628, %v611
        %v630 = vpop.permute.xlu0 %629
        %v634 = vlaneseq
        %v635 = vshrl.u32 %v634, 7
        %v636 = vsub.s32 0, %v635
        %v637 = vrot.slane %v606, %v636
        %v638 = vlaneseq
        %v639 = vshrl.u32 %v638, 7
        %v640 = vsub.s32 1, %v639
        %v641 = vrot.slane %v606, %v640
        %v642 = vlaneseq
        %v643 = vshrl.u32 %v642, 7
        %v644 = vsub.s32 2, %v643
        %v645 = vrot.slane %v606, %v644
        %v646 = vlaneseq
        %v647 = vshrl.u32 %v646, 7
        %v648 = vsub.s32 3, %v647
        %v649 = vrot.slane %v606, %v648
        %v650 = vlaneseq
        %v651 = vshrl.u32 %v650, 7
        %v652 = vsub.s32 4, %v651
        %v653 = vrot.slane %v606, %v652
        %v654 = vlaneseq
        %v655 = vshrl.u32 %v654, 7
        %v656 = vsub.s32 5, %v655
        %v657 = vrot.slane %v606, %v656
        %v658 = vlaneseq
        %v659 = vshrl.u32 %v658, 7
        %v660 = vsub.s32 6, %v659
        %v661 = vrot.slane %v606, %v660
        %v662 = vlaneseq
        %v663 = vshrl.u32 %v662, 7
        %v664 = vsub.s32 7, %v663
        %v665 = vrot.slane %v606, %v664
        %v666 = vlaneseq
        %v667 = vshrl.u32 %v666, 7
        %v668 = vsub.s32 0, %v667
        %v669 = vrot.slane %v607, %v668
        %v670 = vlaneseq
        %v671 = vshrl.u32 %v670, 7
        %v672 = vsub.s32 1, %v671
        %v673 = vrot.slane %v607, %v672
        %v674 = vlaneseq
        %v675 = vshrl.u32 %v674, 7
        %v676 = vsub.s32 2, %v675
        %v677 = vrot.slane %v607, %v676
        %v678 = vlaneseq
        %v679 = vshrl.u32 %v678, 7
        %v680 = vsub.s32 3, %v679
        %v681 = vrot.slane %v607, %v680
        %v682 = vlaneseq
        %v683 = vshrl.u32 %v682, 7
        %v684 = vsub.s32 4, %v683
        %v685 = vrot.slane %v607, %v684
        %v686 = vlaneseq
        %v687 = vshrl.u32 %v686, 7
        %v688 = vsub.s32 5, %v687
        %v689 = vrot.slane %v607, %v688
        %v690 = vlaneseq
        %v691 = vshrl.u32 %v690, 7
        %v692 = vsub.s32 6, %v691
        %v693 = vrot.slane %v607, %v692
        %v694 = vlaneseq
        %v695 = vshrl.u32 %v694, 7
        %v696 = vsub.s32 7, %v695
        %v697 = vrot.slane %v607, %v696
        %v714 = vmul.f32 %v615, %v637
        %v715 = vmul.f32 %v615, %v641
        %v716 = vmul.f32 %v615, %v645
        %v717 = vmul.f32 %v615, %v649
        %v718 = vmul.f32 %v615, %v653
        %v719 = vmul.f32 %v615, %v657
        %v720 = vmul.f32 %v615, %v661
        %v721 = vmul.f32 %v615, %v665
        %v722 = vmul.f32 %v615, %v669
        %v723 = vmul.f32 %v615, %v673
        %v724 = vmul.f32 %v615, %v677
        %v725 = vmul.f32 %v615, %v681
        %v726 = vmul.f32 %v615, %v685
        %v727 = vmul.f32 %v615, %v689
        %v728 = vmul.f32 %v615, %v693
        %v729 = vmul.f32 %v615, %v697
        %v730 = vmul.f32 %v620, %v637
        %v731 = vmul.f32 %v620, %v641
        %v732 = vmul.f32 %v620, %v645
        %v733 = vmul.f32 %v620, %v649
        %v734 = vmul.f32 %v620, %v653
        %v735 = vmul.f32 %v620, %v657
        %v736 = vmul.f32 %v620, %v661
        %v737 = vmul.f32 %v620, %v665
        %v738 = vmul.f32 %v620, %v669
        %v739 = vmul.f32 %v620, %v673
        %v740 = vmul.f32 %v620, %v677
        %v741 = vmul.f32 %v620, %v681
        %v742 = vmul.f32 %v620, %v685
        %v743 = vmul.f32 %v620, %v689
        %v744 = vmul.f32 %v620, %v693
        %v745 = vmul.f32 %v620, %v697
        %v746 = vmul.f32 %v625, %v637
        %v747 = vmul.f32 %v625, %v641
        %v748 = vmul.f32 %v625, %v645
        %v749 = vmul.f32 %v625, %v649
        %v750 = vmul.f32 %v625, %v653
        %v751 = vmul.f32 %v625, %v657
        %v752 = vmul.f32 %v625, %v661
        %v753 = vmul.f32 %v625, %v665
        %v754 = vmul.f32 %v625, %v669
        %v755 = vmul.f32 %v625, %v673
        %v756 = vmul.f32 %v625, %v677
        %v757 = vmul.f32 %v625, %v681
        %v758 = vmul.f32 %v625, %v685
        %v759 = vmul.f32 %v625, %v689
        %v760 = vmul.f32 %v625, %v693
        %v761 = vmul.f32 %v625, %v697
        %v762 = vmul.f32 %v630, %v637
        %v763 = vmul.f32 %v630, %v641
        %v764 = vmul.f32 %v630, %v645
        %v765 = vmul.f32 %v630, %v649
        %v766 = vmul.f32 %v630, %v653
        %v767 = vmul.f32 %v630, %v657
        %v768 = vmul.f32 %v630, %v661
        %v769 = vmul.f32 %v630, %v665
        %v770 = vmul.f32 %v630, %v669
        %v771 = vmul.f32 %v630, %v673
        %v772 = vmul.f32 %v630, %v677
        %v773 = vmul.f32 %v630, %v681
        %v774 = vmul.f32 %v630, %v685
        %v775 = vmul.f32 %v630, %v689
        %v776 = vmul.f32 %v630, %v693
        %v777 = vmul.f32 %v630, %v697
        %778 = vset.pattern.permute.xlu0 1
        %779 = vperm.xlu0 %778, %v608
        %v780 = vpop.permute.xlu0 %779
        %782 = vset.pattern.permute.xlu0 1
        %783 = vperm.xlu0 %782, %v609
        %v784 = vpop.permute.xlu0 %783
        %786 = vset.pattern.permute.xlu0 1
        %787 = vperm.xlu0 %786, %v610
        %v788 = vpop.permute.xlu0 %787
        %790 = vset.pattern.permute.xlu0 1
        %791 = vperm.xlu0 %790, %v611
        %v792 = vpop.permute.xlu0 %791
        %v794 = vadd.f32 %v714, %v780
        %v795 = vadd.f32 %v715, %v780
        %v796 = vadd.f32 %v716, %v780
        %v797 = vadd.f32 %v717, %v780
        %v798 = vadd.f32 %v718, %v780
        %v799 = vadd.f32 %v719, %v780
        %v800 = vadd.f32 %v720, %v780
        %v801 = vadd.f32 %v721, %v780
        %v802 = vadd.f32 %v722, %v780
        %v803 = vadd.f32 %v723, %v780
        %v804 = vadd.f32 %v724, %v780
        %v805 = vadd.f32 %v725, %v780
        %v806 = vadd.f32 %v726, %v780
        %v807 = vadd.f32 %v727, %v780
        %v808 = vadd.f32 %v728, %v780
        %v809 = vadd.f32 %v729, %v780
        %v810 = vadd.f32 %v730, %v784
        %v811 = vadd.f32 %v731, %v784
        %v812 = vadd.f32 %v732, %v784
        %v813 = vadd.f32 %v733, %v784
        %v814 = vadd.f32 %v734, %v784
        %v815 = vadd.f32 %v735, %v784
        %v816 = vadd.f32 %v736, %v784
        %v817 = vadd.f32 %v737, %v784
        %v818 = vadd.f32 %v738, %v784
        %v819 = vadd.f32 %v739, %v784
        %v820 = vadd.f32 %v740, %v784
        %v821 = vadd.f32 %v741, %v784
        %v822 = vadd.f32 %v742, %v784
        %v823 = vadd.f32 %v743, %v784
        %v824 = vadd.f32 %v744, %v784
        %v825 = vadd.f32 %v745, %v784
        %v826 = vadd.f32 %v746, %v788
        %v827 = vadd.f32 %v747, %v788
        %v828 = vadd.f32 %v748, %v788
        %v829 = vadd.f32 %v749, %v788
        %v830 = vadd.f32 %v750, %v788
        %v831 = vadd.f32 %v751, %v788
        %v832 = vadd.f32 %v752, %v788
        %v833 = vadd.f32 %v753, %v788
        %v834 = vadd.f32 %v754, %v788
        %v835 = vadd.f32 %v755, %v788
        %v836 = vadd.f32 %v756, %v788
        %v837 = vadd.f32 %v757, %v788
        %v838 = vadd.f32 %v758, %v788
        %v839 = vadd.f32 %v759, %v788
        %v840 = vadd.f32 %v760, %v788
        %v841 = vadd.f32 %v761, %v788
        %v842 = vadd.f32 %v762, %v792
        %v843 = vadd.f32 %v763, %v792
        %v844 = vadd.f32 %v764, %v792
        %v845 = vadd.f32 %v765, %v792
        %v846 = vadd.f32 %v766, %v792
        %v847 = vadd.f32 %v767, %v792
        %v848 = vadd.f32 %v768, %v792
        %v849 = vadd.f32 %v769, %v792
        %v850 = vadd.f32 %v770, %v792
        %v851 = vadd.f32 %v771, %v792
        %v852 = vadd.f32 %v772, %v792
        %v853 = vadd.f32 %v773, %v792
        %v854 = vadd.f32 %v774, %v792
        %v855 = vadd.f32 %v775, %v792
        %v856 = vadd.f32 %v776, %v792
        %v857 = vadd.f32 %v777, %v792
        %v858 = vadd.f32 %v794, %v810
        %v859 = vadd.f32 %v858, %v826
        %v860 = vadd.f32 %v859, %v842
        %v861 = vrot.slane %v860, 4
        %v862 = vadd.f32 %v860, %v861
        %v863 = vrot.slane %v862, 2
        %v864 = vadd.f32 %v862, %v863
        %v865 = vrot.slane %v864, 1
        %v866 = vadd.f32 %v864, %v865
        %v867 = vadd.f32 %v795, %v811
        %v868 = vadd.f32 %v867, %v827
        %v869 = vadd.f32 %v868, %v843
        %v870 = vrot.slane %v869, 4
        %v871 = vadd.f32 %v869, %v870
        %v872 = vrot.slane %v871, 2
        %v873 = vadd.f32 %v871, %v872
        %v874 = vrot.slane %v873, 1
        %v875 = vadd.f32 %v873, %v874
        %v876 = vadd.f32 %v796, %v812
        %v877 = vadd.f32 %v876, %v828
        %v878 = vadd.f32 %v877, %v844
        %v879 = vrot.slane %v878, 4
        %v880 = vadd.f32 %v878, %v879
        %v881 = vrot.slane %v880, 2
        %v882 = vadd.f32 %v880, %v881
        %v883 = vrot.slane %v882, 1
        %v884 = vadd.f32 %v882, %v883
        %v885 = vadd.f32 %v797, %v813
        %v886 = vadd.f32 %v885, %v829
        %v887 = vadd.f32 %v886, %v845
        %v888 = vrot.slane %v887, 4
        %v889 = vadd.f32 %v887, %v888
        %v890 = vrot.slane %v889, 2
        %v891 = vadd.f32 %v889, %v890
        %v892 = vrot.slane %v891, 1
        %v893 = vadd.f32 %v891, %v892
        %v894 = vadd.f32 %v798, %v814
        %v895 = vadd.f32 %v894, %v830
        %v896 = vadd.f32 %v895, %v846
        %v897 = vrot.slane %v896, 4
        %v898 = vadd.f32 %v896, %v897
        %v899 = vrot.slane %v898, 2
        %v900 = vadd.f32 %v898, %v899
        %v901 = vrot.slane %v900, 1
        %v902 = vadd.f32 %v900, %v901
        %v903 = vadd.f32 %v799, %v815
        %v904 = vadd.f32 %v903, %v831
        %v905 = vadd.f32 %v904, %v847
        %v906 = vrot.slane %v905, 4
        %v907 = vadd.f32 %v905, %v906
        %v908 = vrot.slane %v907, 2
        %v909 = vadd.f32 %v907, %v908
        %v910 = vrot.slane %v909, 1
        %v911 = vadd.f32 %v909, %v910
        %v912 = vadd.f32 %v800, %v816
        %v913 = vadd.f32 %v912, %v832
        %v914 = vadd.f32 %v913, %v848
        %v915 = vrot.slane %v914, 4
        %v916 = vadd.f32 %v914, %v915
        %v917 = vrot.slane %v916, 2
        %v918 = vadd.f32 %v916, %v917
        %v919 = vrot.slane %v918, 1
        %v920 = vadd.f32 %v918, %v919
        %v921 = vadd.f32 %v801, %v817
        %v922 = vadd.f32 %v921, %v833
        %v923 = vadd.f32 %v922, %v849
        %v924 = vrot.slane %v923, 4
        %v925 = vadd.f32 %v923, %v924
        %v926 = vrot.slane %v925, 2
        %v927 = vadd.f32 %v925, %v926
        %v928 = vrot.slane %v927, 1
        %v929 = vadd.f32 %v927, %v928
        %v930 = vadd.f32 %v802, %v818
        %v931 = vadd.f32 %v930, %v834
        %v932 = vadd.f32 %v931, %v850
        %v933 = vrot.slane %v932, 4
        %v934 = vadd.f32 %v932, %v933
        %v935 = vrot.slane %v934, 2
        %v936 = vadd.f32 %v934, %v935
        %v937 = vrot.slane %v936, 1
        %v938 = vadd.f32 %v936, %v937
        %v939 = vadd.f32 %v803, %v819
        %v940 = vadd.f32 %v939, %v835
        %v941 = vadd.f32 %v940, %v851
        %v942 = vrot.slane %v941, 4
        %v943 = vadd.f32 %v941, %v942
        %v944 = vrot.slane %v943, 2
        %v945 = vadd.f32 %v943, %v944
        %v946 = vrot.slane %v945, 1
        %v947 = vadd.f32 %v945, %v946
        %v948 = vadd.f32 %v804, %v820
        %v949 = vadd.f32 %v948, %v836
        %v950 = vadd.f32 %v949, %v852
        %v951 = vrot.slane %v950, 4
        %v952 = vadd.f32 %v950, %v951
        %v953 = vrot.slane %v952, 2
        %v954 = vadd.f32 %v952, %v953
        %v955 = vrot.slane %v954, 1
        %v956 = vadd.f32 %v954, %v955
        %v957 = vadd.f32 %v805, %v821
        %v958 = vadd.f32 %v957, %v837
        %v959 = vadd.f32 %v958, %v853
        %v960 = vrot.slane %v959, 4
        %v961 = vadd.f32 %v959, %v960
        %v962 = vrot.slane %v961, 2
        %v963 = vadd.f32 %v961, %v962
        %v964 = vrot.slane %v963, 1
        %v965 = vadd.f32 %v963, %v964
        %v966 = vadd.f32 %v806, %v822
        %v967 = vadd.f32 %v966, %v838
        %v968 = vadd.f32 %v967, %v854
        %v969 = vrot.slane %v968, 4
        %v970 = vadd.f32 %v968, %v969
        %v971 = vrot.slane %v970, 2
        %v972 = vadd.f32 %v970, %v971
        %v973 = vrot.slane %v972, 1
        %v974 = vadd.f32 %v972, %v973
        %v975 = vadd.f32 %v807, %v823
        %v976 = vadd.f32 %v975, %v839
        %v977 = vadd.f32 %v976, %v855
        %v978 = vrot.slane %v977, 4
        %v979 = vadd.f32 %v977, %v978
        %v980 = vrot.slane %v979, 2
        %v981 = vadd.f32 %v979, %v980
        %v982 = vrot.slane %v981, 1
        %v983 = vadd.f32 %v981, %v982
        %v984 = vadd.f32 %v808, %v824
        %v985 = vadd.f32 %v984, %v840
        %v986 = vadd.f32 %v985, %v856
        %v987 = vrot.slane %v986, 4
        %v988 = vadd.f32 %v986, %v987
        %v989 = vrot.slane %v988, 2
        %v990 = vadd.f32 %v988, %v989
        %v991 = vrot.slane %v990, 1
        %v992 = vadd.f32 %v990, %v991
        %v993 = vadd.f32 %v809, %v825
        %v994 = vadd.f32 %v993, %v841
        %v995 = vadd.f32 %v994, %v857
        %v996 = vrot.slane %v995, 4
        %v997 = vadd.f32 %v995, %v996
        %v998 = vrot.slane %v997, 2
        %v999 = vadd.f32 %v997, %v998
        %v1000 = vrot.slane %v999, 1
        %v1001 = vadd.f32 %v999, %v1000
        %v1002 = vrcp.pop 32.0
        %v1003 = vmul.f32 %v866, %v1002
        %v1004 = vmul.f32 %v875, %v1002
        %v1005 = vmul.f32 %v884, %v1002
        %v1006 = vmul.f32 %v893, %v1002
        %v1007 = vmul.f32 %v902, %v1002
        %v1008 = vmul.f32 %v911, %v1002
        %v1009 = vmul.f32 %v920, %v1002
        %v1010 = vmul.f32 %v929, %v1002
        %v1011 = vmul.f32 %v938, %v1002
        %v1012 = vmul.f32 %v947, %v1002
        %v1013 = vmul.f32 %v956, %v1002
        %v1014 = vmul.f32 %v965, %v1002
        %v1015 = vmul.f32 %v974, %v1002
        %v1016 = vmul.f32 %v983, %v1002
        %v1017 = vmul.f32 %v992, %v1002
        %v1018 = vmul.f32 %v1001, %v1002
        %v1019 = vmul.f32 %v794, %v794
        %v1020 = vmul.f32 %v795, %v795
        %v1021 = vmul.f32 %v796, %v796
        %v1022 = vmul.f32 %v797, %v797
        %v1023 = vmul.f32 %v798, %v798
        %v1024 = vmul.f32 %v799, %v799
        %v1025 = vmul.f32 %v800, %v800
        %v1026 = vmul.f32 %v801, %v801
        %v1027 = vmul.f32 %v802, %v802
        %v1028 = vmul.f32 %v803, %v803
        %v1029 = vmul.f32 %v804, %v804
        %v1030 = vmul.f32 %v805, %v805
        %v1031 = vmul.f32 %v806, %v806
        %v1032 = vmul.f32 %v807, %v807
        %v1033 = vmul.f32 %v808, %v808
        %v1034 = vmul.f32 %v809, %v809
        %v1035 = vmul.f32 %v810, %v810
        %v1036 = vmul.f32 %v811, %v811
        %v1037 = vmul.f32 %v812, %v812
        %v1038 = vmul.f32 %v813, %v813
        %v1039 = vmul.f32 %v814, %v814
        %v1040 = vmul.f32 %v815, %v815
        %v1041 = vmul.f32 %v816, %v816
        %v1042 = vmul.f32 %v817, %v817
        %v1043 = vmul.f32 %v818, %v818
        %v1044 = vmul.f32 %v819, %v819
        %v1045 = vmul.f32 %v820, %v820
        %v1046 = vmul.f32 %v821, %v821
        %v1047 = vmul.f32 %v822, %v822
        %v1048 = vmul.f32 %v823, %v823
        %v1049 = vmul.f32 %v824, %v824
        %v1050 = vmul.f32 %v825, %v825
        %v1051 = vmul.f32 %v826, %v826
        %v1052 = vmul.f32 %v827, %v827
        %v1053 = vmul.f32 %v828, %v828
        %v1054 = vmul.f32 %v829, %v829
        %v1055 = vmul.f32 %v830, %v830
        %v1056 = vmul.f32 %v831, %v831
        %v1057 = vmul.f32 %v832, %v832
        %v1058 = vmul.f32 %v833, %v833
        %v1059 = vmul.f32 %v834, %v834
        %v1060 = vmul.f32 %v835, %v835
        %v1061 = vmul.f32 %v836, %v836
        %v1062 = vmul.f32 %v837, %v837
        %v1063 = vmul.f32 %v838, %v838
        %v1064 = vmul.f32 %v839, %v839
        %v1065 = vmul.f32 %v840, %v840
        %v1066 = vmul.f32 %v841, %v841
        %v1067 = vmul.f32 %v842, %v842
        %v1068 = vmul.f32 %v843, %v843
        %v1069 = vmul.f32 %v844, %v844
        %v1070 = vmul.f32 %v845, %v845
        %v1071 = vmul.f32 %v846, %v846
        %v1072 = vmul.f32 %v847, %v847
        %v1073 = vmul.f32 %v848, %v848
        %v1074 = vmul.f32 %v849, %v849
        %v1075 = vmul.f32 %v850, %v850
        %v1076 = vmul.f32 %v851, %v851
        %v1077 = vmul.f32 %v852, %v852
        %v1078 = vmul.f32 %v853, %v853
        %v1079 = vmul.f32 %v854, %v854
        %v1080 = vmul.f32 %v855, %v855
        %v1081 = vmul.f32 %v856, %v856
        %v1082 = vmul.f32 %v857, %v857
        %v1083 = vadd.f32 %v1019, %v1035
        %v1084 = vadd.f32 %v1083, %v1051
        %v1085 = vadd.f32 %v1084, %v1067
        %v1086 = vrot.slane %v1085, 4
        %v1087 = vadd.f32 %v1085, %v1086
        %v1088 = vrot.slane %v1087, 2
        %v1089 = vadd.f32 %v1087, %v1088
        %v1090 = vrot.slane %v1089, 1
        %v1091 = vadd.f32 %v1089, %v1090
        %v1092 = vadd.f32 %v1020, %v1036
        %v1093 = vadd.f32 %v1092, %v1052
        %v1094 = vadd.f32 %v1093, %v1068
        %v1095 = vrot.slane %v1094, 4
        %v1096 = vadd.f32 %v1094, %v1095
        %v1097 = vrot.slane %v1096, 2
        %v1098 = vadd.f32 %v1096, %v1097
        %v1099 = vrot.slane %v1098, 1
        %v1100 = vadd.f32 %v1098, %v1099
        %v1101 = vadd.f32 %v1021, %v1037
        %v1102 = vadd.f32 %v1101, %v1053
        %v1103 = vadd.f32 %v1102, %v1069
        %v1104 = vrot.slane %v1103, 4
        %v1105 = vadd.f32 %v1103, %v1104
        %v1106 = vrot.slane %v1105, 2
        %v1107 = vadd.f32 %v1105, %v1106
        %v1108 = vrot.slane %v1107, 1
        %v1109 = vadd.f32 %v1107, %v1108
        %v1110 = vadd.f32 %v1022, %v1038
        %v1111 = vadd.f32 %v1110, %v1054
        %v1112 = vadd.f32 %v1111, %v1070
        %v1113 = vrot.slane %v1112, 4
        %v1114 = vadd.f32 %v1112, %v1113
        %v1115 = vrot.slane %v1114, 2
        %v1116 = vadd.f32 %v1114, %v1115
        %v1117 = vrot.slane %v1116, 1
        %v1118 = vadd.f32 %v1116, %v1117
        %v1119 = vadd.f32 %v1023, %v1039
        %v1120 = vadd.f32 %v1119, %v1055
        %v1121 = vadd.f32 %v1120, %v1071
        %v1122 = vrot.slane %v1121, 4
        %v1123 = vadd.f32 %v1121, %v1122
        %v1124 = vrot.slane %v1123, 2
        %v1125 = vadd.f32 %v1123, %v1124
        %v1126 = vrot.slane %v1125, 1
        %v1127 = vadd.f32 %v1125, %v1126
        %v1128 = vadd.f32 %v1024, %v1040
        %v1129 = vadd.f32 %v1128, %v1056
        %v1130 = vadd.f32 %v1129, %v1072
        %v1131 = vrot.slane %v1130, 4
        %v1132 = vadd.f32 %v1130, %v1131
        %v1133 = vrot.slane %v1132, 2
        %v1134 = vadd.f32 %v1132, %v1133
        %v1135 = vrot.slane %v1134, 1
        %v1136 = vadd.f32 %v1134, %v1135
        %v1137 = vadd.f32 %v1025, %v1041
        %v1138 = vadd.f32 %v1137, %v1057
        %v1139 = vadd.f32 %v1138, %v1073
        %v1140 = vrot.slane %v1139, 4
        %v1141 = vadd.f32 %v1139, %v1140
        %v1142 = vrot.slane %v1141, 2
        %v1143 = vadd.f32 %v1141, %v1142
        %v1144 = vrot.slane %v1143, 1
        %v1145 = vadd.f32 %v1143, %v1144
        %v1146 = vadd.f32 %v1026, %v1042
        %v1147 = vadd.f32 %v1146, %v1058
        %v1148 = vadd.f32 %v1147, %v1074
        %v1149 = vrot.slane %v1148, 4
        %v1150 = vadd.f32 %v1148, %v1149
        %v1151 = vrot.slane %v1150, 2
        %v1152 = vadd.f32 %v1150, %v1151
        %v1153 = vrot.slane %v1152, 1
        %v1154 = vadd.f32 %v1152, %v1153
        %v1155 = vadd.f32 %v1027, %v1043
        %v1156 = vadd.f32 %v1155, %v1059
        %v1157 = vadd.f32 %v1156, %v1075
        %v1158 = vrot.slane %v1157, 4
        %v1159 = vadd.f32 %v1157, %v1158
        %v1160 = vrot.slane %v1159, 2
        %v1161 = vadd.f32 %v1159, %v1160
        %v1162 = vrot.slane %v1161, 1
        %v1163 = vadd.f32 %v1161, %v1162
        %v1164 = vadd.f32 %v1028, %v1044
        %v1165 = vadd.f32 %v1164, %v1060
        %v1166 = vadd.f32 %v1165, %v1076
        %v1167 = vrot.slane %v1166, 4
        %v1168 = vadd.f32 %v1166, %v1167
        %v1169 = vrot.slane %v1168, 2
        %v1170 = vadd.f32 %v1168, %v1169
        %v1171 = vrot.slane %v1170, 1
        %v1172 = vadd.f32 %v1170, %v1171
        %v1173 = vadd.f32 %v1029, %v1045
        %v1174 = vadd.f32 %v1173, %v1061
        %v1175 = vadd.f32 %v1174, %v1077
        %v1176 = vrot.slane %v1175, 4
        %v1177 = vadd.f32 %v1175, %v1176
        %v1178 = vrot.slane %v1177, 2
        %v1179 = vadd.f32 %v1177, %v1178
        %v1180 = vrot.slane %v1179, 1
        %v1181 = vadd.f32 %v1179, %v1180
        %v1182 = vadd.f32 %v1030, %v1046
        %v1183 = vadd.f32 %v1182, %v1062
        %v1184 = vadd.f32 %v1183, %v1078
        %v1185 = vrot.slane %v1184, 4
        %v1186 = vadd.f32 %v1184, %v1185
        %v1187 = vrot.slane %v1186, 2
        %v1188 = vadd.f32 %v1186, %v1187
        %v1189 = vrot.slane %v1188, 1
        %v1190 = vadd.f32 %v1188, %v1189
        %v1191 = vadd.f32 %v1031, %v1047
        %v1192 = vadd.f32 %v1191, %v1063
        %v1193 = vadd.f32 %v1192, %v1079
        %v1194 = vrot.slane %v1193, 4
        %v1195 = vadd.f32 %v1193, %v1194
        %v1196 = vrot.slane %v1195, 2
        %v1197 = vadd.f32 %v1195, %v1196
        %v1198 = vrot.slane %v1197, 1
        %v1199 = vadd.f32 %v1197, %v1198
        %v1200 = vadd.f32 %v1032, %v1048
        %v1201 = vadd.f32 %v1200, %v1064
        %v1202 = vadd.f32 %v1201, %v1080
        %v1203 = vrot.slane %v1202, 4
        %v1204 = vadd.f32 %v1202, %v1203
        %v1205 = vrot.slane %v1204, 2
        %v1206 = vadd.f32 %v1204, %v1205
        %v1207 = vrot.slane %v1206, 1
        %v1208 = vadd.f32 %v1206, %v1207
        %v1209 = vadd.f32 %v1033, %v1049
        %v1210 = vadd.f32 %v1209, %v1065
        %v1211 = vadd.f32 %v1210, %v1081
        %v1212 = vrot.slane %v1211, 4
        %v1213 = vadd.f32 %v1211, %v1212
        %v1214 = vrot.slane %v1213, 2
        %v1215 = vadd.f32 %v1213, %v1214
        %v1216 = vrot.slane %v1215, 1
        %v1217 = vadd.f32 %v1215, %v1216
        %v1218 = vadd.f32 %v1034, %v1050
        %v1219 = vadd.f32 %v1218, %v1066
        %v1220 = vadd.f32 %v1219, %v1082
        %v1221 = vrot.slane %v1220, 4
        %v1222 = vadd.f32 %v1220, %v1221
        %v1223 = vrot.slane %v1222, 2
        %v1224 = vadd.f32 %v1222, %v1223
        %v1225 = vrot.slane %v1224, 1
        %v1226 = vadd.f32 %v1224, %v1225
        %v1227 = vmul.f32 %v1091, %v1002
        %v1228 = vmul.f32 %v1100, %v1002
        %v1229 = vmul.f32 %v1109, %v1002
        %v1230 = vmul.f32 %v1118, %v1002
        %v1231 = vmul.f32 %v1127, %v1002
        %v1232 = vmul.f32 %v1136, %v1002
        %v1233 = vmul.f32 %v1145, %v1002
        %v1234 = vmul.f32 %v1154, %v1002
        %v1235 = vmul.f32 %v1163, %v1002
        %v1236 = vmul.f32 %v1172, %v1002
        %v1237 = vmul.f32 %v1181, %v1002
        %v1238 = vmul.f32 %v1190, %v1002
        %v1239 = vmul.f32 %v1199, %v1002
        %v1240 = vmul.f32 %v1208, %v1002
        %v1241 = vmul.f32 %v1217, %v1002
        %v1242 = vmul.f32 %v1226, %v1002
        %v1243 = vmul.f32 %v1003, %v1003
        %v1244 = vmul.f32 %v1004, %v1004
        %v1245 = vmul.f32 %v1005, %v1005
        %v1246 = vmul.f32 %v1006, %v1006
        %v1247 = vmul.f32 %v1007, %v1007
        %v1248 = vmul.f32 %v1008, %v1008
        %v1249 = vmul.f32 %v1009, %v1009
        %v1250 = vmul.f32 %v1010, %v1010
        %v1251 = vmul.f32 %v1011, %v1011
        %v1252 = vmul.f32 %v1012, %v1012
        %v1253 = vmul.f32 %v1013, %v1013
        %v1254 = vmul.f32 %v1014, %v1014
        %v1255 = vmul.f32 %v1015, %v1015
        %v1256 = vmul.f32 %v1016, %v1016
        %v1257 = vmul.f32 %v1017, %v1017
        %v1258 = vmul.f32 %v1018, %v1018
        %v1259 = vsub.f32 %v1227, %v1243
        %v1260 = vsub.f32 %v1228, %v1244
        %v1261 = vsub.f32 %v1229, %v1245
        %v1262 = vsub.f32 %v1230, %v1246
        %v1263 = vsub.f32 %v1231, %v1247
        %v1264 = vsub.f32 %v1232, %v1248
        %v1265 = vsub.f32 %v1233, %v1249
        %v1266 = vsub.f32 %v1234, %v1250
        %v1267 = vsub.f32 %v1235, %v1251
        %v1268 = vsub.f32 %v1236, %v1252
        %v1269 = vsub.f32 %v1237, %v1253
        %v1270 = vsub.f32 %v1238, %v1254
        %v1271 = vsub.f32 %v1239, %v1255
        %v1272 = vsub.f32 %v1240, %v1256
        %v1273 = vsub.f32 %v1241, %v1257
        %v1274 = vsub.f32 %v1242, %v1258
        %v1275 = vmax.f32 %v1259, 0.0
        %v1276 = vmax.f32 %v1260, 0.0
        %v1277 = vmax.f32 %v1261, 0.0
        %v1278 = vmax.f32 %v1262, 0.0
        %v1279 = vmax.f32 %v1263, 0.0
        %v1280 = vmax.f32 %v1264, 0.0
        %v1281 = vmax.f32 %v1265, 0.0
        %v1282 = vmax.f32 %v1266, 0.0
        %v1283 = vmax.f32 %v1267, 0.0
        %v1284 = vmax.f32 %v1268, 0.0
        %v1285 = vmax.f32 %v1269, 0.0
        %v1286 = vmax.f32 %v1270, 0.0
        %v1287 = vmax.f32 %v1271, 0.0
        %v1288 = vmax.f32 %v1272, 0.0
        %v1289 = vmax.f32 %v1273, 0.0
        %v1290 = vmax.f32 %v1274, 0.0
        %v1291 = vsub.f32 %v794, %v1003
        %v1292 = vsub.f32 %v795, %v1004
        %v1293 = vsub.f32 %v796, %v1005
        %v1294 = vsub.f32 %v797, %v1006
        %v1295 = vsub.f32 %v798, %v1007
        %v1296 = vsub.f32 %v799, %v1008
        %v1297 = vsub.f32 %v800, %v1009
        %v1298 = vsub.f32 %v801, %v1010
        %v1299 = vsub.f32 %v802, %v1011
        %v1300 = vsub.f32 %v803, %v1012
        %v1301 = vsub.f32 %v804, %v1013
        %v1302 = vsub.f32 %v805, %v1014
        %v1303 = vsub.f32 %v806, %v1015
        %v1304 = vsub.f32 %v807, %v1016
        %v1305 = vsub.f32 %v808, %v1017
        %v1306 = vsub.f32 %v809, %v1018
        %v1307 = vsub.f32 %v810, %v1003
        %v1308 = vsub.f32 %v811, %v1004
        %v1309 = vsub.f32 %v812, %v1005
        %v1310 = vsub.f32 %v813, %v1006
        %v1311 = vsub.f32 %v814, %v1007
        %v1312 = vsub.f32 %v815, %v1008
        %v1313 = vsub.f32 %v816, %v1009
        %v1314 = vsub.f32 %v817, %v1010
        %v1315 = vsub.f32 %v818, %v1011
        %v1316 = vsub.f32 %v819, %v1012
        %v1317 = vsub.f32 %v820, %v1013
        %v1318 = vsub.f32 %v821, %v1014
        %v1319 = vsub.f32 %v822, %v1015
        %v1320 = vsub.f32 %v823, %v1016
        %v1321 = vsub.f32 %v824, %v1017
        %v1322 = vsub.f32 %v825, %v1018
        %v1323 = vsub.f32 %v826, %v1003
        %v1324 = vsub.f32 %v827, %v1004
        %v1325 = vsub.f32 %v828, %v1005
        %v1326 = vsub.f32 %v829, %v1006
        %v1327 = vsub.f32 %v830, %v1007
        %v1328 = vsub.f32 %v831, %v1008
        %v1329 = vsub.f32 %v832, %v1009
        %v1330 = vsub.f32 %v833, %v1010
        %v1331 = vsub.f32 %v834, %v1011
        %v1332 = vsub.f32 %v835, %v1012
        %v1333 = vsub.f32 %v836, %v1013
        %v1334 = vsub.f32 %v837, %v1014
        %v1335 = vsub.f32 %v838, %v1015
        %v1336 = vsub.f32 %v839, %v1016
        %v1337 = vsub.f32 %v840, %v1017
        %v1338 = vsub.f32 %v841, %v1018
        %v1339 = vsub.f32 %v842, %v1003
        %v1340 = vsub.f32 %v843, %v1004
        %v1341 = vsub.f32 %v844, %v1005
        %v1342 = vsub.f32 %v845, %v1006
        %v1343 = vsub.f32 %v846, %v1007
        %v1344 = vsub.f32 %v847, %v1008
        %v1345 = vsub.f32 %v848, %v1009
        %v1346 = vsub.f32 %v849, %v1010
        %v1347 = vsub.f32 %v850, %v1011
        %v1348 = vsub.f32 %v851, %v1012
        %v1349 = vsub.f32 %v852, %v1013
        %v1350 = vsub.f32 %v853, %v1014
        %v1351 = vsub.f32 %v854, %v1015
        %v1352 = vsub.f32 %v855, %v1016
        %v1353 = vsub.f32 %v856, %v1017
        %v1354 = vsub.f32 %v857, %v1018
        %v1355 = vadd.f32 %v1275, 1e-05
        %v1356 = vadd.f32 %v1276, 1e-05
        %v1357 = vadd.f32 %v1277, 1e-05
        %v1358 = vadd.f32 %v1278, 1e-05
        %v1359 = vadd.f32 %v1279, 1e-05
        %v1360 = vadd.f32 %v1280, 1e-05
        %v1361 = vadd.f32 %v1281, 1e-05
        %v1362 = vadd.f32 %v1282, 1e-05
        %v1363 = vadd.f32 %v1283, 1e-05
        %v1364 = vadd.f32 %v1284, 1e-05
        %v1365 = vadd.f32 %v1285, 1e-05
        %v1366 = vadd.f32 %v1286, 1e-05
        %v1367 = vadd.f32 %v1287, 1e-05
        %v1368 = vadd.f32 %v1288, 1e-05
        %v1369 = vadd.f32 %v1289, 1e-05
        %v1370 = vadd.f32 %v1290, 1e-05
        %v1371 = vrsqrt.pop %v1355
        %v1372 = vrsqrt.pop %v1356
        %v1373 = vrsqrt.pop %v1357
        %v1374 = vrsqrt.pop %v1358
        %v1375 = vrsqrt.pop %v1359
        %v1376 = vrsqrt.pop %v1360
        %v1377 = vrsqrt.pop %v1361
        %v1378 = vrsqrt.pop %v1362
        %v1379 = vrsqrt.pop %v1363
        %v1380 = vrsqrt.pop %v1364
        %v1381 = vrsqrt.pop %v1365
        %v1382 = vrsqrt.pop %v1366
        %v1383 = vrsqrt.pop %v1367
        %v1384 = vrsqrt.pop %v1368
        %v1385 = vrsqrt.pop %v1369
        %v1386 = vrsqrt.pop %v1370
        %v1387 = vmul.f32 %v1291, %v1371
        %v1388 = vmul.f32 %v1292, %v1372
        %v1389 = vmul.f32 %v1293, %v1373
        %v1390 = vmul.f32 %v1294, %v1374
        %v1391 = vmul.f32 %v1295, %v1375
        %v1392 = vmul.f32 %v1296, %v1376
        %v1393 = vmul.f32 %v1297, %v1377
        %v1394 = vmul.f32 %v1298, %v1378
        %v1395 = vmul.f32 %v1299, %v1379
        %v1396 = vmul.f32 %v1300, %v1380
        %v1397 = vmul.f32 %v1301, %v1381
        %v1398 = vmul.f32 %v1302, %v1382
        %v1399 = vmul.f32 %v1303, %v1383
        %v1400 = vmul.f32 %v1304, %v1384
        %v1401 = vmul.f32 %v1305, %v1385
        %v1402 = vmul.f32 %v1306, %v1386
        %v1403 = vmul.f32 %v1307, %v1371
        %v1404 = vmul.f32 %v1308, %v1372
        %v1405 = vmul.f32 %v1309, %v1373
        %v1406 = vmul.f32 %v1310, %v1374
        %v1407 = vmul.f32 %v1311, %v1375
        %v1408 = vmul.f32 %v1312, %v1376
        %v1409 = vmul.f32 %v1313, %v1377
        %v1410 = vmul.f32 %v1314, %v1378
        %v1411 = vmul.f32 %v1315, %v1379
        %v1412 = vmul.f32 %v1316, %v1380
        %v1413 = vmul.f32 %v1317, %v1381
        %v1414 = vmul.f32 %v1318, %v1382
        %v1415 = vmul.f32 %v1319, %v1383
        %v1416 = vmul.f32 %v1320, %v1384
        %v1417 = vmul.f32 %v1321, %v1385
        %v1418 = vmul.f32 %v1322, %v1386
        %v1419 = vmul.f32 %v1323, %v1371
        %v1420 = vmul.f32 %v1324, %v1372
        %v1421 = vmul.f32 %v1325, %v1373
        %v1422 = vmul.f32 %v1326, %v1374
        %v1423 = vmul.f32 %v1327, %v1375
        %v1424 = vmul.f32 %v1328, %v1376
        %v1425 = vmul.f32 %v1329, %v1377
        %v1426 = vmul.f32 %v1330, %v1378
        %v1427 = vmul.f32 %v1331, %v1379
        %v1428 = vmul.f32 %v1332, %v1380
        %v1429 = vmul.f32 %v1333, %v1381
        %v1430 = vmul.f32 %v1334, %v1382
        %v1431 = vmul.f32 %v1335, %v1383
        %v1432 = vmul.f32 %v1336, %v1384
        %v1433 = vmul.f32 %v1337, %v1385
        %v1434 = vmul.f32 %v1338, %v1386
        %v1435 = vmul.f32 %v1339, %v1371
        %v1436 = vmul.f32 %v1340, %v1372
        %v1437 = vmul.f32 %v1341, %v1373
        %v1438 = vmul.f32 %v1342, %v1374
        %v1439 = vmul.f32 %v1343, %v1375
        %v1440 = vmul.f32 %v1344, %v1376
        %v1441 = vmul.f32 %v1345, %v1377
        %v1442 = vmul.f32 %v1346, %v1378
        %v1443 = vmul.f32 %v1347, %v1379
        %v1444 = vmul.f32 %v1348, %v1380
        %v1445 = vmul.f32 %v1349, %v1381
        %v1446 = vmul.f32 %v1350, %v1382
        %v1447 = vmul.f32 %v1351, %v1383
        %v1448 = vmul.f32 %v1352, %v1384
        %v1449 = vmul.f32 %v1353, %v1385
        %v1450 = vmul.f32 %v1354, %v1386
        %1451 = vset.pattern.permute.xlu0 2
        %1452 = vperm.xlu0 %1451, %v608
        %v1453 = vpop.permute.xlu0 %1452
        %1455 = vset.pattern.permute.xlu0 2
        %1456 = vperm.xlu0 %1455, %v609
        %v1457 = vpop.permute.xlu0 %1456
        %1459 = vset.pattern.permute.xlu0 2
        %1460 = vperm.xlu0 %1459, %v610
        %v1461 = vpop.permute.xlu0 %1460
        %1463 = vset.pattern.permute.xlu0 2
        %1464 = vperm.xlu0 %1463, %v611
        %v1465 = vpop.permute.xlu0 %1464
        %v1467 = vmul.f32 %v1453, %v1387
        %v1468 = vmul.f32 %v1453, %v1388
        %v1469 = vmul.f32 %v1453, %v1389
        %v1470 = vmul.f32 %v1453, %v1390
        %v1471 = vmul.f32 %v1453, %v1391
        %v1472 = vmul.f32 %v1453, %v1392
        %v1473 = vmul.f32 %v1453, %v1393
        %v1474 = vmul.f32 %v1453, %v1394
        %v1475 = vmul.f32 %v1453, %v1395
        %v1476 = vmul.f32 %v1453, %v1396
        %v1477 = vmul.f32 %v1453, %v1397
        %v1478 = vmul.f32 %v1453, %v1398
        %v1479 = vmul.f32 %v1453, %v1399
        %v1480 = vmul.f32 %v1453, %v1400
        %v1481 = vmul.f32 %v1453, %v1401
        %v1482 = vmul.f32 %v1453, %v1402
        %v1483 = vmul.f32 %v1457, %v1403
        %v1484 = vmul.f32 %v1457, %v1404
        %v1485 = vmul.f32 %v1457, %v1405
        %v1486 = vmul.f32 %v1457, %v1406
        %v1487 = vmul.f32 %v1457, %v1407
        %v1488 = vmul.f32 %v1457, %v1408
        %v1489 = vmul.f32 %v1457, %v1409
        %v1490 = vmul.f32 %v1457, %v1410
        %v1491 = vmul.f32 %v1457, %v1411
        %v1492 = vmul.f32 %v1457, %v1412
        %v1493 = vmul.f32 %v1457, %v1413
        %v1494 = vmul.f32 %v1457, %v1414
        %v1495 = vmul.f32 %v1457, %v1415
        %v1496 = vmul.f32 %v1457, %v1416
        %v1497 = vmul.f32 %v1457, %v1417
        %v1498 = vmul.f32 %v1457, %v1418
        %v1499 = vmul.f32 %v1461, %v1419
        %v1500 = vmul.f32 %v1461, %v1420
        %v1501 = vmul.f32 %v1461, %v1421
        %v1502 = vmul.f32 %v1461, %v1422
        %v1503 = vmul.f32 %v1461, %v1423
        %v1504 = vmul.f32 %v1461, %v1424
        %v1505 = vmul.f32 %v1461, %v1425
        %v1506 = vmul.f32 %v1461, %v1426
        %v1507 = vmul.f32 %v1461, %v1427
        %v1508 = vmul.f32 %v1461, %v1428
        %v1509 = vmul.f32 %v1461, %v1429
        %v1510 = vmul.f32 %v1461, %v1430
        %v1511 = vmul.f32 %v1461, %v1431
        %v1512 = vmul.f32 %v1461, %v1432
        %v1513 = vmul.f32 %v1461, %v1433
        %v1514 = vmul.f32 %v1461, %v1434
        %v1515 = vmul.f32 %v1465, %v1435
        %v1516 = vmul.f32 %v1465, %v1436
        %v1517 = vmul.f32 %v1465, %v1437
        %v1518 = vmul.f32 %v1465, %v1438
        %v1519 = vmul.f32 %v1465, %v1439
        %v1520 = vmul.f32 %v1465, %v1440
        %v1521 = vmul.f32 %v1465, %v1441
        %v1522 = vmul.f32 %v1465, %v1442
        %v1523 = vmul.f32 %v1465, %v1443
        %v1524 = vmul.f32 %v1465, %v1444
        %v1525 = vmul.f32 %v1465, %v1445
        %v1526 = vmul.f32 %v1465, %v1446
        %v1527 = vmul.f32 %v1465, %v1447
        %v1528 = vmul.f32 %v1465, %v1448
        %v1529 = vmul.f32 %v1465, %v1449
        %v1530 = vmul.f32 %v1465, %v1450
        %1531 = vset.pattern.permute.xlu0 3
        %1532 = vperm.xlu0 %1531, %v608
        %v1533 = vpop.permute.xlu0 %1532
        %1535 = vset.pattern.permute.xlu0 3
        %1536 = vperm.xlu0 %1535, %v609
        %v1537 = vpop.permute.xlu0 %1536
        %1539 = vset.pattern.permute.xlu0 3
        %1540 = vperm.xlu0 %1539, %v610
        %v1541 = vpop.permute.xlu0 %1540
        %1543 = vset.pattern.permute.xlu0 3
        %1544 = vperm.xlu0 %1543, %v611
        %v1545 = vpop.permute.xlu0 %1544
        %v1547 = vadd.f32 %v1467, %v1533
        %v1548 = vadd.f32 %v1468, %v1533
        %v1549 = vadd.f32 %v1469, %v1533
        %v1550 = vadd.f32 %v1470, %v1533
        %v1551 = vadd.f32 %v1471, %v1533
        %v1552 = vadd.f32 %v1472, %v1533
        %v1553 = vadd.f32 %v1473, %v1533
        %v1554 = vadd.f32 %v1474, %v1533
        %v1555 = vadd.f32 %v1475, %v1533
        %v1556 = vadd.f32 %v1476, %v1533
        %v1557 = vadd.f32 %v1477, %v1533
        %v1558 = vadd.f32 %v1478, %v1533
        %v1559 = vadd.f32 %v1479, %v1533
        %v1560 = vadd.f32 %v1480, %v1533
        %v1561 = vadd.f32 %v1481, %v1533
        %v1562 = vadd.f32 %v1482, %v1533
        %v1563 = vadd.f32 %v1483, %v1537
        %v1564 = vadd.f32 %v1484, %v1537
        %v1565 = vadd.f32 %v1485, %v1537
        %v1566 = vadd.f32 %v1486, %v1537
        %v1567 = vadd.f32 %v1487, %v1537
        %v1568 = vadd.f32 %v1488, %v1537
        %v1569 = vadd.f32 %v1489, %v1537
        %v1570 = vadd.f32 %v1490, %v1537
        %v1571 = vadd.f32 %v1491, %v1537
        %v1572 = vadd.f32 %v1492, %v1537
        %v1573 = vadd.f32 %v1493, %v1537
        %v1574 = vadd.f32 %v1494, %v1537
        %v1575 = vadd.f32 %v1495, %v1537
        %v1576 = vadd.f32 %v1496, %v1537
        %v1577 = vadd.f32 %v1497, %v1537
        %v1578 = vadd.f32 %v1498, %v1537
        %v1579 = vadd.f32 %v1499, %v1541
        %v1580 = vadd.f32 %v1500, %v1541
        %v1581 = vadd.f32 %v1501, %v1541
        %v1582 = vadd.f32 %v1502, %v1541
        %v1583 = vadd.f32 %v1503, %v1541
        %v1584 = vadd.f32 %v1504, %v1541
        %v1585 = vadd.f32 %v1505, %v1541
        %v1586 = vadd.f32 %v1506, %v1541
        %v1587 = vadd.f32 %v1507, %v1541
        %v1588 = vadd.f32 %v1508, %v1541
        %v1589 = vadd.f32 %v1509, %v1541
        %v1590 = vadd.f32 %v1510, %v1541
        %v1591 = vadd.f32 %v1511, %v1541
        %v1592 = vadd.f32 %v1512, %v1541
        %v1593 = vadd.f32 %v1513, %v1541
        %v1594 = vadd.f32 %v1514, %v1541
        %v1595 = vadd.f32 %v1515, %v1545
        %v1596 = vadd.f32 %v1516, %v1545
        %v1597 = vadd.f32 %v1517, %v1545
        %v1598 = vadd.f32 %v1518, %v1545
        %v1599 = vadd.f32 %v1519, %v1545
        %v1600 = vadd.f32 %v1520, %v1545
        %v1601 = vadd.f32 %v1521, %v1545
        %v1602 = vadd.f32 %v1522, %v1545
        %v1603 = vadd.f32 %v1523, %v1545
        %v1604 = vadd.f32 %v1524, %v1545
        %v1605 = vadd.f32 %v1525, %v1545
        %v1606 = vadd.f32 %v1526, %v1545
        %v1607 = vadd.f32 %v1527, %v1545
        %v1608 = vadd.f32 %v1528, %v1545
        %v1609 = vadd.f32 %v1529, %v1545
        %v1610 = vadd.f32 %v1530, %v1545
        %v1611 = vmax.f32 %v1547, 0.0
        %v1612 = vmax.f32 %v1548, 0.0
        %v1613 = vmax.f32 %v1549, 0.0
        %v1614 = vmax.f32 %v1550, 0.0
        %v1615 = vmax.f32 %v1551, 0.0
        %v1616 = vmax.f32 %v1552, 0.0
        %v1617 = vmax.f32 %v1553, 0.0
        %v1618 = vmax.f32 %v1554, 0.0
        %v1619 = vmax.f32 %v1555, 0.0
        %v1620 = vmax.f32 %v1556, 0.0
        %v1621 = vmax.f32 %v1557, 0.0
        %v1622 = vmax.f32 %v1558, 0.0
        %v1623 = vmax.f32 %v1559, 0.0
        %v1624 = vmax.f32 %v1560, 0.0
        %v1625 = vmax.f32 %v1561, 0.0
        %v1626 = vmax.f32 %v1562, 0.0
        %v1627 = vmax.f32 %v1563, 0.0
        %v1628 = vmax.f32 %v1564, 0.0
        %v1629 = vmax.f32 %v1565, 0.0
        %v1630 = vmax.f32 %v1566, 0.0
        %v1631 = vmax.f32 %v1567, 0.0
        %v1632 = vmax.f32 %v1568, 0.0
        %v1633 = vmax.f32 %v1569, 0.0
        %v1634 = vmax.f32 %v1570, 0.0
        %v1635 = vmax.f32 %v1571, 0.0
        %v1636 = vmax.f32 %v1572, 0.0
        %v1637 = vmax.f32 %v1573, 0.0
        %v1638 = vmax.f32 %v1574, 0.0
        %v1639 = vmax.f32 %v1575, 0.0
        %v1640 = vmax.f32 %v1576, 0.0
        %v1641 = vmax.f32 %v1577, 0.0
        %v1642 = vmax.f32 %v1578, 0.0
        %v1643 = vmax.f32 %v1579, 0.0
        %v1644 = vmax.f32 %v1580, 0.0
        %v1645 = vmax.f32 %v1581, 0.0
        %v1646 = vmax.f32 %v1582, 0.0
        %v1647 = vmax.f32 %v1583, 0.0
        %v1648 = vmax.f32 %v1584, 0.0
        %v1649 = vmax.f32 %v1585, 0.0
        %v1650 = vmax.f32 %v1586, 0.0
        %v1651 = vmax.f32 %v1587, 0.0
        %v1652 = vmax.f32 %v1588, 0.0
        %v1653 = vmax.f32 %v1589, 0.0
        %v1654 = vmax.f32 %v1590, 0.0
        %v1655 = vmax.f32 %v1591, 0.0
        %v1656 = vmax.f32 %v1592, 0.0
        %v1657 = vmax.f32 %v1593, 0.0
        %v1658 = vmax.f32 %v1594, 0.0
        %v1659 = vmax.f32 %v1595, 0.0
        %v1660 = vmax.f32 %v1596, 0.0
        %v1661 = vmax.f32 %v1597, 0.0
        %v1662 = vmax.f32 %v1598, 0.0
        %v1663 = vmax.f32 %v1599, 0.0
        %v1664 = vmax.f32 %v1600, 0.0
        %v1665 = vmax.f32 %v1601, 0.0
        %v1666 = vmax.f32 %v1602, 0.0
        %v1667 = vmax.f32 %v1603, 0.0
        %v1668 = vmax.f32 %v1604, 0.0
        %v1669 = vmax.f32 %v1605, 0.0
        %v1670 = vmax.f32 %v1606, 0.0
        %v1671 = vmax.f32 %v1607, 0.0
        %v1672 = vmax.f32 %v1608, 0.0
        %v1673 = vmax.f32 %v1609, 0.0
        %v1674 = vmax.f32 %v1610, 0.0
        %1675 = vset.pattern.permute.xlu0 4
        %1676 = vperm.xlu0 %1675, %v608
        %v1677 = vpop.permute.xlu0 %1676
        %1679 = vset.pattern.permute.xlu0 4
        %1680 = vperm.xlu0 %1679, %v609
        %v1681 = vpop.permute.xlu0 %1680
        %1683 = vset.pattern.permute.xlu0 4
        %1684 = vperm.xlu0 %1683, %v610
        %v1685 = vpop.permute.xlu0 %1684
        %1687 = vset.pattern.permute.xlu0 4
        %1688 = vperm.xlu0 %1687, %v611
        %v1689 = vpop.permute.xlu0 %1688
        %v1691 = vmul.f32 %v1677, %v637
        %v1692 = vmul.f32 %v1677, %v641
        %v1693 = vmul.f32 %v1677, %v645
        %v1694 = vmul.f32 %v1677, %v649
        %v1695 = vmul.f32 %v1677, %v653
        %v1696 = vmul.f32 %v1677, %v657
        %v1697 = vmul.f32 %v1677, %v661
        %v1698 = vmul.f32 %v1677, %v665
        %v1699 = vmul.f32 %v1677, %v669
        %v1700 = vmul.f32 %v1677, %v673
        %v1701 = vmul.f32 %v1677, %v677
        %v1702 = vmul.f32 %v1677, %v681
        %v1703 = vmul.f32 %v1677, %v685
        %v1704 = vmul.f32 %v1677, %v689
        %v1705 = vmul.f32 %v1677, %v693
        %v1706 = vmul.f32 %v1677, %v697
        %v1707 = vmul.f32 %v1681, %v637
        %v1708 = vmul.f32 %v1681, %v641
        %v1709 = vmul.f32 %v1681, %v645
        %v1710 = vmul.f32 %v1681, %v649
        %v1711 = vmul.f32 %v1681, %v653
        %v1712 = vmul.f32 %v1681, %v657
        %v1713 = vmul.f32 %v1681, %v661
        %v1714 = vmul.f32 %v1681, %v665
        %v1715 = vmul.f32 %v1681, %v669
        %v1716 = vmul.f32 %v1681, %v673
        %v1717 = vmul.f32 %v1681, %v677
        %v1718 = vmul.f32 %v1681, %v681
        %v1719 = vmul.f32 %v1681, %v685
        %v1720 = vmul.f32 %v1681, %v689
        %v1721 = vmul.f32 %v1681, %v693
        %v1722 = vmul.f32 %v1681, %v697
        %v1723 = vmul.f32 %v1685, %v637
        %v1724 = vmul.f32 %v1685, %v641
        %v1725 = vmul.f32 %v1685, %v645
        %v1726 = vmul.f32 %v1685, %v649
        %v1727 = vmul.f32 %v1685, %v653
        %v1728 = vmul.f32 %v1685, %v657
        %v1729 = vmul.f32 %v1685, %v661
        %v1730 = vmul.f32 %v1685, %v665
        %v1731 = vmul.f32 %v1685, %v669
        %v1732 = vmul.f32 %v1685, %v673
        %v1733 = vmul.f32 %v1685, %v677
        %v1734 = vmul.f32 %v1685, %v681
        %v1735 = vmul.f32 %v1685, %v685
        %v1736 = vmul.f32 %v1685, %v689
        %v1737 = vmul.f32 %v1685, %v693
        %v1738 = vmul.f32 %v1685, %v697
        %v1739 = vmul.f32 %v1689, %v637
        %v1740 = vmul.f32 %v1689, %v641
        %v1741 = vmul.f32 %v1689, %v645
        %v1742 = vmul.f32 %v1689, %v649
        %v1743 = vmul.f32 %v1689, %v653
        %v1744 = vmul.f32 %v1689, %v657
        %v1745 = vmul.f32 %v1689, %v661
        %v1746 = vmul.f32 %v1689, %v665
        %v1747 = vmul.f32 %v1689, %v669
        %v1748 = vmul.f32 %v1689, %v673
        %v1749 = vmul.f32 %v1689, %v677
        %v1750 = vmul.f32 %v1689, %v681
        %v1751 = vmul.f32 %v1689, %v685
        %v1752 = vmul.f32 %v1689, %v689
        %v1753 = vmul.f32 %v1689, %v693
        %v1754 = vmul.f32 %v1689, %v697
        %1755 = vset.pattern.permute.xlu0 5
        %1756 = vperm.xlu0 %1755, %v608
        %v1757 = vpop.permute.xlu0 %1756
        %1759 = vset.pattern.permute.xlu0 5
        %1760 = vperm.xlu0 %1759, %v609
        %v1761 = vpop.permute.xlu0 %1760
        %1763 = vset.pattern.permute.xlu0 5
        %1764 = vperm.xlu0 %1763, %v610
        %v1765 = vpop.permute.xlu0 %1764
        %1767 = vset.pattern.permute.xlu0 5
        %1768 = vperm.xlu0 %1767, %v611
        %v1769 = vpop.permute.xlu0 %1768
        %v1771 = vadd.f32 %v1691, %v1757
        %v1772 = vadd.f32 %v1692, %v1757
        %v1773 = vadd.f32 %v1693, %v1757
        %v1774 = vadd.f32 %v1694, %v1757
        %v1775 = vadd.f32 %v1695, %v1757
        %v1776 = vadd.f32 %v1696, %v1757
        %v1777 = vadd.f32 %v1697, %v1757
        %v1778 = vadd.f32 %v1698, %v1757
        %v1779 = vadd.f32 %v1699, %v1757
        %v1780 = vadd.f32 %v1700, %v1757
        %v1781 = vadd.f32 %v1701, %v1757
        %v1782 = vadd.f32 %v1702, %v1757
        %v1783 = vadd.f32 %v1703, %v1757
        %v1784 = vadd.f32 %v1704, %v1757
        %v1785 = vadd.f32 %v1705, %v1757
        %v1786 = vadd.f32 %v1706, %v1757
        %v1787 = vadd.f32 %v1707, %v1761
        %v1788 = vadd.f32 %v1708, %v1761
        %v1789 = vadd.f32 %v1709, %v1761
        %v1790 = vadd.f32 %v1710, %v1761
        %v1791 = vadd.f32 %v1711, %v1761
        %v1792 = vadd.f32 %v1712, %v1761
        %v1793 = vadd.f32 %v1713, %v1761
        %v1794 = vadd.f32 %v1714, %v1761
        %v1795 = vadd.f32 %v1715, %v1761
        %v1796 = vadd.f32 %v1716, %v1761
        %v1797 = vadd.f32 %v1717, %v1761
        %v1798 = vadd.f32 %v1718, %v1761
        %v1799 = vadd.f32 %v1719, %v1761
        %v1800 = vadd.f32 %v1720, %v1761
        %v1801 = vadd.f32 %v1721, %v1761
        %v1802 = vadd.f32 %v1722, %v1761
        %v1803 = vadd.f32 %v1723, %v1765
        %v1804 = vadd.f32 %v1724, %v1765
        %v1805 = vadd.f32 %v1725, %v1765
        %v1806 = vadd.f32 %v1726, %v1765
        %v1807 = vadd.f32 %v1727, %v1765
        %v1808 = vadd.f32 %v1728, %v1765
        %v1809 = vadd.f32 %v1729, %v1765
        %v1810 = vadd.f32 %v1730, %v1765
        %v1811 = vadd.f32 %v1731, %v1765
        %v1812 = vadd.f32 %v1732, %v1765
        %v1813 = vadd.f32 %v1733, %v1765
        %v1814 = vadd.f32 %v1734, %v1765
        %v1815 = vadd.f32 %v1735, %v1765
        %v1816 = vadd.f32 %v1736, %v1765
        %v1817 = vadd.f32 %v1737, %v1765
        %v1818 = vadd.f32 %v1738, %v1765
        %v1819 = vadd.f32 %v1739, %v1769
        %v1820 = vadd.f32 %v1740, %v1769
        %v1821 = vadd.f32 %v1741, %v1769
        %v1822 = vadd.f32 %v1742, %v1769
        %v1823 = vadd.f32 %v1743, %v1769
        %v1824 = vadd.f32 %v1744, %v1769
        %v1825 = vadd.f32 %v1745, %v1769
        %v1826 = vadd.f32 %v1746, %v1769
        %v1827 = vadd.f32 %v1747, %v1769
        %v1828 = vadd.f32 %v1748, %v1769
        %v1829 = vadd.f32 %v1749, %v1769
        %v1830 = vadd.f32 %v1750, %v1769
        %v1831 = vadd.f32 %v1751, %v1769
        %v1832 = vadd.f32 %v1752, %v1769
        %v1833 = vadd.f32 %v1753, %v1769
        %v1834 = vadd.f32 %v1754, %v1769
        %v1835 = vmax.f32 %v1771, 0.0
        %v1836 = vmax.f32 %v1772, 0.0
        %v1837 = vmax.f32 %v1773, 0.0
        %v1838 = vmax.f32 %v1774, 0.0
        %v1839 = vmax.f32 %v1775, 0.0
        %v1840 = vmax.f32 %v1776, 0.0
        %v1841 = vmax.f32 %v1777, 0.0
        %v1842 = vmax.f32 %v1778, 0.0
        %v1843 = vmax.f32 %v1779, 0.0
        %v1844 = vmax.f32 %v1780, 0.0
        %v1845 = vmax.f32 %v1781, 0.0
        %v1846 = vmax.f32 %v1782, 0.0
        %v1847 = vmax.f32 %v1783, 0.0
        %v1848 = vmax.f32 %v1784, 0.0
        %v1849 = vmax.f32 %v1785, 0.0
        %v1850 = vmax.f32 %v1786, 0.0
        %v1851 = vmax.f32 %v1787, 0.0
        %v1852 = vmax.f32 %v1788, 0.0
        %v1853 = vmax.f32 %v1789, 0.0
        %v1854 = vmax.f32 %v1790, 0.0
        %v1855 = vmax.f32 %v1791, 0.0
        %v1856 = vmax.f32 %v1792, 0.0
        %v1857 = vmax.f32 %v1793, 0.0
        %v1858 = vmax.f32 %v1794, 0.0
        %v1859 = vmax.f32 %v1795, 0.0
        %v1860 = vmax.f32 %v1796, 0.0
        %v1861 = vmax.f32 %v1797, 0.0
        %v1862 = vmax.f32 %v1798, 0.0
        %v1863 = vmax.f32 %v1799, 0.0
        %v1864 = vmax.f32 %v1800, 0.0
        %v1865 = vmax.f32 %v1801, 0.0
        %v1866 = vmax.f32 %v1802, 0.0
        %v1867 = vmax.f32 %v1803, 0.0
        %v1868 = vmax.f32 %v1804, 0.0
        %v1869 = vmax.f32 %v1805, 0.0
        %v1870 = vmax.f32 %v1806, 0.0
        %v1871 = vmax.f32 %v1807, 0.0
        %v1872 = vmax.f32 %v1808, 0.0
        %v1873 = vmax.f32 %v1809, 0.0
        %v1874 = vmax.f32 %v1810, 0.0
        %v1875 = vmax.f32 %v1811, 0.0
        %v1876 = vmax.f32 %v1812, 0.0
        %v1877 = vmax.f32 %v1813, 0.0
        %v1878 = vmax.f32 %v1814, 0.0
        %v1879 = vmax.f32 %v1815, 0.0
        %v1880 = vmax.f32 %v1816, 0.0
        %v1881 = vmax.f32 %v1817, 0.0
        %v1882 = vmax.f32 %v1818, 0.0
        %v1883 = vmax.f32 %v1819, 0.0
        %v1884 = vmax.f32 %v1820, 0.0
        %v1885 = vmax.f32 %v1821, 0.0
        %v1886 = vmax.f32 %v1822, 0.0
        %v1887 = vmax.f32 %v1823, 0.0
        %v1888 = vmax.f32 %v1824, 0.0
        %v1889 = vmax.f32 %v1825, 0.0
        %v1890 = vmax.f32 %v1826, 0.0
        %v1891 = vmax.f32 %v1827, 0.0
        %v1892 = vmax.f32 %v1828, 0.0
        %v1893 = vmax.f32 %v1829, 0.0
        %v1894 = vmax.f32 %v1830, 0.0
        %v1895 = vmax.f32 %v1831, 0.0
        %v1896 = vmax.f32 %v1832, 0.0
        %v1897 = vmax.f32 %v1833, 0.0
        %v1898 = vmax.f32 %v1834, 0.0
        %v1899 = vld [vmem:[%s2] sm:$0xff]
        %v1900 = vld [vmem:[%s2 + $0x8] sm:$0xff]
        %v1901 = vld [vmem:[%s2 + $0x10] sm:$0xff]
        %v1902 = vld [vmem:[%s2 + $0x18] sm:$0xff]
        %vm1903 = vcmask 523264
        %v1905 = vsel %vm1903, %v1899, 0
        %v1908 = vsel %vm1903, %v1900, 0
        %v1911 = vsel %vm1903, %v1901, 0
        %v1914 = vsel %vm1903, %v1902, 0
        %1916 = vmatprep.subr.mxu0 %v1612
        %1917 = vmatpush1.msra.mxu0 %v1611
        %1918 = vmatprep.subr.mxu0 %v1628
        %1919 = vmatpush1.msra.mxu0 %v1627
        %1920 = vmatprep.subr.mxu0 %v1644
        %1921 = vmatpush1.msra.mxu0 %v1643
        %1922 = vmatprep.subr.mxu0 %v1660
        %1923 = vmatpush1.msra.mxu0 %v1659
        %1924 = vmatprep.subr.mxu0 %v1836
        %1925 = vmatpush1.msra.mxu0 %v1835
        %1926 = vmatprep.subr.mxu0 %v1852
        %1927 = vmatpush1.msra.mxu0 %v1851
        %1928 = vmatprep.subr.mxu0 %v1868
        %1929 = vmatpush1.msra.mxu0 %v1867
        %1930 = vmatprep.subr.mxu0 %v1884
        %1931 = vmatpush1.msra.mxu0 %v1883
        %1932 = vmatprep.subr.mxu0 0.0
        %1933 = vmatpush1.msra.mxu0 0.0
        %1934 = vmatprep.subr.mxu0 0.0
        %1935 = vmatpush1.msra.mxu0 0.0
        %1936 = vmatprep.subr.mxu0 0.0
        %1937 = vmatpush1.msra.mxu0 0.0
        %1938 = vmatprep.subr.mxu0 0.0
        %1939 = vmatpush1.msra.mxu0 0.0
        %1940 = vmatprep.subr.mxu0 0.0
        %1941 = vmatpush1.msra.mxu0 0.0
        %1942 = vmatprep.subr.mxu0 0.0
        %1943 = vmatpush1.msra.mxu0 0.0
        %1944 = vmatprep.subr.mxu0 0.0
        %1945 = vmatpush1.msra.mxu0 0.0
        %1946 = vmatprep.subr.mxu0 0.0
        %1947 = vmatpush1.msra.mxu0 0.0
        %1948 = vmatprep.subr.mxu0 0.0
        %1949 = vmatpush1.msra.mxu0 0.0
        %1950 = vmatprep.subr.mxu0 0.0
        %1951 = vmatpush1.msra.mxu0 0.0
        %1952 = vmatprep.subr.mxu0 0.0
        %1953 = vmatpush1.msra.mxu0 0.0
        %1954 = vmatprep.subr.mxu0 0.0
        %1955 = vmatpush1.msra.mxu0 0.0
        %1956 = vmatprep.subr.mxu0 0.0
        %1957 = vmatpush1.msra.mxu0 0.0
        %1958 = vmatprep.subr.mxu0 0.0
        %1959 = vmatpush1.msra.mxu0 0.0
        %1960 = vmatprep.subr.mxu0 0.0
        %1961 = vmatpush1.msra.mxu0 0.0
        %1962 = vmatprep.subr.mxu0 0.0
        %1963 = vmatpush1.msra.mxu0 0.0
        %1964 = vmatprep.subr.mxu0 0.0
        %1965 = vmatpush1.msra.mxu0 0.0
        %1966 = vmatprep.subr.mxu0 0.0
        %1967 = vmatpush1.msra.mxu0 0.0
        %1968 = vmatprep.subr.mxu0 0.0
        %1969 = vmatpush1.msra.mxu0 0.0
        %1970 = vmatprep.subr.mxu0 0.0
        %1971 = vmatpush1.msra.mxu0 0.0
        %1972 = vmatprep.subr.mxu0 0.0
        %1973 = vmatpush1.msra.mxu0 0.0
        %1974 = vmatprep.subr.mxu0 0.0
        %1975 = vmatpush1.msra.mxu0 0.0
        %1976 = vmatprep.subr.mxu0 0.0
        %1977 = vmatpush1.msra.mxu0 0.0
        %1978 = vmatprep.subr.mxu0 0.0
        %1979 = vmatpush1.msra.mxu0 0.0
        %1980 = vmatprep.mubr.f32.mxu0 0.0
        %1981 = vmatmul.mubr.f32.gmra.mrb[0].mxu0 %v1905
        %v1982 = vpop.f32.mrb[0].mxu0
        %v1983 = vadd.f32 0.0, %v1982
        %v1984 = vpop.f32.mrb[0].mxu0
        %v1985 = vadd.f32 0.0, %v1984
        %1986 = vmatprep.mubr.f32.mxu0 0.0
        %1987 = vmatmul.mubr.f32.gmra.mrb[0].mxu0 %v1908
        %v1988 = vpop.f32.mrb[0].mxu0
        %v1989 = vadd.f32 0.0, %v1988
        %v1990 = vpop.f32.mrb[0].mxu0
        %v1991 = vadd.f32 0.0, %v1990
        %1992 = vmatprep.mubr.f32.mxu0 0.0
        %1993 = vmatmul.mubr.f32.gmra.mrb[0].mxu0 %v1911
        %v1994 = vpop.f32.mrb[0].mxu0
        %v1995 = vadd.f32 0.0, %v1994
        %v1996 = vpop.f32.mrb[0].mxu0
        %v1997 = vadd.f32 0.0, %v1996
        %1998 = vmatprep.mubr.f32.mxu0 0.0
        %1999 = vmatmul.mubr.f32.gmra.mrb[0].mxu0 %v1914
        %v2000 = vpop.f32.mrb[0].mxu0
        %v2001 = vadd.f32 0.0, %v2000
        %v2002 = vpop.f32.mrb[0].mxu0
        %v2003 = vadd.f32 0.0, %v2002
        %2004 = vdwg.mxu0
        %2005 = vmatprep.subr.mxu0 %v1614
        %2006 = vmatpush1.msra.mxu0 %v1613
        %2007 = vmatprep.subr.mxu0 %v1630
        %2008 = vmatpush1.msra.mxu0 %v1629
        %2009 = vmatprep.subr.mxu0 %v1646
        %2010 = vmatpush1.msra.mxu0 %v1645
        %2011 = vmatprep.subr.mxu0 %v1662
        %2012 = vmatpush1.msra.mxu0 %v1661
        %2013 = vmatprep.subr.mxu0 %v1838
        %2014 = vmatpush1.msra.mxu0 %v1837
        %2015 = vmatprep.subr.mxu0 %v1854
        %2016 = vmatpush1.msra.mxu0 %v1853
        %2017 = vmatprep.subr.mxu0 %v1870
        %2018 = vmatpush1.msra.mxu0 %v1869
        %2019 = vmatprep.subr.mxu0 %v1886
        %2020 = vmatpush1.msra.mxu0 %v1885
        %2021 = vmatprep.subr.mxu0 0.0
        %2022 = vmatpush1.msra.mxu0 0.0
        %2023 = vmatprep.subr.mxu0 0.0
        %2024 = vmatpush1.msra.mxu0 0.0
        %2025 = vmatprep.subr.mxu0 0.0
        %2026 = vmatpush1.msra.mxu0 0.0
        %2027 = vmatprep.subr.mxu0 0.0
        %2028 = vmatpush1.msra.mxu0 0.0
        %2029 = vmatprep.subr.mxu0 0.0
        %2030 = vmatpush1.msra.mxu0 0.0
        %2031 = vmatprep.subr.mxu0 0.0
        %2032 = vmatpush1.msra.mxu0 0.0
        %2033 = vmatprep.subr.mxu0 0.0
        %2034 = vmatpush1.msra.mxu0 0.0
        %2035 = vmatprep.subr.mxu0 0.0
        %2036 = vmatpush1.msra.mxu0 0.0
        %2037 = vmatprep.subr.mxu0 0.0
        %2038 = vmatpush1.msra.mxu0 0.0
        %2039 = vmatprep.subr.mxu0 0.0
        %2040 = vmatpush1.msra.mxu0 0.0
        %2041 = vmatprep.subr.mxu0 0.0
        %2042 = vmatpush1.msra.mxu0 0.0
        %2043 = vmatprep.subr.mxu0 0.0
        %2044 = vmatpush1.msra.mxu0 0.0
        %2045 = vmatprep.subr.mxu0 0.0
        %2046 = vmatpush1.msra.mxu0 0.0
        %2047 = vmatprep.subr.mxu0 0.0
        %2048 = vmatpush1.msra.mxu0 0.0
        %2049 = vmatprep.subr.mxu0 0.0
        %2050 = vmatpush1.msra.mxu0 0.0
        %2051 = vmatprep.subr.mxu0 0.0
        %2052 = vmatpush1.msra.mxu0 0.0
        %2053 = vmatprep.subr.mxu0 0.0
        %2054 = vmatpush1.msra.mxu0 0.0
        %2055 = vmatprep.subr.mxu0 0.0
        %2056 = vmatpush1.msra.mxu0 0.0
        %2057 = vmatprep.subr.mxu0 0.0
        %2058 = vmatpush1.msra.mxu0 0.0
        %2059 = vmatprep.subr.mxu0 0.0
        %2060 = vmatpush1.msra.mxu0 0.0
        %2061 = vmatprep.subr.mxu0 0.0
        %2062 = vmatpush1.msra.mxu0 0.0
        %2063 = vmatprep.subr.mxu0 0.0
        %2064 = vmatpush1.msra.mxu0 0.0
        %2065 = vmatprep.subr.mxu0 0.0
        %2066 = vmatpush1.msra.mxu0 0.0
        %2067 = vmatprep.subr.mxu0 0.0
        %2068 = vmatpush1.msra.mxu0 0.0
        %2069 = vmatprep.mubr.f32.mxu0 0.0
        %2070 = vmatmul.mubr.f32.gmra.mrb[0].mxu0 %v1905
        %v2071 = vpop.f32.mrb[0].mxu0
        %v2072 = vadd.f32 0.0, %v2071
        %v2073 = vpop.f32.mrb[0].mxu0
        %v2074 = vadd.f32 0.0, %v2073
        %2075 = vmatprep.mubr.f32.mxu0 0.0
        %2076 = vmatmul.mubr.f32.gmra.mrb[0].mxu0 %v1908
        %v2077 = vpop.f32.mrb[0].mxu0
        %v2078 = vadd.f32 0.0, %v2077
        %v2079 = vpop.f32.mrb[0].mxu0
        %v2080 = vadd.f32 0.0, %v2079
        %2081 = vmatprep.mubr.f32.mxu0 0.0
        %2082 = vmatmul.mubr.f32.gmra.mrb[0].mxu0 %v1911
        %v2083 = vpop.f32.mrb[0].mxu0
        %v2084 = vadd.f32 0.0, %v2083
        %v2085 = vpop.f32.mrb[0].mxu0
        %v2086 = vadd.f32 0.0, %v2085
        %2087 = vmatprep.mubr.f32.mxu0 0.0
        %2088 = vmatmul.mubr.f32.gmra.mrb[0].mxu0 %v1914
        %v2089 = vpop.f32.mrb[0].mxu0
        %v2090 = vadd.f32 0.0, %v2089
        %v2091 = vpop.f32.mrb[0].mxu0
        %v2092 = vadd.f32 0.0, %v2091
        %2093 = vdwg.mxu0
        %2094 = vmatprep.subr.mxu0 %v1616
        %2095 = vmatpush1.msra.mxu0 %v1615
        %2096 = vmatprep.subr.mxu0 %v1632
        %2097 = vmatpush1.msra.mxu0 %v1631
        %2098 = vmatprep.subr.mxu0 %v1648
        %2099 = vmatpush1.msra.mxu0 %v1647
        %2100 = vmatprep.subr.mxu0 %v1664
        %2101 = vmatpush1.msra.mxu0 %v1663
        %2102 = vmatprep.subr.mxu0 %v1840
        %2103 = vmatpush1.msra.mxu0 %v1839
        %2104 = vmatprep.subr.mxu0 %v1856
        %2105 = vmatpush1.msra.mxu0 %v1855
        %2106 = vmatprep.subr.mxu0 %v1872
        %2107 = vmatpush1.msra.mxu0 %v1871
        %2108 = vmatprep.subr.mxu0 %v1888
        %2109 = vmatpush1.msra.mxu0 %v1887
        %2110 = vmatprep.subr.mxu0 0.0
        %2111 = vmatpush1.msra.mxu0 0.0
        %2112 = vmatprep.subr.mxu0 0.0
        %2113 = vmatpush1.msra.mxu0 0.0
        %2114 = vmatprep.subr.mxu0 0.0
        %2115 = vmatpush1.msra.mxu0 0.0
        %2116 = vmatprep.subr.mxu0 0.0
        %2117 = vmatpush1.msra.mxu0 0.0
        %2118 = vmatprep.subr.mxu0 0.0
        %2119 = vmatpush1.msra.mxu0 0.0
        %2120 = vmatprep.subr.mxu0 0.0
        %2121 = vmatpush1.msra.mxu0 0.0
        %2122 = vmatprep.subr.mxu0 0.0
        %2123 = vmatpush1.msra.mxu0 0.0
        %2124 = vmatprep.subr.mxu0 0.0
        %2125 = vmatpush1.msra.mxu0 0.0
        %2126 = vmatprep.subr.mxu0 0.0
        %2127 = vmatpush1.msra.mxu0 0.0
        %2128 = vmatprep.subr.mxu0 0.0
        %2129 = vmatpush1.msra.mxu0 0.0
        %2130 = vmatprep.subr.mxu0 0.0
        %2131 = vmatpush1.msra.mxu0 0.0
        %2132 = vmatprep.subr.mxu0 0.0
        %2133 = vmatpush1.msra.mxu0 0.0
        %2134 = vmatprep.subr.mxu0 0.0
        %2135 = vmatpush1.msra.mxu0 0.0
        %2136 = vmatprep.subr.mxu0 0.0
        %2137 = vmatpush1.msra.mxu0 0.0
        %2138 = vmatprep.subr.mxu0 0.0
        %2139 = vmatpush1.msra.mxu0 0.0
        %2140 = vmatprep.subr.mxu0 0.0
        %2141 = vmatpush1.msra.mxu0 0.0
        %2142 = vmatprep.subr.mxu0 0.0
        %2143 = vmatpush1.msra.mxu0 0.0
        %2144 = vmatprep.subr.mxu0 0.0
        %2145 = vmatpush1.msra.mxu0 0.0
        %2146 = vmatprep.subr.mxu0 0.0
        %2147 = vmatpush1.msra.mxu0 0.0
        %2148 = vmatprep.subr.mxu0 0.0
        %2149 = vmatpush1.msra.mxu0 0.0
        %2150 = vmatprep.subr.mxu0 0.0
        %2151 = vmatpush1.msra.mxu0 0.0
        %2152 = vmatprep.subr.mxu0 0.0
        %2153 = vmatpush1.msra.mxu0 0.0
        %2154 = vmatprep.subr.mxu0 0.0
        %2155 = vmatpush1.msra.mxu0 0.0
        %2156 = vmatprep.subr.mxu0 0.0
        %2157 = vmatpush1.msra.mxu0 0.0
        %2158 = vmatprep.mubr.f32.mxu0 0.0
        %2159 = vmatmul.mubr.f32.gmra.mrb[0].mxu0 %v1905
        %v2160 = vpop.f32.mrb[0].mxu0
        %v2161 = vadd.f32 0.0, %v2160
        %v2162 = vpop.f32.mrb[0].mxu0
        %v2163 = vadd.f32 0.0, %v2162
        %2164 = vmatprep.mubr.f32.mxu0 0.0
        %2165 = vmatmul.mubr.f32.gmra.mrb[0].mxu0 %v1908
        %v2166 = vpop.f32.mrb[0].mxu0
        %v2167 = vadd.f32 0.0, %v2166
        %v2168 = vpop.f32.mrb[0].mxu0
        %v2169 = vadd.f32 0.0, %v2168
        %2170 = vmatprep.mubr.f32.mxu0 0.0
        %2171 = vmatmul.mubr.f32.gmra.mrb[0].mxu0 %v1911
        %v2172 = vpop.f32.mrb[0].mxu0
        %v2173 = vadd.f32 0.0, %v2172
        %v2174 = vpop.f32.mrb[0].mxu0
        %v2175 = vadd.f32 0.0, %v2174
        %2176 = vmatprep.mubr.f32.mxu0 0.0
        %2177 = vmatmul.mubr.f32.gmra.mrb[0].mxu0 %v1914
        %v2178 = vpop.f32.mrb[0].mxu0
        %v2179 = vadd.f32 0.0, %v2178
        %v2180 = vpop.f32.mrb[0].mxu0
        %v2181 = vadd.f32 0.0, %v2180
        %2182 = vdwg.mxu0
        %2183 = vmatprep.subr.mxu0 %v1618
        %2184 = vmatpush1.msra.mxu0 %v1617
        %2185 = vmatprep.subr.mxu0 %v1634
        %2186 = vmatpush1.msra.mxu0 %v1633
        %2187 = vmatprep.subr.mxu0 %v1650
        %2188 = vmatpush1.msra.mxu0 %v1649
        %2189 = vmatprep.subr.mxu0 %v1666
        %2190 = vmatpush1.msra.mxu0 %v1665
        %2191 = vmatprep.subr.mxu0 %v1842
        %2192 = vmatpush1.msra.mxu0 %v1841
        %2193 = vmatprep.subr.mxu0 %v1858
        %2194 = vmatpush1.msra.mxu0 %v1857
        %2195 = vmatprep.subr.mxu0 %v1874
        %2196 = vmatpush1.msra.mxu0 %v1873
        %2197 = vmatprep.subr.mxu0 %v1890
        %2198 = vmatpush1.msra.mxu0 %v1889
        %2199 = vmatprep.subr.mxu0 0.0
        %2200 = vmatpush1.msra.mxu0 0.0
        %2201 = vmatprep.subr.mxu0 0.0
        %2202 = vmatpush1.msra.mxu0 0.0
        %2203 = vmatprep.subr.mxu0 0.0
        %2204 = vmatpush1.msra.mxu0 0.0
        %2205 = vmatprep.subr.mxu0 0.0
        %2206 = vmatpush1.msra.mxu0 0.0
        %2207 = vmatprep.subr.mxu0 0.0
        %2208 = vmatpush1.msra.mxu0 0.0
        %2209 = vmatprep.subr.mxu0 0.0
        %2210 = vmatpush1.msra.mxu0 0.0
        %2211 = vmatprep.subr.mxu0 0.0
        %2212 = vmatpush1.msra.mxu0 0.0
        %2213 = vmatprep.subr.mxu0 0.0
        %2214 = vmatpush1.msra.mxu0 0.0
        %2215 = vmatprep.subr.mxu0 0.0
        %2216 = vmatpush1.msra.mxu0 0.0
        %2217 = vmatprep.subr.mxu0 0.0
        %2218 = vmatpush1.msra.mxu0 0.0
        %2219 = vmatprep.subr.mxu0 0.0
        %2220 = vmatpush1.msra.mxu0 0.0
        %2221 = vmatprep.subr.mxu0 0.0
        %2222 = vmatpush1.msra.mxu0 0.0
        %2223 = vmatprep.subr.mxu0 0.0
        %2224 = vmatpush1.msra.mxu0 0.0
        %2225 = vmatprep.subr.mxu0 0.0
        %2226 = vmatpush1.msra.mxu0 0.0
        %2227 = vmatprep.subr.mxu0 0.0
        %2228 = vmatpush1.msra.mxu0 0.0
        %2229 = vmatprep.subr.mxu0 0.0
        %2230 = vmatpush1.msra.mxu0 0.0
        %2231 = vmatprep.subr.mxu0 0.0
        %2232 = vmatpush1.msra.mxu0 0.0
        %2233 = vmatprep.subr.mxu0 0.0
        %2234 = vmatpush1.msra.mxu0 0.0
        %2235 = vmatprep.subr.mxu0 0.0
        %2236 = vmatpush1.msra.mxu0 0.0
        %2237 = vmatprep.subr.mxu0 0.0
        %2238 = vmatpush1.msra.mxu0 0.0
        %2239 = vmatprep.subr.mxu0 0.0
        %2240 = vmatpush1.msra.mxu0 0.0
        %2241 = vmatprep.subr.mxu0 0.0
        %2242 = vmatpush1.msra.mxu0 0.0
        %2243 = vmatprep.subr.mxu0 0.0
        %2244 = vmatpush1.msra.mxu0 0.0
        %2245 = vmatprep.subr.mxu0 0.0
        %2246 = vmatpush1.msra.mxu0 0.0
        %2247 = vmatprep.mubr.f32.mxu0 0.0
        %2248 = vmatmul.mubr.f32.gmra.mrb[0].mxu0 %v1905
        %v2249 = vpop.f32.mrb[0].mxu0
        %v2250 = vadd.f32 0.0, %v2249
        %v2251 = vpop.f32.mrb[0].mxu0
        %v2252 = vadd.f32 0.0, %v2251
        %2253 = vmatprep.mubr.f32.mxu0 0.0
        %2254 = vmatmul.mubr.f32.gmra.mrb[0].mxu0 %v1908
        %v2255 = vpop.f32.mrb[0].mxu0
        %v2256 = vadd.f32 0.0, %v2255
        %v2257 = vpop.f32.mrb[0].mxu0
        %v2258 = vadd.f32 0.0, %v2257
        %2259 = vmatprep.mubr.f32.mxu0 0.0
        %2260 = vmatmul.mubr.f32.gmra.mrb[0].mxu0 %v1911
        %v2261 = vpop.f32.mrb[0].mxu0
        %v2262 = vadd.f32 0.0, %v2261
        %v2263 = vpop.f32.mrb[0].mxu0
        %v2264 = vadd.f32 0.0, %v2263
        %2265 = vmatprep.mubr.f32.mxu0 0.0
        %2266 = vmatmul.mubr.f32.gmra.mrb[0].mxu0 %v1914
        %v2267 = vpop.f32.mrb[0].mxu0
        %v2268 = vadd.f32 0.0, %v2267
        %v2269 = vpop.f32.mrb[0].mxu0
        %v2270 = vadd.f32 0.0, %v2269
        %2271 = vdwg.mxu0
        %2272 = vmatprep.subr.mxu0 %v1620
        %2273 = vmatpush1.msra.mxu0 %v1619
        %2274 = vmatprep.subr.mxu0 %v1636
        %2275 = vmatpush1.msra.mxu0 %v1635
        %2276 = vmatprep.subr.mxu0 %v1652
        %2277 = vmatpush1.msra.mxu0 %v1651
        %2278 = vmatprep.subr.mxu0 %v1668
        %2279 = vmatpush1.msra.mxu0 %v1667
        %2280 = vmatprep.subr.mxu0 %v1844
        %2281 = vmatpush1.msra.mxu0 %v1843
        %2282 = vmatprep.subr.mxu0 %v1860
        %2283 = vmatpush1.msra.mxu0 %v1859
        %2284 = vmatprep.subr.mxu0 %v1876
        %2285 = vmatpush1.msra.mxu0 %v1875
        %2286 = vmatprep.subr.mxu0 %v1892
        %2287 = vmatpush1.msra.mxu0 %v1891
        %2288 = vmatprep.subr.mxu0 0.0
        %2289 = vmatpush1.msra.mxu0 0.0
        %2290 = vmatprep.subr.mxu0 0.0
        %2291 = vmatpush1.msra.mxu0 0.0
        %2292 = vmatprep.subr.mxu0 0.0
        %2293 = vmatpush1.msra.mxu0 0.0
        %2294 = vmatprep.subr.mxu0 0.0
        %2295 = vmatpush1.msra.mxu0 0.0
        %2296 = vmatprep.subr.mxu0 0.0
        %2297 = vmatpush1.msra.mxu0 0.0
        %2298 = vmatprep.subr.mxu0 0.0
        %2299 = vmatpush1.msra.mxu0 0.0
        %2300 = vmatprep.subr.mxu0 0.0
        %2301 = vmatpush1.msra.mxu0 0.0
        %2302 = vmatprep.subr.mxu0 0.0
        %2303 = vmatpush1.msra.mxu0 0.0
        %2304 = vmatprep.subr.mxu0 0.0
        %2305 = vmatpush1.msra.mxu0 0.0
        %2306 = vmatprep.subr.mxu0 0.0
        %2307 = vmatpush1.msra.mxu0 0.0
        %2308 = vmatprep.subr.mxu0 0.0
        %2309 = vmatpush1.msra.mxu0 0.0
        %2310 = vmatprep.subr.mxu0 0.0
        %2311 = vmatpush1.msra.mxu0 0.0
        %2312 = vmatprep.subr.mxu0 0.0
        %2313 = vmatpush1.msra.mxu0 0.0
        %2314 = vmatprep.subr.mxu0 0.0
        %2315 = vmatpush1.msra.mxu0 0.0
        %2316 = vmatprep.subr.mxu0 0.0
        %2317 = vmatpush1.msra.mxu0 0.0
        %2318 = vmatprep.subr.mxu0 0.0
        %2319 = vmatpush1.msra.mxu0 0.0
        %2320 = vmatprep.subr.mxu0 0.0
        %2321 = vmatpush1.msra.mxu0 0.0
        %2322 = vmatprep.subr.mxu0 0.0
        %2323 = vmatpush1.msra.mxu0 0.0
        %2324 = vmatprep.subr.mxu0 0.0
        %2325 = vmatpush1.msra.mxu0 0.0
        %2326 = vmatprep.subr.mxu0 0.0
        %2327 = vmatpush1.msra.mxu0 0.0
        %2328 = vmatprep.subr.mxu0 0.0
        %2329 = vmatpush1.msra.mxu0 0.0
        %2330 = vmatprep.subr.mxu0 0.0
        %2331 = vmatpush1.msra.mxu0 0.0
        %2332 = vmatprep.subr.mxu0 0.0
        %2333 = vmatpush1.msra.mxu0 0.0
        %2334 = vmatprep.subr.mxu0 0.0
        %2335 = vmatpush1.msra.mxu0 0.0
        %2336 = vmatprep.mubr.f32.mxu0 0.0
        %2337 = vmatmul.mubr.f32.gmra.mrb[0].mxu0 %v1905
        %v2338 = vpop.f32.mrb[0].mxu0
        %v2339 = vadd.f32 0.0, %v2338
        %v2340 = vpop.f32.mrb[0].mxu0
        %v2341 = vadd.f32 0.0, %v2340
        %2342 = vmatprep.mubr.f32.mxu0 0.0
        %2343 = vmatmul.mubr.f32.gmra.mrb[0].mxu0 %v1908
        %v2344 = vpop.f32.mrb[0].mxu0
        %v2345 = vadd.f32 0.0, %v2344
        %v2346 = vpop.f32.mrb[0].mxu0
        %v2347 = vadd.f32 0.0, %v2346
        %2348 = vmatprep.mubr.f32.mxu0 0.0
        %2349 = vmatmul.mubr.f32.gmra.mrb[0].mxu0 %v1911
        %v2350 = vpop.f32.mrb[0].mxu0
        %v2351 = vadd.f32 0.0, %v2350
        %v2352 = vpop.f32.mrb[0].mxu0
        %v2353 = vadd.f32 0.0, %v2352
        %2354 = vmatprep.mubr.f32.mxu0 0.0
        %2355 = vmatmul.mubr.f32.gmra.mrb[0].mxu0 %v1914
        %v2356 = vpop.f32.mrb[0].mxu0
        %v2357 = vadd.f32 0.0, %v2356
        %v2358 = vpop.f32.mrb[0].mxu0
        %v2359 = vadd.f32 0.0, %v2358
        %2360 = vdwg.mxu0
        %2361 = vmatprep.subr.mxu0 %v1622
        %2362 = vmatpush1.msra.mxu0 %v1621
        %2363 = vmatprep.subr.mxu0 %v1638
        %2364 = vmatpush1.msra.mxu0 %v1637
        %2365 = vmatprep.subr.mxu0 %v1654
        %2366 = vmatpush1.msra.mxu0 %v1653
        %2367 = vmatprep.subr.mxu0 %v1670
        %2368 = vmatpush1.msra.mxu0 %v1669
        %2369 = vmatprep.subr.mxu0 %v1846
        %2370 = vmatpush1.msra.mxu0 %v1845
        %2371 = vmatprep.subr.mxu0 %v1862
        %2372 = vmatpush1.msra.mxu0 %v1861
        %2373 = vmatprep.subr.mxu0 %v1878
        %2374 = vmatpush1.msra.mxu0 %v1877
        %2375 = vmatprep.subr.mxu0 %v1894
        %2376 = vmatpush1.msra.mxu0 %v1893
        %2377 = vmatprep.subr.mxu0 0.0
        %2378 = vmatpush1.msra.mxu0 0.0
        %2379 = vmatprep.subr.mxu0 0.0
        %2380 = vmatpush1.msra.mxu0 0.0
        %2381 = vmatprep.subr.mxu0 0.0
        %2382 = vmatpush1.msra.mxu0 0.0
        %2383 = vmatprep.subr.mxu0 0.0
        %2384 = vmatpush1.msra.mxu0 0.0
        %2385 = vmatprep.subr.mxu0 0.0
        %2386 = vmatpush1.msra.mxu0 0.0
        %2387 = vmatprep.subr.mxu0 0.0
        %2388 = vmatpush1.msra.mxu0 0.0
        %2389 = vmatprep.subr.mxu0 0.0
        %2390 = vmatpush1.msra.mxu0 0.0
        %2391 = vmatprep.subr.mxu0 0.0
        %2392 = vmatpush1.msra.mxu0 0.0
        %2393 = vmatprep.subr.mxu0 0.0
        %2394 = vmatpush1.msra.mxu0 0.0
        %2395 = vmatprep.subr.mxu0 0.0
        %2396 = vmatpush1.msra.mxu0 0.0
        %2397 = vmatprep.subr.mxu0 0.0
        %2398 = vmatpush1.msra.mxu0 0.0
        %2399 = vmatprep.subr.mxu0 0.0
        %2400 = vmatpush1.msra.mxu0 0.0
        %2401 = vmatprep.subr.mxu0 0.0
        %2402 = vmatpush1.msra.mxu0 0.0
        %2403 = vmatprep.subr.mxu0 0.0
        %2404 = vmatpush1.msra.mxu0 0.0
        %2405 = vmatprep.subr.mxu0 0.0
        %2406 = vmatpush1.msra.mxu0 0.0
        %2407 = vmatprep.subr.mxu0 0.0
        %2408 = vmatpush1.msra.mxu0 0.0
        %2409 = vmatprep.subr.mxu0 0.0
        %2410 = vmatpush1.msra.mxu0 0.0
        %2411 = vmatprep.subr.mxu0 0.0
        %2412 = vmatpush1.msra.mxu0 0.0
        %2413 = vmatprep.subr.mxu0 0.0
        %2414 = vmatpush1.msra.mxu0 0.0
        %2415 = vmatprep.subr.mxu0 0.0
        %2416 = vmatpush1.msra.mxu0 0.0
        %2417 = vmatprep.subr.mxu0 0.0
        %2418 = vmatpush1.msra.mxu0 0.0
        %2419 = vmatprep.subr.mxu0 0.0
        %2420 = vmatpush1.msra.mxu0 0.0
        %2421 = vmatprep.subr.mxu0 0.0
        %2422 = vmatpush1.msra.mxu0 0.0
        %2423 = vmatprep.subr.mxu0 0.0
        %2424 = vmatpush1.msra.mxu0 0.0
        %2425 = vmatprep.mubr.f32.mxu0 0.0
        %2426 = vmatmul.mubr.f32.gmra.mrb[0].mxu0 %v1905
        %v2427 = vpop.f32.mrb[0].mxu0
        %v2428 = vadd.f32 0.0, %v2427
        %v2429 = vpop.f32.mrb[0].mxu0
        %v2430 = vadd.f32 0.0, %v2429
        %2431 = vmatprep.mubr.f32.mxu0 0.0
        %2432 = vmatmul.mubr.f32.gmra.mrb[0].mxu0 %v1908
        %v2433 = vpop.f32.mrb[0].mxu0
        %v2434 = vadd.f32 0.0, %v2433
        %v2435 = vpop.f32.mrb[0].mxu0
        %v2436 = vadd.f32 0.0, %v2435
        %2437 = vmatprep.mubr.f32.mxu0 0.0
        %2438 = vmatmul.mubr.f32.gmra.mrb[0].mxu0 %v1911
        %v2439 = vpop.f32.mrb[0].mxu0
        %v2440 = vadd.f32 0.0, %v2439
        %v2441 = vpop.f32.mrb[0].mxu0
        %v2442 = vadd.f32 0.0, %v2441
        %2443 = vmatprep.mubr.f32.mxu0 0.0
        %2444 = vmatmul.mubr.f32.gmra.mrb[0].mxu0 %v1914
        %v2445 = vpop.f32.mrb[0].mxu0
        %v2446 = vadd.f32 0.0, %v2445
        %v2447 = vpop.f32.mrb[0].mxu0
        %v2448 = vadd.f32 0.0, %v2447
        %2449 = vdwg.mxu0
        %2450 = vmatprep.subr.mxu0 %v1624
        %2451 = vmatpush1.msra.mxu0 %v1623
        %2452 = vmatprep.subr.mxu0 %v1640
        %2453 = vmatpush1.msra.mxu0 %v1639
        %2454 = vmatprep.subr.mxu0 %v1656
        %2455 = vmatpush1.msra.mxu0 %v1655
        %2456 = vmatprep.subr.mxu0 %v1672
        %2457 = vmatpush1.msra.mxu0 %v1671
        %2458 = vmatprep.subr.mxu0 %v1848
        %2459 = vmatpush1.msra.mxu0 %v1847
        %2460 = vmatprep.subr.mxu0 %v1864
        %2461 = vmatpush1.msra.mxu0 %v1863
        %2462 = vmatprep.subr.mxu0 %v1880
        %2463 = vmatpush1.msra.mxu0 %v1879
        %2464 = vmatprep.subr.mxu0 %v1896
        %2465 = vmatpush1.msra.mxu0 %v1895
        %2466 = vmatprep.subr.mxu0 0.0
        %2467 = vmatpush1.msra.mxu0 0.0
        %2468 = vmatprep.subr.mxu0 0.0
        %2469 = vmatpush1.msra.mxu0 0.0
        %2470 = vmatprep.subr.mxu0 0.0
        %2471 = vmatpush1.msra.mxu0 0.0
        %2472 = vmatprep.subr.mxu0 0.0
        %2473 = vmatpush1.msra.mxu0 0.0
        %2474 = vmatprep.subr.mxu0 0.0
        %2475 = vmatpush1.msra.mxu0 0.0
        %2476 = vmatprep.subr.mxu0 0.0
        %2477 = vmatpush1.msra.mxu0 0.0
        %2478 = vmatprep.subr.mxu0 0.0
        %2479 = vmatpush1.msra.mxu0 0.0
        %2480 = vmatprep.subr.mxu0 0.0
        %2481 = vmatpush1.msra.mxu0 0.0
        %2482 = vmatprep.subr.mxu0 0.0
        %2483 = vmatpush1.msra.mxu0 0.0
        %2484 = vmatprep.subr.mxu0 0.0
        %2485 = vmatpush1.msra.mxu0 0.0
        %2486 = vmatprep.subr.mxu0 0.0
        %2487 = vmatpush1.msra.mxu0 0.0
        %2488 = vmatprep.subr.mxu0 0.0
        %2489 = vmatpush1.msra.mxu0 0.0
        %2490 = vmatprep.subr.mxu0 0.0
        %2491 = vmatpush1.msra.mxu0 0.0
        %2492 = vmatprep.subr.mxu0 0.0
        %2493 = vmatpush1.msra.mxu0 0.0
        %2494 = vmatprep.subr.mxu0 0.0
        %2495 = vmatpush1.msra.mxu0 0.0
        %2496 = vmatprep.subr.mxu0 0.0
        %2497 = vmatpush1.msra.mxu0 0.0
        %2498 = vmatprep.subr.mxu0 0.0
        %2499 = vmatpush1.msra.mxu0 0.0
        %2500 = vmatprep.subr.mxu0 0.0
        %2501 = vmatpush1.msra.mxu0 0.0
        %2502 = vmatprep.subr.mxu0 0.0
        %2503 = vmatpush1.msra.mxu0 0.0
        %2504 = vmatprep.subr.mxu0 0.0
        %2505 = vmatpush1.msra.mxu0 0.0
        %2506 = vmatprep.subr.mxu0 0.0
        %2507 = vmatpush1.msra.mxu0 0.0
        %2508 = vmatprep.subr.mxu0 0.0
        %2509 = vmatpush1.msra.mxu0 0.0
        %2510 = vmatprep.subr.mxu0 0.0
        %2511 = vmatpush1.msra.mxu0 0.0
        %2512 = vmatprep.subr.mxu0 0.0
        %2513 = vmatpush1.msra.mxu0 0.0
        %2514 = vmatprep.mubr.f32.mxu0 0.0
        %2515 = vmatmul.mubr.f32.gmra.mrb[0].mxu0 %v1905
        %v2516 = vpop.f32.mrb[0].mxu0
        %v2517 = vadd.f32 0.0, %v2516
        %v2518 = vpop.f32.mrb[0].mxu0
        %v2519 = vadd.f32 0.0, %v2518
        %2520 = vmatprep.mubr.f32.mxu0 0.0
        %2521 = vmatmul.mubr.f32.gmra.mrb[0].mxu0 %v1908
        %v2522 = vpop.f32.mrb[0].mxu0
        %v2523 = vadd.f32 0.0, %v2522
        %v2524 = vpop.f32.mrb[0].mxu0
        %v2525 = vadd.f32 0.0, %v2524
        %2526 = vmatprep.mubr.f32.mxu0 0.0
        %2527 = vmatmul.mubr.f32.gmra.mrb[0].mxu0 %v1911
        %v2528 = vpop.f32.mrb[0].mxu0
        %v2529 = vadd.f32 0.0, %v2528
        %v2530 = vpop.f32.mrb[0].mxu0
        %v2531 = vadd.f32 0.0, %v2530
        %2532 = vmatprep.mubr.f32.mxu0 0.0
        %2533 = vmatmul.mubr.f32.gmra.mrb[0].mxu0 %v1914
        %v2534 = vpop.f32.mrb[0].mxu0
        %v2535 = vadd.f32 0.0, %v2534
        %v2536 = vpop.f32.mrb[0].mxu0
        %v2537 = vadd.f32 0.0, %v2536
        %2538 = vdwg.mxu0
        %2539 = vmatprep.subr.mxu0 %v1626
        %2540 = vmatpush1.msra.mxu0 %v1625
        %2541 = vmatprep.subr.mxu0 %v1642
        %2542 = vmatpush1.msra.mxu0 %v1641
        %2543 = vmatprep.subr.mxu0 %v1658
        %2544 = vmatpush1.msra.mxu0 %v1657
        %2545 = vmatprep.subr.mxu0 %v1674
        %2546 = vmatpush1.msra.mxu0 %v1673
        %2547 = vmatprep.subr.mxu0 %v1850
        %2548 = vmatpush1.msra.mxu0 %v1849
        %2549 = vmatprep.subr.mxu0 %v1866
        %2550 = vmatpush1.msra.mxu0 %v1865
        %2551 = vmatprep.subr.mxu0 %v1882
        %2552 = vmatpush1.msra.mxu0 %v1881
        %2553 = vmatprep.subr.mxu0 %v1898
        %2554 = vmatpush1.msra.mxu0 %v1897
        %2555 = vmatprep.subr.mxu0 0.0
        %2556 = vmatpush1.msra.mxu0 0.0
        %2557 = vmatprep.subr.mxu0 0.0
        %2558 = vmatpush1.msra.mxu0 0.0
        %2559 = vmatprep.subr.mxu0 0.0
        %2560 = vmatpush1.msra.mxu0 0.0
        %2561 = vmatprep.subr.mxu0 0.0
        %2562 = vmatpush1.msra.mxu0 0.0
        %2563 = vmatprep.subr.mxu0 0.0
        %2564 = vmatpush1.msra.mxu0 0.0
        %2565 = vmatprep.subr.mxu0 0.0
        %2566 = vmatpush1.msra.mxu0 0.0
        %2567 = vmatprep.subr.mxu0 0.0
        %2568 = vmatpush1.msra.mxu0 0.0
        %2569 = vmatprep.subr.mxu0 0.0
        %2570 = vmatpush1.msra.mxu0 0.0
        %2571 = vmatprep.subr.mxu0 0.0
        %2572 = vmatpush1.msra.mxu0 0.0
        %2573 = vmatprep.subr.mxu0 0.0
        %2574 = vmatpush1.msra.mxu0 0.0
        %2575 = vmatprep.subr.mxu0 0.0
        %2576 = vmatpush1.msra.mxu0 0.0
        %2577 = vmatprep.subr.mxu0 0.0
        %2578 = vmatpush1.msra.mxu0 0.0
        %2579 = vmatprep.subr.mxu0 0.0
        %2580 = vmatpush1.msra.mxu0 0.0
        %2581 = vmatprep.subr.mxu0 0.0
        %2582 = vmatpush1.msra.mxu0 0.0
        %2583 = vmatprep.subr.mxu0 0.0
        %2584 = vmatpush1.msra.mxu0 0.0
        %2585 = vmatprep.subr.mxu0 0.0
        %2586 = vmatpush1.msra.mxu0 0.0
        %2587 = vmatprep.subr.mxu0 0.0
        %2588 = vmatpush1.msra.mxu0 0.0
        %2589 = vmatprep.subr.mxu0 0.0
        %2590 = vmatpush1.msra.mxu0 0.0
        %2591 = vmatprep.subr.mxu0 0.0
        %2592 = vmatpush1.msra.mxu0 0.0
        %2593 = vmatprep.subr.mxu0 0.0
        %2594 = vmatpush1.msra.mxu0 0.0
        %2595 = vmatprep.subr.mxu0 0.0
        %2596 = vmatpush1.msra.mxu0 0.0
        %2597 = vmatprep.subr.mxu0 0.0
        %2598 = vmatpush1.msra.mxu0 0.0
        %2599 = vmatprep.subr.mxu0 0.0
        %2600 = vmatpush1.msra.mxu0 0.0
        %2601 = vmatprep.subr.mxu0 0.0
        %2602 = vmatpush1.msra.mxu0 0.0
        %2603 = vmatprep.mubr.f32.mxu0 0.0
        %2604 = vmatmul.mubr.f32.gmra.mrb[0].mxu0 %v1905
        %v2605 = vpop.f32.mrb[0].mxu0
        %v2606 = vadd.f32 0.0, %v2605
        %v2607 = vpop.f32.mrb[0].mxu0
        %v2608 = vadd.f32 0.0, %v2607
        %2609 = vmatprep.mubr.f32.mxu0 0.0
        %2610 = vmatmul.mubr.f32.gmra.mrb[0].mxu0 %v1908
        %v2611 = vpop.f32.mrb[0].mxu0
        %v2612 = vadd.f32 0.0, %v2611
        %v2613 = vpop.f32.mrb[0].mxu0
        %v2614 = vadd.f32 0.0, %v2613
        %2615 = vmatprep.mubr.f32.mxu0 0.0
        %2616 = vmatmul.mubr.f32.gmra.mrb[0].mxu0 %v1911
        %v2617 = vpop.f32.mrb[0].mxu0
        %v2618 = vadd.f32 0.0, %v2617
        %v2619 = vpop.f32.mrb[0].mxu0
        %v2620 = vadd.f32 0.0, %v2619
        %2621 = vmatprep.mubr.f32.mxu0 0.0
        %2622 = vmatmul.mubr.f32.gmra.mrb[0].mxu0 %v1914
        %v2623 = vpop.f32.mrb[0].mxu0
        %v2624 = vadd.f32 0.0, %v2623
        %v2625 = vpop.f32.mrb[0].mxu0
        %v2626 = vadd.f32 0.0, %v2625
        %2627 = vdwg.mxu0
        %2628 = vset.pattern.permute.xlu0 6
        %2629 = vperm.xlu0 %2628, %v608
        %v2630 = vpop.permute.xlu0 %2629
        %2632 = vset.pattern.permute.xlu0 6
        %2633 = vperm.xlu0 %2632, %v609
        %v2634 = vpop.permute.xlu0 %2633
        %v2636 = vadd.f32 %v1983, %v2630
        %v2637 = vadd.f32 %v1985, %v2630
        %v2638 = vadd.f32 %v2072, %v2630
        %v2639 = vadd.f32 %v2074, %v2630
        %v2640 = vadd.f32 %v2161, %v2630
        %v2641 = vadd.f32 %v2163, %v2630
        %v2642 = vadd.f32 %v2250, %v2630
        %v2643 = vadd.f32 %v2252, %v2630
        %v2644 = vadd.f32 %v2339, %v2630
        %v2645 = vadd.f32 %v2341, %v2630
        %v2646 = vadd.f32 %v2428, %v2630
        %v2647 = vadd.f32 %v2430, %v2630
        %v2648 = vadd.f32 %v2517, %v2630
        %v2649 = vadd.f32 %v2519, %v2630
        %v2650 = vadd.f32 %v2606, %v2630
        %v2651 = vadd.f32 %v2608, %v2630
        %v2652 = vadd.f32 %v1989, %v2634
        %v2653 = vadd.f32 %v1991, %v2634
        %v2654 = vadd.f32 %v2078, %v2634
        %v2655 = vadd.f32 %v2080, %v2634
        %v2656 = vadd.f32 %v2167, %v2634
        %v2657 = vadd.f32 %v2169, %v2634
        %v2658 = vadd.f32 %v2256, %v2634
        %v2659 = vadd.f32 %v2258, %v2634
        %v2660 = vadd.f32 %v2345, %v2634
        %v2661 = vadd.f32 %v2347, %v2634
        %v2662 = vadd.f32 %v2434, %v2634
        %v2663 = vadd.f32 %v2436, %v2634
        %v2664 = vadd.f32 %v2523, %v2634
        %v2665 = vadd.f32 %v2525, %v2634
        %v2666 = vadd.f32 %v2612, %v2634
        %v2667 = vadd.f32 %v2614, %v2634
        %v2668 = vadd.f32 %v2636, %v2652
        %v2669 = vrot.slane %v2668, 4
        %v2670 = vadd.f32 %v2668, %v2669
        %v2671 = vrot.slane %v2670, 2
        %v2672 = vadd.f32 %v2670, %v2671
        %v2673 = vrot.slane %v2672, 1
        %v2674 = vadd.f32 %v2672, %v2673
        %v2675 = vadd.f32 %v2637, %v2653
        %v2676 = vrot.slane %v2675, 4
        %v2677 = vadd.f32 %v2675, %v2676
        %v2678 = vrot.slane %v2677, 2
        %v2679 = vadd.f32 %v2677, %v2678
        %v2680 = vrot.slane %v2679, 1
        %v2681 = vadd.f32 %v2679, %v2680
        %v2682 = vadd.f32 %v2638, %v2654
        %v2683 = vrot.slane %v2682, 4
        %v2684 = vadd.f32 %v2682, %v2683
        %v2685 = vrot.slane %v2684, 2
        %v2686 = vadd.f32 %v2684, %v2685
        %v2687 = vrot.slane %v2686, 1
        %v2688 = vadd.f32 %v2686, %v2687
        %v2689 = vadd.f32 %v2639, %v2655
        %v2690 = vrot.slane %v2689, 4
        %v2691 = vadd.f32 %v2689, %v2690
        %v2692 = vrot.slane %v2691, 2
        %v2693 = vadd.f32 %v2691, %v2692
        %v2694 = vrot.slane %v2693, 1
        %v2695 = vadd.f32 %v2693, %v2694
        %v2696 = vadd.f32 %v2640, %v2656
        %v2697 = vrot.slane %v2696, 4
        %v2698 = vadd.f32 %v2696, %v2697
        %v2699 = vrot.slane %v2698, 2
        %v2700 = vadd.f32 %v2698, %v2699
        %v2701 = vrot.slane %v2700, 1
        %v2702 = vadd.f32 %v2700, %v2701
        %v2703 = vadd.f32 %v2641, %v2657
        %v2704 = vrot.slane %v2703, 4
        %v2705 = vadd.f32 %v2703, %v2704
        %v2706 = vrot.slane %v2705, 2
        %v2707 = vadd.f32 %v2705, %v2706
        %v2708 = vrot.slane %v2707, 1
        %v2709 = vadd.f32 %v2707, %v2708
        %v2710 = vadd.f32 %v2642, %v2658
        %v2711 = vrot.slane %v2710, 4
        %v2712 = vadd.f32 %v2710, %v2711
        %v2713 = vrot.slane %v2712, 2
        %v2714 = vadd.f32 %v2712, %v2713
        %v2715 = vrot.slane %v2714, 1
        %v2716 = vadd.f32 %v2714, %v2715
        %v2717 = vadd.f32 %v2643, %v2659
        %v2718 = vrot.slane %v2717, 4
        %v2719 = vadd.f32 %v2717, %v2718
        %v2720 = vrot.slane %v2719, 2
        %v2721 = vadd.f32 %v2719, %v2720
        %v2722 = vrot.slane %v2721, 1
        %v2723 = vadd.f32 %v2721, %v2722
        %v2724 = vadd.f32 %v2644, %v2660
        %v2725 = vrot.slane %v2724, 4
        %v2726 = vadd.f32 %v2724, %v2725
        %v2727 = vrot.slane %v2726, 2
        %v2728 = vadd.f32 %v2726, %v2727
        %v2729 = vrot.slane %v2728, 1
        %v2730 = vadd.f32 %v2728, %v2729
        %v2731 = vadd.f32 %v2645, %v2661
        %v2732 = vrot.slane %v2731, 4
        %v2733 = vadd.f32 %v2731, %v2732
        %v2734 = vrot.slane %v2733, 2
        %v2735 = vadd.f32 %v2733, %v2734
        %v2736 = vrot.slane %v2735, 1
        %v2737 = vadd.f32 %v2735, %v2736
        %v2738 = vadd.f32 %v2646, %v2662
        %v2739 = vrot.slane %v2738, 4
        %v2740 = vadd.f32 %v2738, %v2739
        %v2741 = vrot.slane %v2740, 2
        %v2742 = vadd.f32 %v2740, %v2741
        %v2743 = vrot.slane %v2742, 1
        %v2744 = vadd.f32 %v2742, %v2743
        %v2745 = vadd.f32 %v2647, %v2663
        %v2746 = vrot.slane %v2745, 4
        %v2747 = vadd.f32 %v2745, %v2746
        %v2748 = vrot.slane %v2747, 2
        %v2749 = vadd.f32 %v2747, %v2748
        %v2750 = vrot.slane %v2749, 1
        %v2751 = vadd.f32 %v2749, %v2750
        %v2752 = vadd.f32 %v2648, %v2664
        %v2753 = vrot.slane %v2752, 4
        %v2754 = vadd.f32 %v2752, %v2753
        %v2755 = vrot.slane %v2754, 2
        %v2756 = vadd.f32 %v2754, %v2755
        %v2757 = vrot.slane %v2756, 1
        %v2758 = vadd.f32 %v2756, %v2757
        %v2759 = vadd.f32 %v2649, %v2665
        %v2760 = vrot.slane %v2759, 4
        %v2761 = vadd.f32 %v2759, %v2760
        %v2762 = vrot.slane %v2761, 2
        %v2763 = vadd.f32 %v2761, %v2762
        %v2764 = vrot.slane %v2763, 1
        %v2765 = vadd.f32 %v2763, %v2764
        %v2766 = vadd.f32 %v2650, %v2666
        %v2767 = vrot.slane %v2766, 4
        %v2768 = vadd.f32 %v2766, %v2767
        %v2769 = vrot.slane %v2768, 2
        %v2770 = vadd.f32 %v2768, %v2769
        %v2771 = vrot.slane %v2770, 1
        %v2772 = vadd.f32 %v2770, %v2771
        %v2773 = vadd.f32 %v2651, %v2667
        %v2774 = vrot.slane %v2773, 4
        %v2775 = vadd.f32 %v2773, %v2774
        %v2776 = vrot.slane %v2775, 2
        %v2777 = vadd.f32 %v2775, %v2776
        %v2778 = vrot.slane %v2777, 1
        %v2779 = vadd.f32 %v2777, %v2778
        %v2780 = vrcp.pop 16.0
        %v2781 = vmul.f32 %v2674, %v2780
        %v2782 = vmul.f32 %v2681, %v2780
        %v2783 = vmul.f32 %v2688, %v2780
        %v2784 = vmul.f32 %v2695, %v2780
        %v2785 = vmul.f32 %v2702, %v2780
        %v2786 = vmul.f32 %v2709, %v2780
        %v2787 = vmul.f32 %v2716, %v2780
        %v2788 = vmul.f32 %v2723, %v2780
        %v2789 = vmul.f32 %v2730, %v2780
        %v2790 = vmul.f32 %v2737, %v2780
        %v2791 = vmul.f32 %v2744, %v2780
        %v2792 = vmul.f32 %v2751, %v2780
        %v2793 = vmul.f32 %v2758, %v2780
        %v2794 = vmul.f32 %v2765, %v2780
        %v2795 = vmul.f32 %v2772, %v2780
        %v2796 = vmul.f32 %v2779, %v2780
        %v2797 = vmul.f32 %v2636, %v2636
        %v2798 = vmul.f32 %v2637, %v2637
        %v2799 = vmul.f32 %v2638, %v2638
        %v2800 = vmul.f32 %v2639, %v2639
        %v2801 = vmul.f32 %v2640, %v2640
        %v2802 = vmul.f32 %v2641, %v2641
        %v2803 = vmul.f32 %v2642, %v2642
        %v2804 = vmul.f32 %v2643, %v2643
        %v2805 = vmul.f32 %v2644, %v2644
        %v2806 = vmul.f32 %v2645, %v2645
        %v2807 = vmul.f32 %v2646, %v2646
        %v2808 = vmul.f32 %v2647, %v2647
        %v2809 = vmul.f32 %v2648, %v2648
        %v2810 = vmul.f32 %v2649, %v2649
        %v2811 = vmul.f32 %v2650, %v2650
        %v2812 = vmul.f32 %v2651, %v2651
        %v2813 = vmul.f32 %v2652, %v2652
        %v2814 = vmul.f32 %v2653, %v2653
        %v2815 = vmul.f32 %v2654, %v2654
        %v2816 = vmul.f32 %v2655, %v2655
        %v2817 = vmul.f32 %v2656, %v2656
        %v2818 = vmul.f32 %v2657, %v2657
        %v2819 = vmul.f32 %v2658, %v2658
        %v2820 = vmul.f32 %v2659, %v2659
        %v2821 = vmul.f32 %v2660, %v2660
        %v2822 = vmul.f32 %v2661, %v2661
        %v2823 = vmul.f32 %v2662, %v2662
        %v2824 = vmul.f32 %v2663, %v2663
        %v2825 = vmul.f32 %v2664, %v2664
        %v2826 = vmul.f32 %v2665, %v2665
        %v2827 = vmul.f32 %v2666, %v2666
        %v2828 = vmul.f32 %v2667, %v2667
        %v2829 = vadd.f32 %v2797, %v2813
        %v2830 = vrot.slane %v2829, 4
        %v2831 = vadd.f32 %v2829, %v2830
        %v2832 = vrot.slane %v2831, 2
        %v2833 = vadd.f32 %v2831, %v2832
        %v2834 = vrot.slane %v2833, 1
        %v2835 = vadd.f32 %v2833, %v2834
        %v2836 = vadd.f32 %v2798, %v2814
        %v2837 = vrot.slane %v2836, 4
        %v2838 = vadd.f32 %v2836, %v2837
        %v2839 = vrot.slane %v2838, 2
        %v2840 = vadd.f32 %v2838, %v2839
        %v2841 = vrot.slane %v2840, 1
        %v2842 = vadd.f32 %v2840, %v2841
        %v2843 = vadd.f32 %v2799, %v2815
        %v2844 = vrot.slane %v2843, 4
        %v2845 = vadd.f32 %v2843, %v2844
        %v2846 = vrot.slane %v2845, 2
        %v2847 = vadd.f32 %v2845, %v2846
        %v2848 = vrot.slane %v2847, 1
        %v2849 = vadd.f32 %v2847, %v2848
        %v2850 = vadd.f32 %v2800, %v2816
        %v2851 = vrot.slane %v2850, 4
        %v2852 = vadd.f32 %v2850, %v2851
        %v2853 = vrot.slane %v2852, 2
        %v2854 = vadd.f32 %v2852, %v2853
        %v2855 = vrot.slane %v2854, 1
        %v2856 = vadd.f32 %v2854, %v2855
        %v2857 = vadd.f32 %v2801, %v2817
        %v2858 = vrot.slane %v2857, 4
        %v2859 = vadd.f32 %v2857, %v2858
        %v2860 = vrot.slane %v2859, 2
        %v2861 = vadd.f32 %v2859, %v2860
        %v2862 = vrot.slane %v2861, 1
        %v2863 = vadd.f32 %v2861, %v2862
        %v2864 = vadd.f32 %v2802, %v2818
        %v2865 = vrot.slane %v2864, 4
        %v2866 = vadd.f32 %v2864, %v2865
        %v2867 = vrot.slane %v2866, 2
        %v2868 = vadd.f32 %v2866, %v2867
        %v2869 = vrot.slane %v2868, 1
        %v2870 = vadd.f32 %v2868, %v2869
        %v2871 = vadd.f32 %v2803, %v2819
        %v2872 = vrot.slane %v2871, 4
        %v2873 = vadd.f32 %v2871, %v2872
        %v2874 = vrot.slane %v2873, 2
        %v2875 = vadd.f32 %v2873, %v2874
        %v2876 = vrot.slane %v2875, 1
        %v2877 = vadd.f32 %v2875, %v2876
        %v2878 = vadd.f32 %v2804, %v2820
        %v2879 = vrot.slane %v2878, 4
        %v2880 = vadd.f32 %v2878, %v2879
        %v2881 = vrot.slane %v2880, 2
        %v2882 = vadd.f32 %v2880, %v2881
        %v2883 = vrot.slane %v2882, 1
        %v2884 = vadd.f32 %v2882, %v2883
        %v2885 = vadd.f32 %v2805, %v2821
        %v2886 = vrot.slane %v2885, 4
        %v2887 = vadd.f32 %v2885, %v2886
        %v2888 = vrot.slane %v2887, 2
        %v2889 = vadd.f32 %v2887, %v2888
        %v2890 = vrot.slane %v2889, 1
        %v2891 = vadd.f32 %v2889, %v2890
        %v2892 = vadd.f32 %v2806, %v2822
        %v2893 = vrot.slane %v2892, 4
        %v2894 = vadd.f32 %v2892, %v2893
        %v2895 = vrot.slane %v2894, 2
        %v2896 = vadd.f32 %v2894, %v2895
        %v2897 = vrot.slane %v2896, 1
        %v2898 = vadd.f32 %v2896, %v2897
        %v2899 = vadd.f32 %v2807, %v2823
        %v2900 = vrot.slane %v2899, 4
        %v2901 = vadd.f32 %v2899, %v2900
        %v2902 = vrot.slane %v2901, 2
        %v2903 = vadd.f32 %v2901, %v2902
        %v2904 = vrot.slane %v2903, 1
        %v2905 = vadd.f32 %v2903, %v2904
        %v2906 = vadd.f32 %v2808, %v2824
        %v2907 = vrot.slane %v2906, 4
        %v2908 = vadd.f32 %v2906, %v2907
        %v2909 = vrot.slane %v2908, 2
        %v2910 = vadd.f32 %v2908, %v2909
        %v2911 = vrot.slane %v2910, 1
        %v2912 = vadd.f32 %v2910, %v2911
        %v2913 = vadd.f32 %v2809, %v2825
        %v2914 = vrot.slane %v2913, 4
        %v2915 = vadd.f32 %v2913, %v2914
        %v2916 = vrot.slane %v2915, 2
        %v2917 = vadd.f32 %v2915, %v2916
        %v2918 = vrot.slane %v2917, 1
        %v2919 = vadd.f32 %v2917, %v2918
        %v2920 = vadd.f32 %v2810, %v2826
        %v2921 = vrot.slane %v2920, 4
        %v2922 = vadd.f32 %v2920, %v2921
        %v2923 = vrot.slane %v2922, 2
        %v2924 = vadd.f32 %v2922, %v2923
        %v2925 = vrot.slane %v2924, 1
        %v2926 = vadd.f32 %v2924, %v2925
        %v2927 = vadd.f32 %v2811, %v2827
        %v2928 = vrot.slane %v2927, 4
        %v2929 = vadd.f32 %v2927, %v2928
        %v2930 = vrot.slane %v2929, 2
        %v2931 = vadd.f32 %v2929, %v2930
        %v2932 = vrot.slane %v2931, 1
        %v2933 = vadd.f32 %v2931, %v2932
        %v2934 = vadd.f32 %v2812, %v2828
        %v2935 = vrot.slane %v2934, 4
        %v2936 = vadd.f32 %v2934, %v2935
        %v2937 = vrot.slane %v2936, 2
        %v2938 = vadd.f32 %v2936, %v2937
        %v2939 = vrot.slane %v2938, 1
        %v2940 = vadd.f32 %v2938, %v2939
        %v2941 = vmul.f32 %v2835, %v2780
        %v2942 = vmul.f32 %v2842, %v2780
        %v2943 = vmul.f32 %v2849, %v2780
        %v2944 = vmul.f32 %v2856, %v2780
        %v2945 = vmul.f32 %v2863, %v2780
        %v2946 = vmul.f32 %v2870, %v2780
        %v2947 = vmul.f32 %v2877, %v2780
        %v2948 = vmul.f32 %v2884, %v2780
        %v2949 = vmul.f32 %v2891, %v2780
        %v2950 = vmul.f32 %v2898, %v2780
        %v2951 = vmul.f32 %v2905, %v2780
        %v2952 = vmul.f32 %v2912, %v2780
        %v2953 = vmul.f32 %v2919, %v2780
        %v2954 = vmul.f32 %v2926, %v2780
        %v2955 = vmul.f32 %v2933, %v2780
        %v2956 = vmul.f32 %v2940, %v2780
        %v2957 = vmul.f32 %v2781, %v2781
        %v2958 = vmul.f32 %v2782, %v2782
        %v2959 = vmul.f32 %v2783, %v2783
        %v2960 = vmul.f32 %v2784, %v2784
        %v2961 = vmul.f32 %v2785, %v2785
        %v2962 = vmul.f32 %v2786, %v2786
        %v2963 = vmul.f32 %v2787, %v2787
        %v2964 = vmul.f32 %v2788, %v2788
        %v2965 = vmul.f32 %v2789, %v2789
        %v2966 = vmul.f32 %v2790, %v2790
        %v2967 = vmul.f32 %v2791, %v2791
        %v2968 = vmul.f32 %v2792, %v2792
        %v2969 = vmul.f32 %v2793, %v2793
        %v2970 = vmul.f32 %v2794, %v2794
        %v2971 = vmul.f32 %v2795, %v2795
        %v2972 = vmul.f32 %v2796, %v2796
        %v2973 = vsub.f32 %v2941, %v2957
        %v2974 = vsub.f32 %v2942, %v2958
        %v2975 = vsub.f32 %v2943, %v2959
        %v2976 = vsub.f32 %v2944, %v2960
        %v2977 = vsub.f32 %v2945, %v2961
        %v2978 = vsub.f32 %v2946, %v2962
        %v2979 = vsub.f32 %v2947, %v2963
        %v2980 = vsub.f32 %v2948, %v2964
        %v2981 = vsub.f32 %v2949, %v2965
        %v2982 = vsub.f32 %v2950, %v2966
        %v2983 = vsub.f32 %v2951, %v2967
        %v2984 = vsub.f32 %v2952, %v2968
        %v2985 = vsub.f32 %v2953, %v2969
        %v2986 = vsub.f32 %v2954, %v2970
        %v2987 = vsub.f32 %v2955, %v2971
        %v2988 = vsub.f32 %v2956, %v2972
        %v2989 = vmax.f32 %v2973, 0.0
        %v2990 = vmax.f32 %v2974, 0.0
        %v2991 = vmax.f32 %v2975, 0.0
        %v2992 = vmax.f32 %v2976, 0.0
        %v2993 = vmax.f32 %v2977, 0.0
        %v2994 = vmax.f32 %v2978, 0.0
        %v2995 = vmax.f32 %v2979, 0.0
        %v2996 = vmax.f32 %v2980, 0.0
        %v2997 = vmax.f32 %v2981, 0.0
        %v2998 = vmax.f32 %v2982, 0.0
        %v2999 = vmax.f32 %v2983, 0.0
        %v3000 = vmax.f32 %v2984, 0.0
        %v3001 = vmax.f32 %v2985, 0.0
        %v3002 = vmax.f32 %v2986, 0.0
        %v3003 = vmax.f32 %v2987, 0.0
        %v3004 = vmax.f32 %v2988, 0.0
        %v3005 = vsub.f32 %v2636, %v2781
        %v3006 = vsub.f32 %v2637, %v2782
        %v3007 = vsub.f32 %v2638, %v2783
        %v3008 = vsub.f32 %v2639, %v2784
        %v3009 = vsub.f32 %v2640, %v2785
        %v3010 = vsub.f32 %v2641, %v2786
        %v3011 = vsub.f32 %v2642, %v2787
        %v3012 = vsub.f32 %v2643, %v2788
        %v3013 = vsub.f32 %v2644, %v2789
        %v3014 = vsub.f32 %v2645, %v2790
        %v3015 = vsub.f32 %v2646, %v2791
        %v3016 = vsub.f32 %v2647, %v2792
        %v3017 = vsub.f32 %v2648, %v2793
        %v3018 = vsub.f32 %v2649, %v2794
        %v3019 = vsub.f32 %v2650, %v2795
        %v3020 = vsub.f32 %v2651, %v2796
        %v3021 = vsub.f32 %v2652, %v2781
        %v3022 = vsub.f32 %v2653, %v2782
        %v3023 = vsub.f32 %v2654, %v2783
        %v3024 = vsub.f32 %v2655, %v2784
        %v3025 = vsub.f32 %v2656, %v2785
        %v3026 = vsub.f32 %v2657, %v2786
        %v3027 = vsub.f32 %v2658, %v2787
        %v3028 = vsub.f32 %v2659, %v2788
        %v3029 = vsub.f32 %v2660, %v2789
        %v3030 = vsub.f32 %v2661, %v2790
        %v3031 = vsub.f32 %v2662, %v2791
        %v3032 = vsub.f32 %v2663, %v2792
        %v3033 = vsub.f32 %v2664, %v2793
        %v3034 = vsub.f32 %v2665, %v2794
        %v3035 = vsub.f32 %v2666, %v2795
        %v3036 = vsub.f32 %v2667, %v2796
        %v3037 = vadd.f32 %v2989, 1e-05
        %v3038 = vadd.f32 %v2990, 1e-05
        %v3039 = vadd.f32 %v2991, 1e-05
        %v3040 = vadd.f32 %v2992, 1e-05
        %v3041 = vadd.f32 %v2993, 1e-05
        %v3042 = vadd.f32 %v2994, 1e-05
        %v3043 = vadd.f32 %v2995, 1e-05
        %v3044 = vadd.f32 %v2996, 1e-05
        %v3045 = vadd.f32 %v2997, 1e-05
        %v3046 = vadd.f32 %v2998, 1e-05
        %v3047 = vadd.f32 %v2999, 1e-05
        %v3048 = vadd.f32 %v3000, 1e-05
        %v3049 = vadd.f32 %v3001, 1e-05
        %v3050 = vadd.f32 %v3002, 1e-05
        %v3051 = vadd.f32 %v3003, 1e-05
        %v3052 = vadd.f32 %v3004, 1e-05
        %v3053 = vrsqrt.pop %v3037
        %v3054 = vrsqrt.pop %v3038
        %v3055 = vrsqrt.pop %v3039
        %v3056 = vrsqrt.pop %v3040
        %v3057 = vrsqrt.pop %v3041
        %v3058 = vrsqrt.pop %v3042
        %v3059 = vrsqrt.pop %v3043
        %v3060 = vrsqrt.pop %v3044
        %v3061 = vrsqrt.pop %v3045
        %v3062 = vrsqrt.pop %v3046
        %v3063 = vrsqrt.pop %v3047
        %v3064 = vrsqrt.pop %v3048
        %v3065 = vrsqrt.pop %v3049
        %v3066 = vrsqrt.pop %v3050
        %v3067 = vrsqrt.pop %v3051
        %v3068 = vrsqrt.pop %v3052
        %v3069 = vmul.f32 %v3005, %v3053
        %v3070 = vmul.f32 %v3006, %v3054
        %v3071 = vmul.f32 %v3007, %v3055
        %v3072 = vmul.f32 %v3008, %v3056
        %v3073 = vmul.f32 %v3009, %v3057
        %v3074 = vmul.f32 %v3010, %v3058
        %v3075 = vmul.f32 %v3011, %v3059
        %v3076 = vmul.f32 %v3012, %v3060
        %v3077 = vmul.f32 %v3013, %v3061
        %v3078 = vmul.f32 %v3014, %v3062
        %v3079 = vmul.f32 %v3015, %v3063
        %v3080 = vmul.f32 %v3016, %v3064
        %v3081 = vmul.f32 %v3017, %v3065
        %v3082 = vmul.f32 %v3018, %v3066
        %v3083 = vmul.f32 %v3019, %v3067
        %v3084 = vmul.f32 %v3020, %v3068
        %v3085 = vmul.f32 %v3021, %v3053
        %v3086 = vmul.f32 %v3022, %v3054
        %v3087 = vmul.f32 %v3023, %v3055
        %v3088 = vmul.f32 %v3024, %v3056
        %v3089 = vmul.f32 %v3025, %v3057
        %v3090 = vmul.f32 %v3026, %v3058
        %v3091 = vmul.f32 %v3027, %v3059
        %v3092 = vmul.f32 %v3028, %v3060
        %v3093 = vmul.f32 %v3029, %v3061
        %v3094 = vmul.f32 %v3030, %v3062
        %v3095 = vmul.f32 %v3031, %v3063
        %v3096 = vmul.f32 %v3032, %v3064
        %v3097 = vmul.f32 %v3033, %v3065
        %v3098 = vmul.f32 %v3034, %v3066
        %v3099 = vmul.f32 %v3035, %v3067
        %v3100 = vmul.f32 %v3036, %v3068
        %3101 = vset.pattern.permute.xlu0 7
        %3102 = vperm.xlu0 %3101, %v608
        %v3103 = vpop.permute.xlu0 %3102
        %3105 = vset.pattern.permute.xlu0 7
        %3106 = vperm.xlu0 %3105, %v609
        %v3107 = vpop.permute.xlu0 %3106
        %v3109 = vmul.f32 %v3103, %v3069
        %v3110 = vmul.f32 %v3103, %v3070
        %v3111 = vmul.f32 %v3103, %v3071
        %v3112 = vmul.f32 %v3103, %v3072
        %v3113 = vmul.f32 %v3103, %v3073
        %v3114 = vmul.f32 %v3103, %v3074
        %v3115 = vmul.f32 %v3103, %v3075
        %v3116 = vmul.f32 %v3103, %v3076
        %v3117 = vmul.f32 %v3103, %v3077
        %v3118 = vmul.f32 %v3103, %v3078
        %v3119 = vmul.f32 %v3103, %v3079
        %v3120 = vmul.f32 %v3103, %v3080
        %v3121 = vmul.f32 %v3103, %v3081
        %v3122 = vmul.f32 %v3103, %v3082
        %v3123 = vmul.f32 %v3103, %v3083
        %v3124 = vmul.f32 %v3103, %v3084
        %v3125 = vmul.f32 %v3107, %v3085
        %v3126 = vmul.f32 %v3107, %v3086
        %v3127 = vmul.f32 %v3107, %v3087
        %v3128 = vmul.f32 %v3107, %v3088
        %v3129 = vmul.f32 %v3107, %v3089
        %v3130 = vmul.f32 %v3107, %v3090
        %v3131 = vmul.f32 %v3107, %v3091
        %v3132 = vmul.f32 %v3107, %v3092
        %v3133 = vmul.f32 %v3107, %v3093
        %v3134 = vmul.f32 %v3107, %v3094
        %v3135 = vmul.f32 %v3107, %v3095
        %v3136 = vmul.f32 %v3107, %v3096
        %v3137 = vmul.f32 %v3107, %v3097
        %v3138 = vmul.f32 %v3107, %v3098
        %v3139 = vmul.f32 %v3107, %v3099
        %v3140 = vmul.f32 %v3107, %v3100
        %3141 = vset.pattern.permute.xlu0 8
        %3142 = vperm.xlu0 %3141, %v608
        %v3143 = vpop.permute.xlu0 %3142
        %3145 = vset.pattern.permute.xlu0 8
        %3146 = vperm.xlu0 %3145, %v609
        %v3147 = vpop.permute.xlu0 %3146
        %v3149 = vadd.f32 %v3109, %v3143
        %v3150 = vadd.f32 %v3110, %v3143
        %v3151 = vadd.f32 %v3111, %v3143
        %v3152 = vadd.f32 %v3112, %v3143
        %v3153 = vadd.f32 %v3113, %v3143
        %v3154 = vadd.f32 %v3114, %v3143
        %v3155 = vadd.f32 %v3115, %v3143
        %v3156 = vadd.f32 %v3116, %v3143
        %v3157 = vadd.f32 %v3117, %v3143
        %v3158 = vadd.f32 %v3118, %v3143
        %v3159 = vadd.f32 %v3119, %v3143
        %v3160 = vadd.f32 %v3120, %v3143
        %v3161 = vadd.f32 %v3121, %v3143
        %v3162 = vadd.f32 %v3122, %v3143
        %v3163 = vadd.f32 %v3123, %v3143
        %v3164 = vadd.f32 %v3124, %v3143
        %v3165 = vadd.f32 %v3125, %v3147
        %v3166 = vadd.f32 %v3126, %v3147
        %v3167 = vadd.f32 %v3127, %v3147
        %v3168 = vadd.f32 %v3128, %v3147
        %v3169 = vadd.f32 %v3129, %v3147
        %v3170 = vadd.f32 %v3130, %v3147
        %v3171 = vadd.f32 %v3131, %v3147
        %v3172 = vadd.f32 %v3132, %v3147
        %v3173 = vadd.f32 %v3133, %v3147
        %v3174 = vadd.f32 %v3134, %v3147
        %v3175 = vadd.f32 %v3135, %v3147
        %v3176 = vadd.f32 %v3136, %v3147
        %v3177 = vadd.f32 %v3137, %v3147
        %v3178 = vadd.f32 %v3138, %v3147
        %v3179 = vadd.f32 %v3139, %v3147
        %v3180 = vadd.f32 %v3140, %v3147
        %v3181 = vmax.f32 %v3149, 0.0
        %v3182 = vmax.f32 %v3150, 0.0
        %v3183 = vmax.f32 %v3151, 0.0
        %v3184 = vmax.f32 %v3152, 0.0
        %v3185 = vmax.f32 %v3153, 0.0
        %v3186 = vmax.f32 %v3154, 0.0
        %v3187 = vmax.f32 %v3155, 0.0
        %v3188 = vmax.f32 %v3156, 0.0
        %v3189 = vmax.f32 %v3157, 0.0
        %v3190 = vmax.f32 %v3158, 0.0
        %v3191 = vmax.f32 %v3159, 0.0
        %v3192 = vmax.f32 %v3160, 0.0
        %v3193 = vmax.f32 %v3161, 0.0
        %v3194 = vmax.f32 %v3162, 0.0
        %v3195 = vmax.f32 %v3163, 0.0
        %v3196 = vmax.f32 %v3164, 0.0
        %v3197 = vmax.f32 %v3165, 0.0
        %v3198 = vmax.f32 %v3166, 0.0
        %v3199 = vmax.f32 %v3167, 0.0
        %v3200 = vmax.f32 %v3168, 0.0
        %v3201 = vmax.f32 %v3169, 0.0
        %v3202 = vmax.f32 %v3170, 0.0
        %v3203 = vmax.f32 %v3171, 0.0
        %v3204 = vmax.f32 %v3172, 0.0
        %v3205 = vmax.f32 %v3173, 0.0
        %v3206 = vmax.f32 %v3174, 0.0
        %v3207 = vmax.f32 %v3175, 0.0
        %v3208 = vmax.f32 %v3176, 0.0
        %v3209 = vmax.f32 %v3177, 0.0
        %v3210 = vmax.f32 %v3178, 0.0
        %v3211 = vmax.f32 %v3179, 0.0
        %v3212 = vmax.f32 %v3180, 0.0
        %3213 = vset.pattern.permute.xlu0 10
        %3214 = vperm.xlu0 %3213, %v608
        %v3215 = vpop.permute.xlu0 %3214
        %3217 = vset.pattern.permute.xlu0 10
        %3218 = vperm.xlu0 %3217, %v609
        %v3219 = vpop.permute.xlu0 %3218
        %v3221 = vmul.f32 %v3215, %v3181
        %v3222 = vmul.f32 %v3215, %v3182
        %v3223 = vmul.f32 %v3215, %v3183
        %v3224 = vmul.f32 %v3215, %v3184
        %v3225 = vmul.f32 %v3215, %v3185
        %v3226 = vmul.f32 %v3215, %v3186
        %v3227 = vmul.f32 %v3215, %v3187
        %v3228 = vmul.f32 %v3215, %v3188
        %v3229 = vmul.f32 %v3215, %v3189
        %v3230 = vmul.f32 %v3215, %v3190
        %v3231 = vmul.f32 %v3215, %v3191
        %v3232 = vmul.f32 %v3215, %v3192
        %v3233 = vmul.f32 %v3215, %v3193
        %v3234 = vmul.f32 %v3215, %v3194
        %v3235 = vmul.f32 %v3215, %v3195
        %v3236 = vmul.f32 %v3215, %v3196
        %v3237 = vmul.f32 %v3219, %v3197
        %v3238 = vmul.f32 %v3219, %v3198
        %v3239 = vmul.f32 %v3219, %v3199
        %v3240 = vmul.f32 %v3219, %v3200
        %v3241 = vmul.f32 %v3219, %v3201
        %v3242 = vmul.f32 %v3219, %v3202
        %v3243 = vmul.f32 %v3219, %v3203
        %v3244 = vmul.f32 %v3219, %v3204
        %v3245 = vmul.f32 %v3219, %v3205
        %v3246 = vmul.f32 %v3219, %v3206
        %v3247 = vmul.f32 %v3219, %v3207
        %v3248 = vmul.f32 %v3219, %v3208
        %v3249 = vmul.f32 %v3219, %v3209
        %v3250 = vmul.f32 %v3219, %v3210
        %v3251 = vmul.f32 %v3219, %v3211
        %v3252 = vmul.f32 %v3219, %v3212
        %v3253 = vadd.f32 %v3221, %v3237
        %v3254 = vrot.slane %v3253, 4
        %v3255 = vadd.f32 %v3253, %v3254
        %v3256 = vrot.slane %v3255, 2
        %v3257 = vadd.f32 %v3255, %v3256
        %v3258 = vrot.slane %v3257, 1
        %v3259 = vadd.f32 %v3257, %v3258
        %v3260 = vadd.f32 %v3222, %v3238
        %v3261 = vrot.slane %v3260, 4
        %v3262 = vadd.f32 %v3260, %v3261
        %v3263 = vrot.slane %v3262, 2
        %v3264 = vadd.f32 %v3262, %v3263
        %v3265 = vrot.slane %v3264, 1
        %v3266 = vadd.f32 %v3264, %v3265
        %v3267 = vadd.f32 %v3223, %v3239
        %v3268 = vrot.slane %v3267, 4
        %v3269 = vadd.f32 %v3267, %v3268
        %v3270 = vrot.slane %v3269, 2
        %v3271 = vadd.f32 %v3269, %v3270
        %v3272 = vrot.slane %v3271, 1
        %v3273 = vadd.f32 %v3271, %v3272
        %v3274 = vadd.f32 %v3224, %v3240
        %v3275 = vrot.slane %v3274, 4
        %v3276 = vadd.f32 %v3274, %v3275
        %v3277 = vrot.slane %v3276, 2
        %v3278 = vadd.f32 %v3276, %v3277
        %v3279 = vrot.slane %v3278, 1
        %v3280 = vadd.f32 %v3278, %v3279
        %v3281 = vadd.f32 %v3225, %v3241
        %v3282 = vrot.slane %v3281, 4
        %v3283 = vadd.f32 %v3281, %v3282
        %v3284 = vrot.slane %v3283, 2
        %v3285 = vadd.f32 %v3283, %v3284
        %v3286 = vrot.slane %v3285, 1
        %v3287 = vadd.f32 %v3285, %v3286
        %v3288 = vadd.f32 %v3226, %v3242
        %v3289 = vrot.slane %v3288, 4
        %v3290 = vadd.f32 %v3288, %v3289
        %v3291 = vrot.slane %v3290, 2
        %v3292 = vadd.f32 %v3290, %v3291
        %v3293 = vrot.slane %v3292, 1
        %v3294 = vadd.f32 %v3292, %v3293
        %v3295 = vadd.f32 %v3227, %v3243
        %v3296 = vrot.slane %v3295, 4
        %v3297 = vadd.f32 %v3295, %v3296
        %v3298 = vrot.slane %v3297, 2
        %v3299 = vadd.f32 %v3297, %v3298
        %v3300 = vrot.slane %v3299, 1
        %v3301 = vadd.f32 %v3299, %v3300
        %v3302 = vadd.f32 %v3228, %v3244
        %v3303 = vrot.slane %v3302, 4
        %v3304 = vadd.f32 %v3302, %v3303
        %v3305 = vrot.slane %v3304, 2
        %v3306 = vadd.f32 %v3304, %v3305
        %v3307 = vrot.slane %v3306, 1
        %v3308 = vadd.f32 %v3306, %v3307
        %v3309 = vadd.f32 %v3229, %v3245
        %v3310 = vrot.slane %v3309, 4
        %v3311 = vadd.f32 %v3309, %v3310
        %v3312 = vrot.slane %v3311, 2
        %v3313 = vadd.f32 %v3311, %v3312
        %v3314 = vrot.slane %v3313, 1
        %v3315 = vadd.f32 %v3313, %v3314
        %v3316 = vadd.f32 %v3230, %v3246
        %v3317 = vrot.slane %v3316, 4
        %v3318 = vadd.f32 %v3316, %v3317
        %v3319 = vrot.slane %v3318, 2
        %v3320 = vadd.f32 %v3318, %v3319
        %v3321 = vrot.slane %v3320, 1
        %v3322 = vadd.f32 %v3320, %v3321
        %v3323 = vadd.f32 %v3231, %v3247
        %v3324 = vrot.slane %v3323, 4
        %v3325 = vadd.f32 %v3323, %v3324
        %v3326 = vrot.slane %v3325, 2
        %v3327 = vadd.f32 %v3325, %v3326
        %v3328 = vrot.slane %v3327, 1
        %v3329 = vadd.f32 %v3327, %v3328
        %v3330 = vadd.f32 %v3232, %v3248
        %v3331 = vrot.slane %v3330, 4
        %v3332 = vadd.f32 %v3330, %v3331
        %v3333 = vrot.slane %v3332, 2
        %v3334 = vadd.f32 %v3332, %v3333
        %v3335 = vrot.slane %v3334, 1
        %v3336 = vadd.f32 %v3334, %v3335
        %v3337 = vadd.f32 %v3233, %v3249
        %v3338 = vrot.slane %v3337, 4
        %v3339 = vadd.f32 %v3337, %v3338
        %v3340 = vrot.slane %v3339, 2
        %v3341 = vadd.f32 %v3339, %v3340
        %v3342 = vrot.slane %v3341, 1
        %v3343 = vadd.f32 %v3341, %v3342
        %v3344 = vadd.f32 %v3234, %v3250
        %v3345 = vrot.slane %v3344, 4
        %v3346 = vadd.f32 %v3344, %v3345
        %v3347 = vrot.slane %v3346, 2
        %v3348 = vadd.f32 %v3346, %v3347
        %v3349 = vrot.slane %v3348, 1
        %v3350 = vadd.f32 %v3348, %v3349
        %v3351 = vadd.f32 %v3235, %v3251
        %v3352 = vrot.slane %v3351, 4
        %v3353 = vadd.f32 %v3351, %v3352
        %v3354 = vrot.slane %v3353, 2
        %v3355 = vadd.f32 %v3353, %v3354
        %v3356 = vrot.slane %v3355, 1
        %v3357 = vadd.f32 %v3355, %v3356
        %v3358 = vadd.f32 %v3236, %v3252
        %v3359 = vrot.slane %v3358, 4
        %v3360 = vadd.f32 %v3358, %v3359
        %v3361 = vrot.slane %v3360, 2
        %v3362 = vadd.f32 %v3360, %v3361
        %v3363 = vrot.slane %v3362, 1
        %v3364 = vadd.f32 %v3362, %v3363
        %s3365 = sld [smem:[#allocation2 + $0x17]]
        %v3366 = vstv %s3365
        %v3367 = vadd.f32 %v3259, %v3366
        %v3368 = vadd.f32 %v3266, %v3366
        %v3369 = vadd.f32 %v3273, %v3366
        %v3370 = vadd.f32 %v3280, %v3366
        %v3371 = vadd.f32 %v3287, %v3366
        %v3372 = vadd.f32 %v3294, %v3366
        %v3373 = vadd.f32 %v3301, %v3366
        %v3374 = vadd.f32 %v3308, %v3366
        %v3375 = vadd.f32 %v3315, %v3366
        %v3376 = vadd.f32 %v3322, %v3366
        %v3377 = vadd.f32 %v3329, %v3366
        %v3378 = vadd.f32 %v3336, %v3366
        %v3379 = vadd.f32 %v3343, %v3366
        %v3380 = vadd.f32 %v3350, %v3366
        %v3381 = vadd.f32 %v3357, %v3366
        %v3382 = vadd.f32 %v3364, %v3366
        %v3383 = vxor.u32 %v3367, 2147483648
        %v3384 = vxor.u32 %v3368, 2147483648
        %v3385 = vxor.u32 %v3369, 2147483648
        %v3386 = vxor.u32 %v3370, 2147483648
        %v3387 = vxor.u32 %v3371, 2147483648
        %v3388 = vxor.u32 %v3372, 2147483648
        %v3389 = vxor.u32 %v3373, 2147483648
        %v3390 = vxor.u32 %v3374, 2147483648
        %v3391 = vxor.u32 %v3375, 2147483648
        %v3392 = vxor.u32 %v3376, 2147483648
        %v3393 = vxor.u32 %v3377, 2147483648
        %v3394 = vxor.u32 %v3378, 2147483648
        %v3395 = vxor.u32 %v3379, 2147483648
        %v3396 = vxor.u32 %v3380, 2147483648
        %v3397 = vxor.u32 %v3381, 2147483648
        %v3398 = vxor.u32 %v3382, 2147483648
        %v3399 = vmul.f32 %v3383, 1.442695
        %v3400 = vpow.pop %v3399
        %v3401 = vmul.f32 %v3384, 1.442695
        %v3402 = vpow.pop %v3401
        %v3403 = vmul.f32 %v3385, 1.442695
        %v3404 = vpow.pop %v3403
        %v3405 = vmul.f32 %v3386, 1.442695
        %v3406 = vpow.pop %v3405
        %v3407 = vmul.f32 %v3387, 1.442695
        %v3408 = vpow.pop %v3407
        %v3409 = vmul.f32 %v3388, 1.442695
        %v3410 = vpow.pop %v3409
        %v3411 = vmul.f32 %v3389, 1.442695
        %v3412 = vpow.pop %v3411
        %v3413 = vmul.f32 %v3390, 1.442695
        %v3414 = vpow.pop %v3413
        %v3415 = vmul.f32 %v3391, 1.442695
        %v3416 = vpow.pop %v3415
        %v3417 = vmul.f32 %v3392, 1.442695
        %v3418 = vpow.pop %v3417
        %v3419 = vmul.f32 %v3393, 1.442695
        %v3420 = vpow.pop %v3419
        %v3421 = vmul.f32 %v3394, 1.442695
        %v3422 = vpow.pop %v3421
        %v3423 = vmul.f32 %v3395, 1.442695
        %v3424 = vpow.pop %v3423
        %v3425 = vmul.f32 %v3396, 1.442695
        %v3426 = vpow.pop %v3425
        %v3427 = vmul.f32 %v3397, 1.442695
        %v3428 = vpow.pop %v3427
        %v3429 = vmul.f32 %v3398, 1.442695
        %v3430 = vpow.pop %v3429
        %v3431 = vadd.f32 %v3400, 1.0
        %v3432 = vadd.f32 %v3402, 1.0
        %v3433 = vadd.f32 %v3404, 1.0
        %v3434 = vadd.f32 %v3406, 1.0
        %v3435 = vadd.f32 %v3408, 1.0
        %v3436 = vadd.f32 %v3410, 1.0
        %v3437 = vadd.f32 %v3412, 1.0
        %v3438 = vadd.f32 %v3414, 1.0
        %v3439 = vadd.f32 %v3416, 1.0
        %v3440 = vadd.f32 %v3418, 1.0
        %v3441 = vadd.f32 %v3420, 1.0
        %v3442 = vadd.f32 %v3422, 1.0
        %v3443 = vadd.f32 %v3424, 1.0
        %v3444 = vadd.f32 %v3426, 1.0
        %v3445 = vadd.f32 %v3428, 1.0
        %v3446 = vadd.f32 %v3430, 1.0
        %v3447 = vrcp.pop %v3431
        %v3448 = vmul.f32 1.0, %v3447
        %v3449 = vrcp.pop %v3432
        %v3450 = vmul.f32 1.0, %v3449
        %v3451 = vrcp.pop %v3433
        %v3452 = vmul.f32 1.0, %v3451
        %v3453 = vrcp.pop %v3434
        %v3454 = vmul.f32 1.0, %v3453
        %v3455 = vrcp.pop %v3435
        %v3456 = vmul.f32 1.0, %v3455
        %v3457 = vrcp.pop %v3436
        %v3458 = vmul.f32 1.0, %v3457
        %v3459 = vrcp.pop %v3437
        %v3460 = vmul.f32 1.0, %v3459
        %v3461 = vrcp.pop %v3438
        %v3462 = vmul.f32 1.0, %v3461
        %v3463 = vrcp.pop %v3439
        %v3464 = vmul.f32 1.0, %v3463
        %v3465 = vrcp.pop %v3440
        %v3466 = vmul.f32 1.0, %v3465
        %v3467 = vrcp.pop %v3441
        %v3468 = vmul.f32 1.0, %v3467
        %v3469 = vrcp.pop %v3442
        %v3470 = vmul.f32 1.0, %v3469
        %v3471 = vrcp.pop %v3443
        %v3472 = vmul.f32 1.0, %v3471
        %v3473 = vrcp.pop %v3444
        %v3474 = vmul.f32 1.0, %v3473
        %v3475 = vrcp.pop %v3445
        %v3476 = vmul.f32 1.0, %v3475
        %v3477 = vrcp.pop %v3446
        %v3478 = vmul.f32 1.0, %v3477
        %v3479 = vadd.f32 %v3448, 1e-06
        %v3480 = vadd.f32 %v3450, 1e-06
        %v3481 = vadd.f32 %v3452, 1e-06
        %v3482 = vadd.f32 %v3454, 1e-06
        %v3483 = vadd.f32 %v3456, 1e-06
        %v3484 = vadd.f32 %v3458, 1e-06
        %v3485 = vadd.f32 %v3460, 1e-06
        %v3486 = vadd.f32 %v3462, 1e-06
        %v3487 = vadd.f32 %v3464, 1e-06
        %v3488 = vadd.f32 %v3466, 1e-06
        %v3489 = vadd.f32 %v3468, 1e-06
        %v3490 = vadd.f32 %v3470, 1e-06
        %v3491 = vadd.f32 %v3472, 1e-06
        %v3492 = vadd.f32 %v3474, 1e-06
        %v3493 = vadd.f32 %v3476, 1e-06
        %v3494 = vadd.f32 %v3478, 1e-06
        %3495 = vset.pattern.permute.xlu0 9
        %3496 = vperm.xlu0 %3495, %v608
        %v3497 = vpop.permute.xlu0 %3496
        %3499 = vset.pattern.permute.xlu0 9
        %3500 = vperm.xlu0 %3499, %v609
        %v3501 = vpop.permute.xlu0 %3500
        %v3503 = vadd.f32 %v1995, %v3497
        %v3504 = vadd.f32 %v1997, %v3497
        %v3505 = vadd.f32 %v2084, %v3497
        %v3506 = vadd.f32 %v2086, %v3497
        %v3507 = vadd.f32 %v2173, %v3497
        %v3508 = vadd.f32 %v2175, %v3497
        %v3509 = vadd.f32 %v2262, %v3497
        %v3510 = vadd.f32 %v2264, %v3497
        %v3511 = vadd.f32 %v2351, %v3497
        %v3512 = vadd.f32 %v2353, %v3497
        %v3513 = vadd.f32 %v2440, %v3497
        %v3514 = vadd.f32 %v2442, %v3497
        %v3515 = vadd.f32 %v2529, %v3497
        %v3516 = vadd.f32 %v2531, %v3497
        %v3517 = vadd.f32 %v2618, %v3497
        %v3518 = vadd.f32 %v2620, %v3497
        %v3519 = vadd.f32 %v2001, %v3501
        %v3520 = vadd.f32 %v2003, %v3501
        %v3521 = vadd.f32 %v2090, %v3501
        %v3522 = vadd.f32 %v2092, %v3501
        %v3523 = vadd.f32 %v2179, %v3501
        %v3524 = vadd.f32 %v2181, %v3501
        %v3525 = vadd.f32 %v2268, %v3501
        %v3526 = vadd.f32 %v2270, %v3501
        %v3527 = vadd.f32 %v2357, %v3501
        %v3528 = vadd.f32 %v2359, %v3501
        %v3529 = vadd.f32 %v2446, %v3501
        %v3530 = vadd.f32 %v2448, %v3501
        %v3531 = vadd.f32 %v2535, %v3501
        %v3532 = vadd.f32 %v2537, %v3501
        %v3533 = vadd.f32 %v2624, %v3501
        %v3534 = vadd.f32 %v2626, %v3501
        %v3535 = vmax.f32 %v3503, 0.0
        %v3536 = vmax.f32 %v3504, 0.0
        %v3537 = vmax.f32 %v3505, 0.0
        %v3538 = vmax.f32 %v3506, 0.0
        %v3539 = vmax.f32 %v3507, 0.0
        %v3540 = vmax.f32 %v3508, 0.0
        %v3541 = vmax.f32 %v3509, 0.0
        %v3542 = vmax.f32 %v3510, 0.0
        %v3543 = vmax.f32 %v3511, 0.0
        %v3544 = vmax.f32 %v3512, 0.0
        %v3545 = vmax.f32 %v3513, 0.0
        %v3546 = vmax.f32 %v3514, 0.0
        %v3547 = vmax.f32 %v3515, 0.0
        %v3548 = vmax.f32 %v3516, 0.0
        %v3549 = vmax.f32 %v3517, 0.0
        %v3550 = vmax.f32 %v3518, 0.0
        %v3551 = vmax.f32 %v3519, 0.0
        %v3552 = vmax.f32 %v3520, 0.0
        %v3553 = vmax.f32 %v3521, 0.0
        %v3554 = vmax.f32 %v3522, 0.0
        %v3555 = vmax.f32 %v3523, 0.0
        %v3556 = vmax.f32 %v3524, 0.0
        %v3557 = vmax.f32 %v3525, 0.0
        %v3558 = vmax.f32 %v3526, 0.0
        %v3559 = vmax.f32 %v3527, 0.0
        %v3560 = vmax.f32 %v3528, 0.0
        %v3561 = vmax.f32 %v3529, 0.0
        %v3562 = vmax.f32 %v3530, 0.0
        %v3563 = vmax.f32 %v3531, 0.0
        %v3564 = vmax.f32 %v3532, 0.0
        %v3565 = vmax.f32 %v3533, 0.0
        %v3566 = vmax.f32 %v3534, 0.0
        %3567 = vset.pattern.permute.xlu0 11
        %3568 = vperm.xlu0 %3567, %v608
        %v3569 = vpop.permute.xlu0 %3568
        %3571 = vset.pattern.permute.xlu0 11
        %3572 = vperm.xlu0 %3571, %v609
        %v3573 = vpop.permute.xlu0 %3572
        %v3575 = vmul.f32 %v3569, %v3535
        %v3576 = vmul.f32 %v3569, %v3536
        %v3577 = vmul.f32 %v3569, %v3537
        %v3578 = vmul.f32 %v3569, %v3538
        %v3579 = vmul.f32 %v3569, %v3539
        %v3580 = vmul.f32 %v3569, %v3540
        %v3581 = vmul.f32 %v3569, %v3541
        %v3582 = vmul.f32 %v3569, %v3542
        %v3583 = vmul.f32 %v3569, %v3543
        %v3584 = vmul.f32 %v3569, %v3544
        %v3585 = vmul.f32 %v3569, %v3545
        %v3586 = vmul.f32 %v3569, %v3546
        %v3587 = vmul.f32 %v3569, %v3547
        %v3588 = vmul.f32 %v3569, %v3548
        %v3589 = vmul.f32 %v3569, %v3549
        %v3590 = vmul.f32 %v3569, %v3550
        %v3591 = vmul.f32 %v3573, %v3551
        %v3592 = vmul.f32 %v3573, %v3552
        %v3593 = vmul.f32 %v3573, %v3553
        %v3594 = vmul.f32 %v3573, %v3554
        %v3595 = vmul.f32 %v3573, %v3555
        %v3596 = vmul.f32 %v3573, %v3556
        %v3597 = vmul.f32 %v3573, %v3557
        %v3598 = vmul.f32 %v3573, %v3558
        %v3599 = vmul.f32 %v3573, %v3559
        %v3600 = vmul.f32 %v3573, %v3560
        %v3601 = vmul.f32 %v3573, %v3561
        %v3602 = vmul.f32 %v3573, %v3562
        %v3603 = vmul.f32 %v3573, %v3563
        %v3604 = vmul.f32 %v3573, %v3564
        %v3605 = vmul.f32 %v3573, %v3565
        %v3606 = vmul.f32 %v3573, %v3566
        %v3607 = vadd.f32 %v3575, %v3591
        %v3608 = vrot.slane %v3607, 4
        %v3609 = vadd.f32 %v3607, %v3608
        %v3610 = vrot.slane %v3609, 2
        %v3611 = vadd.f32 %v3609, %v3610
        %v3612 = vrot.slane %v3611, 1
        %v3613 = vadd.f32 %v3611, %v3612
        %v3614 = vadd.f32 %v3576, %v3592
        %v3615 = vrot.slane %v3614, 4
        %v3616 = vadd.f32 %v3614, %v3615
        %v3617 = vrot.slane %v3616, 2
        %v3618 = vadd.f32 %v3616, %v3617
        %v3619 = vrot.slane %v3618, 1
        %v3620 = vadd.f32 %v3618, %v3619
        %v3621 = vadd.f32 %v3577, %v3593
        %v3622 = vrot.slane %v3621, 4
        %v3623 = vadd.f32 %v3621, %v3622
        %v3624 = vrot.slane %v3623, 2
        %v3625 = vadd.f32 %v3623, %v3624
        %v3626 = vrot.slane %v3625, 1
        %v3627 = vadd.f32 %v3625, %v3626
        %v3628 = vadd.f32 %v3578, %v3594
        %v3629 = vrot.slane %v3628, 4
        %v3630 = vadd.f32 %v3628, %v3629
        %v3631 = vrot.slane %v3630, 2
        %v3632 = vadd.f32 %v3630, %v3631
        %v3633 = vrot.slane %v3632, 1
        %v3634 = vadd.f32 %v3632, %v3633
        %v3635 = vadd.f32 %v3579, %v3595
        %v3636 = vrot.slane %v3635, 4
        %v3637 = vadd.f32 %v3635, %v3636
        %v3638 = vrot.slane %v3637, 2
        %v3639 = vadd.f32 %v3637, %v3638
        %v3640 = vrot.slane %v3639, 1
        %v3641 = vadd.f32 %v3639, %v3640
        %v3642 = vadd.f32 %v3580, %v3596
        %v3643 = vrot.slane %v3642, 4
        %v3644 = vadd.f32 %v3642, %v3643
        %v3645 = vrot.slane %v3644, 2
        %v3646 = vadd.f32 %v3644, %v3645
        %v3647 = vrot.slane %v3646, 1
        %v3648 = vadd.f32 %v3646, %v3647
        %v3649 = vadd.f32 %v3581, %v3597
        %v3650 = vrot.slane %v3649, 4
        %v3651 = vadd.f32 %v3649, %v3650
        %v3652 = vrot.slane %v3651, 2
        %v3653 = vadd.f32 %v3651, %v3652
        %v3654 = vrot.slane %v3653, 1
        %v3655 = vadd.f32 %v3653, %v3654
        %v3656 = vadd.f32 %v3582, %v3598
        %v3657 = vrot.slane %v3656, 4
        %v3658 = vadd.f32 %v3656, %v3657
        %v3659 = vrot.slane %v3658, 2
        %v3660 = vadd.f32 %v3658, %v3659
        %v3661 = vrot.slane %v3660, 1
        %v3662 = vadd.f32 %v3660, %v3661
        %v3663 = vadd.f32 %v3583, %v3599
        %v3664 = vrot.slane %v3663, 4
        %v3665 = vadd.f32 %v3663, %v3664
        %v3666 = vrot.slane %v3665, 2
        %v3667 = vadd.f32 %v3665, %v3666
        %v3668 = vrot.slane %v3667, 1
        %v3669 = vadd.f32 %v3667, %v3668
        %v3670 = vadd.f32 %v3584, %v3600
        %v3671 = vrot.slane %v3670, 4
        %v3672 = vadd.f32 %v3670, %v3671
        %v3673 = vrot.slane %v3672, 2
        %v3674 = vadd.f32 %v3672, %v3673
        %v3675 = vrot.slane %v3674, 1
        %v3676 = vadd.f32 %v3674, %v3675
        %v3677 = vadd.f32 %v3585, %v3601
        %v3678 = vrot.slane %v3677, 4
        %v3679 = vadd.f32 %v3677, %v3678
        %v3680 = vrot.slane %v3679, 2
        %v3681 = vadd.f32 %v3679, %v3680
        %v3682 = vrot.slane %v3681, 1
        %v3683 = vadd.f32 %v3681, %v3682
        %v3684 = vadd.f32 %v3586, %v3602
        %v3685 = vrot.slane %v3684, 4
        %v3686 = vadd.f32 %v3684, %v3685
        %v3687 = vrot.slane %v3686, 2
        %v3688 = vadd.f32 %v3686, %v3687
        %v3689 = vrot.slane %v3688, 1
        %v3690 = vadd.f32 %v3688, %v3689
        %v3691 = vadd.f32 %v3587, %v3603
        %v3692 = vrot.slane %v3691, 4
        %v3693 = vadd.f32 %v3691, %v3692
        %v3694 = vrot.slane %v3693, 2
        %v3695 = vadd.f32 %v3693, %v3694
        %v3696 = vrot.slane %v3695, 1
        %v3697 = vadd.f32 %v3695, %v3696
        %v3698 = vadd.f32 %v3588, %v3604
        %v3699 = vrot.slane %v3698, 4
        %v3700 = vadd.f32 %v3698, %v3699
        %v3701 = vrot.slane %v3700, 2
        %v3702 = vadd.f32 %v3700, %v3701
        %v3703 = vrot.slane %v3702, 1
        %v3704 = vadd.f32 %v3702, %v3703
        %v3705 = vadd.f32 %v3589, %v3605
        %v3706 = vrot.slane %v3705, 4
        %v3707 = vadd.f32 %v3705, %v3706
        %v3708 = vrot.slane %v3707, 2
        %v3709 = vadd.f32 %v3707, %v3708
        %v3710 = vrot.slane %v3709, 1
        %v3711 = vadd.f32 %v3709, %v3710
        %v3712 = vadd.f32 %v3590, %v3606
        %v3713 = vrot.slane %v3712, 4
        %v3714 = vadd.f32 %v3712, %v3713
        %v3715 = vrot.slane %v3714, 2
        %v3716 = vadd.f32 %v3714, %v3715
        %v3717 = vrot.slane %v3716, 1
        %v3718 = vadd.f32 %v3716, %v3717
        %s3719 = sld [smem:[#allocation2 + $0x18]]
        %v3720 = vstv %s3719
        %v3721 = vadd.f32 %v3613, %v3720
        %v3722 = vadd.f32 %v3620, %v3720
        %v3723 = vadd.f32 %v3627, %v3720
        %v3724 = vadd.f32 %v3634, %v3720
        %v3725 = vadd.f32 %v3641, %v3720
        %v3726 = vadd.f32 %v3648, %v3720
        %v3727 = vadd.f32 %v3655, %v3720
        %v3728 = vadd.f32 %v3662, %v3720
        %v3729 = vadd.f32 %v3669, %v3720
        %v3730 = vadd.f32 %v3676, %v3720
        %v3731 = vadd.f32 %v3683, %v3720
        %v3732 = vadd.f32 %v3690, %v3720
        %v3733 = vadd.f32 %v3697, %v3720
        %v3734 = vadd.f32 %v3704, %v3720
        %v3735 = vadd.f32 %v3711, %v3720
        %v3736 = vadd.f32 %v3718, %v3720
        %v3737 = vtanh.pop %v3721
        %v3738 = vtanh.pop %v3722
        %v3739 = vtanh.pop %v3723
        %v3740 = vtanh.pop %v3724
        %v3741 = vtanh.pop %v3725
        %v3742 = vtanh.pop %v3726
        %v3743 = vtanh.pop %v3727
        %v3744 = vtanh.pop %v3728
        %v3745 = vtanh.pop %v3729
        %v3746 = vtanh.pop %v3730
        %v3747 = vtanh.pop %v3731
        %v3748 = vtanh.pop %v3732
        %v3749 = vtanh.pop %v3733
        %v3750 = vtanh.pop %v3734
        %v3751 = vtanh.pop %v3735
        %v3752 = vtanh.pop %v3736
        %v3769 = vcombine.low %v3479, %v3480
        %v3770 = vcombine.low %v3481, %v3482
        %v3771 = vcombine.low %v3483, %v3484
        %v3772 = vcombine.low %v3485, %v3486
        %v3774 = vunpack.c.l.s4 1966171168
        %v3775 = vunpack.c.0.s8 %v3774
        %v3776 = vlaneseq
        %v3777 = vshrl.u32 %v3776, 7
        %v3778 = vsub.s32 %v3775, %v3777
        %v3779 = vrot.slane %v3769, %v3778
        %v3781 = vunpack.c.l.s4 1966171168
        %v3782 = vunpack.c.0.s8 %v3781
        %v3783 = vlaneseq
        %v3784 = vshrl.u32 %v3783, 7
        %v3785 = vsub.s32 %v3782, %v3784
        %v3786 = vrot.slane %v3770, %v3785
        %v3788 = vunpack.c.l.s4 1966171168
        %v3789 = vunpack.c.0.s8 %v3788
        %v3790 = vlaneseq
        %v3791 = vshrl.u32 %v3790, 7
        %v3792 = vsub.s32 %v3789, %v3791
        %v3793 = vrot.slane %v3771, %v3792
        %v3795 = vunpack.c.l.s4 1966171168
        %v3796 = vunpack.c.0.s8 %v3795
        %v3797 = vlaneseq
        %v3798 = vshrl.u32 %v3797, 7
        %v3799 = vsub.s32 %v3796, %v3798
        %v3800 = vrot.slane %v3772, %v3799
        %v3801 = vcombine.low %v3779, %v3786
        %v3802 = vcombine.low %v3793, %v3800
        %v3804 = vunpack.c.l.s4 1966171168
        %v3805 = vunpack.c.0.s8 %v3804
        %v3806 = vlaneseq
        %v3807 = vshrl.u32 %v3806, 7
        %v3808 = vsub.s32 %v3805, %v3807
        %v3809 = vrot.slane %v3801, %v3808
        %v3811 = vunpack.c.l.s4 1966171168
        %v3812 = vunpack.c.0.s8 %v3811
        %v3813 = vlaneseq
        %v3814 = vshrl.u32 %v3813, 7
        %v3815 = vsub.s32 %v3812, %v3814
        %v3816 = vrot.slane %v3802, %v3815
        %v3817 = vcombine.low %v3809, %v3816
        %v3818 = vcombine.low %v3487, %v3488
        %v3819 = vcombine.low %v3489, %v3490
        %v3820 = vcombine.low %v3491, %v3492
        %v3821 = vcombine.low %v3493, %v3494
        %v3823 = vunpack.c.l.s4 1966171168
        %v3824 = vunpack.c.0.s8 %v3823
        %v3825 = vlaneseq
        %v3826 = vshrl.u32 %v3825, 7
        %v3827 = vsub.s32 %v3824, %v3826
        %v3828 = vrot.slane %v3818, %v3827
        %v3830 = vunpack.c.l.s4 1966171168
        %v3831 = vunpack.c.0.s8 %v3830
        %v3832 = vlaneseq
        %v3833 = vshrl.u32 %v3832, 7
        %v3834 = vsub.s32 %v3831, %v3833
        %v3835 = vrot.slane %v3819, %v3834
        %v3837 = vunpack.c.l.s4 1966171168
        %v3838 = vunpack.c.0.s8 %v3837
        %v3839 = vlaneseq
        %v3840 = vshrl.u32 %v3839, 7
        %v3841 = vsub.s32 %v3838, %v3840
        %v3842 = vrot.slane %v3820, %v3841
        %v3844 = vunpack.c.l.s4 1966171168
        %v3845 = vunpack.c.0.s8 %v3844
        %v3846 = vlaneseq
        %v3847 = vshrl.u32 %v3846, 7
        %v3848 = vsub.s32 %v3845, %v3847
        %v3849 = vrot.slane %v3821, %v3848
        %v3850 = vcombine.low %v3828, %v3835
        %v3851 = vcombine.low %v3842, %v3849
        %v3853 = vunpack.c.l.s4 1966171168
        %v3854 = vunpack.c.0.s8 %v3853
        %v3855 = vlaneseq
        %v3856 = vshrl.u32 %v3855, 7
        %v3857 = vsub.s32 %v3854, %v3856
        %v3858 = vrot.slane %v3850, %v3857
        %v3860 = vunpack.c.l.s4 1966171168
        %v3861 = vunpack.c.0.s8 %v3860
        %v3862 = vlaneseq
        %v3863 = vshrl.u32 %v3862, 7
        %v3864 = vsub.s32 %v3861, %v3863
        %v3865 = vrot.slane %v3851, %v3864
        %v3866 = vcombine.low %v3858, %v3865
        %3869 = vst [vmem:[%s340] ss:$2 sm:$0xff] %v3817
        %s3870 = scalar_lea.vmem %s340, 16
        %3871 = vst [vmem:[%s3870] ss:$2 sm:$0xff] %v3866
        %v3888 = vcombine.low %v3737, %v3738
        %v3889 = vcombine.low %v3739, %v3740
        %v3890 = vcombine.low %v3741, %v3742
        %v3891 = vcombine.low %v3743, %v3744
        %v3893 = vunpack.c.l.s4 1966171168
        %v3894 = vunpack.c.0.s8 %v3893
        %v3895 = vlaneseq
        %v3896 = vshrl.u32 %v3895, 7
        %v3897 = vsub.s32 %v3894, %v3896
        %v3898 = vrot.slane %v3888, %v3897
        %v3900 = vunpack.c.l.s4 1966171168
        %v3901 = vunpack.c.0.s8 %v3900
        %v3902 = vlaneseq
        %v3903 = vshrl.u32 %v3902, 7
        %v3904 = vsub.s32 %v3901, %v3903
        %v3905 = vrot.slane %v3889, %v3904
        %v3907 = vunpack.c.l.s4 1966171168
        %v3908 = vunpack.c.0.s8 %v3907
        %v3909 = vlaneseq
        %v3910 = vshrl.u32 %v3909, 7
        %v3911 = vsub.s32 %v3908, %v3910
        %v3912 = vrot.slane %v3890, %v3911
        %v3914 = vunpack.c.l.s4 1966171168
        %v3915 = vunpack.c.0.s8 %v3914
        %v3916 = vlaneseq
        %v3917 = vshrl.u32 %v3916, 7
        %v3918 = vsub.s32 %v3915, %v3917
        %v3919 = vrot.slane %v3891, %v3918
        %v3920 = vcombine.low %v3898, %v3905
        %v3921 = vcombine.low %v3912, %v3919
        %v3923 = vunpack.c.l.s4 1966171168
        %v3924 = vunpack.c.0.s8 %v3923
        %v3925 = vlaneseq
        %v3926 = vshrl.u32 %v3925, 7
        %v3927 = vsub.s32 %v3924, %v3926
        %v3928 = vrot.slane %v3920, %v3927
        %v3930 = vunpack.c.l.s4 1966171168
        %v3931 = vunpack.c.0.s8 %v3930
        %v3932 = vlaneseq
        %v3933 = vshrl.u32 %v3932, 7
        %v3934 = vsub.s32 %v3931, %v3933
        %v3935 = vrot.slane %v3921, %v3934
        %v3936 = vcombine.low %v3928, %v3935
        %v3937 = vcombine.low %v3745, %v3746
        %v3938 = vcombine.low %v3747, %v3748
        %v3939 = vcombine.low %v3749, %v3750
        %v3940 = vcombine.low %v3751, %v3752
        %v3942 = vunpack.c.l.s4 1966171168
        %v3943 = vunpack.c.0.s8 %v3942
        %v3944 = vlaneseq
        %v3945 = vshrl.u32 %v3944, 7
        %v3946 = vsub.s32 %v3943, %v3945
        %v3947 = vrot.slane %v3937, %v3946
        %v3949 = vunpack.c.l.s4 1966171168
        %v3950 = vunpack.c.0.s8 %v3949
        %v3951 = vlaneseq
        %v3952 = vshrl.u32 %v3951, 7
        %v3953 = vsub.s32 %v3950, %v3952
        %v3954 = vrot.slane %v3938, %v3953
        %v3956 = vunpack.c.l.s4 1966171168
        %v3957 = vunpack.c.0.s8 %v3956
        %v3958 = vlaneseq
        %v3959 = vshrl.u32 %v3958, 7
        %v3960 = vsub.s32 %v3957, %v3959
        %v3961 = vrot.slane %v3939, %v3960
        %v3963 = vunpack.c.l.s4 1966171168
        %v3964 = vunpack.c.0.s8 %v3963
        %v3965 = vlaneseq
        %v3966 = vshrl.u32 %v3965, 7
        %v3967 = vsub.s32 %v3964, %v3966
        %v3968 = vrot.slane %v3940, %v3967
        %v3969 = vcombine.low %v3947, %v3954
        %v3970 = vcombine.low %v3961, %v3968
        %v3972 = vunpack.c.l.s4 1966171168
        %v3973 = vunpack.c.0.s8 %v3972
        %v3974 = vlaneseq
        %v3975 = vshrl.u32 %v3974, 7
        %v3976 = vsub.s32 %v3973, %v3975
        %v3977 = vrot.slane %v3969, %v3976
        %v3979 = vunpack.c.l.s4 1966171168
        %v3980 = vunpack.c.0.s8 %v3979
        %v3981 = vlaneseq
        %v3982 = vshrl.u32 %v3981, 7
        %v3983 = vsub.s32 %v3980, %v3982
        %v3984 = vrot.slane %v3970, %v3983
        %v3985 = vcombine.low %v3977, %v3984
        %s3988 = scalar_lea.vmem %s340, 1
        %3989 = vst [vmem:[%s3988] ss:$2 sm:$0xff] %v3936
        %s3990 = scalar_lea.vmem %s340, 17
        %3991 = vst [vmem:[%s3990] ss:$2 sm:$0xff] %v3985
        %s3992 = smul.u32 2, %s20
        %p3993 = scmp.lt.s32.totalorder %s3992, 3
        %s3994 = scalar_select %p3993, %s3992, 3
        %s3995 = smul.addr %s3994, 8
        %s3996 = scalar_lea.vmem %s5, %s3995
        %s3997 = smul.u32 2, %s20
        %p3998 = scmp.lt.s32.totalorder %s3997, 3
        %s3999 = scalar_select %p3998, %s3997, 3
        %s4000 = smul.addr %s3999, 8
        %s4001 = scalar_lea.vmem %s6, %s4000
        %s4002 = smul.u32 16, %s20
        %p4003 = scmp.lt.s32.totalorder %s4002, 31
        %s4004 = scalar_select %p4003, %s4002, 31
        %s4005 = smul.addr %s4004, 2
        %s4006 = scalar_lea.vmem %s7, %s4005
        // Predicated region
        $region45: #{ensemble_spectral_filter.1} parent=39 // pred_check
          %p4007 = pneg %p153
        $region46: #{ensemble_spectral_filter.1} parent=39 // pred_check_branch
          %4009 = sbr.rel (%p4007) target = $region48
        $region47: #{ensemble_spectral_filter.1} parent=39 // pred_region
          %s4010 = smul.u32 2, %s20
        $region48: #{ensemble_spectral_filter.1} parent=39 // pred_fallthru
          _
        // Predicated region
        $region49: #{ensemble_spectral_filter.1} parent=39 // pred_check
          %p4011 = pneg %p179
        $region50: #{ensemble_spectral_filter.1} parent=39 // pred_check_branch
          %4013 = sbr.rel (%p4011) target = $region52
        $region51: #{ensemble_spectral_filter.1} parent=39 // pred_region
          %s4014 = smul.u32 2, %s20
        $region52: #{ensemble_spectral_filter.1} parent=39 // pred_fallthru
          _
        // Predicated region
        $region53: #{ensemble_spectral_filter.1} parent=39 // pred_check
          %p4015 = pneg %p205
        $region54: #{ensemble_spectral_filter.1} parent=39 // pred_check_branch
          %4017 = sbr.rel (%p4015) target = $region56
        $region55: #{ensemble_spectral_filter.1} parent=39 // pred_region
          %s4018 = smul.u32 16, %s20
        $region56: #{ensemble_spectral_filter.1} parent=39 // pred_fallthru
          _
      $region40: #{ensemble_spectral_filter.1} parent=5 // pred_fallthru
        _
      %p4019 = scmp.le.s32.totalorder 2, %s15
      // Predicated region
      $region57: #{ensemble_spectral_filter.1} parent=5 // pred_check
        %p4020 = pneg %p4019
      $region58: #{ensemble_spectral_filter.1} parent=5 // pred_check_branch
        %4022 = sbr.rel (%p4020) target = $region60
      $region59: #{ensemble_spectral_filter.1} parent=5 // pred_region
        %s4023 = ssub.s32 %s15, 2
        // Predicated region
        $region61: #{ensemble_spectral_filter.1} parent=59 // pred_check
          %p4024 = pneg %p159
        $region62: #{ensemble_spectral_filter.1} parent=59 // pred_check_branch
          %4026 = sbr.rel (%p4024) target = $region64
        $region63: #{ensemble_spectral_filter.1} parent=59 // pred_region
          %s4027 = smul.u32 2, %s21
          %p4028 = scmp.lt.s32.totalorder %s4027, 3
          %s4029 = scalar_select %p4028, %s4027, 3
          %s4030 = smul.addr %s4029, 8
          %s4031 = scalar_lea.vmem %s5, %s4030
        $region64: #{ensemble_spectral_filter.1} parent=59 // pred_fallthru
          _
        // Predicated region
        $region65: #{ensemble_spectral_filter.1} parent=59 // pred_check
          %p4032 = pneg %p185
        $region66: #{ensemble_spectral_filter.1} parent=59 // pred_check_branch
          %4034 = sbr.rel (%p4032) target = $region68
        $region67: #{ensemble_spectral_filter.1} parent=59 // pred_region
          %s4035 = smul.u32 2, %s21
          %p4036 = scmp.lt.s32.totalorder %s4035, 3
          %s4037 = scalar_select %p4036, %s4035, 3
          %s4038 = smul.addr %s4037, 8
          %s4039 = scalar_lea.vmem %s6, %s4038
        $region68: #{ensemble_spectral_filter.1} parent=59 // pred_fallthru
          _
        // Predicated region
        $region69: #{ensemble_spectral_filter.1} parent=59 // pred_check
          %p4040 = pneg %p211
        $region70: #{ensemble_spectral_filter.1} parent=59 // pred_check_branch
          %4042 = sbr.rel (%p4040) target = $region72
        $region71: #{ensemble_spectral_filter.1} parent=59 // pred_region
          %s4043 = smul.u32 16, %s21
          %p4044 = scmp.lt.s32.totalorder %s4043, 31
          %s4045 = scalar_select %p4044, %s4043, 31
          %s4046 = smul.addr %s4045, 2
          %s4047 = scalar_lea.vmem %s7, %s4046
        $region72: #{ensemble_spectral_filter.1} parent=59 // pred_fallthru
          _
      $region60: #{ensemble_spectral_filter.1} parent=5 // pred_fallthru
        _
    $region6: #{ensemble_spectral_filter.1} parent=1 // loop_footer
      %s19 = sadd.s32 1, %s15
    $region7: #{ensemble_spectral_filter.1} parent=1 // loop_footer_branch
      %14 = sbr.rel target = $region3
    $region8: #{ensemble_spectral_filter.1} parent=1 // loop_exit
      _
    %4048 = vsyncpa [#allocation3], 1
    %s4049 = scalar_lea.sflag [#allocation3], 1
    %4050 = vsyncpa %s4049, 1

</llo_original>
